<compile_context>
chip_gen: v7x
topology: tpu7x:2x2x1
jax: 0.10.0
libtpu: 0.0.40
codegen_flags: <defaults>
</compile_context>

<pallas_src>
import jax
import jax.numpy as jnp
import numpy as np
from jax.experimental import pallas as pl
from jax.experimental.pallas import tpu as pltpu

BN_EPS = 1e-5


# ------------------------------ kernel helpers -------------------------------
def _pad_hw(x, p):
    """Zero-pad the leading two (spatial) dims of an (H, W, C) value by p."""
    if p == 0:
        return x
    H, W, C = x.shape
    zrow = jnp.zeros((p, W, C), x.dtype)
    x = jnp.concatenate([zrow, x, zrow], axis=0)
    zcol = jnp.zeros((H + 2 * p, p, C), x.dtype)
    return jnp.concatenate([zcol, x, zcol], axis=1)


def _conv_bnfold_relu(x_hwc, w2d, b_row, KH, KW):
    """Conv(pad=same) with BN already folded into (w2d, b_row), then ReLU.

    x_hwc : (H, W, Cin) f32
    w2d   : (KH*KW*Cin, Cout) f32   (BN-folded, im2col ordering)
    b_row : (1, Cout) f32           (BN-folded bias)
    returns (H*W, Cout) f32
    """
    H, W, Cin = x_hwc.shape
    p = (KH - 1) // 2
    xpad = _pad_hw(x_hwc, p)                       # (H+2p, W+2p, Cin)
    # im2col: one (H*W, KH*KW*Cin) patch -> single MXU matmul (K = KH*KW*Cin)
    cols = []
    for dy in range(KH):
        for dx in range(KW):
            cols.append(xpad[dy:dy + H, dx:dx + W, :].reshape(H * W, Cin))
    patch = jnp.concatenate(cols, axis=1)          # (H*W, KH*KW*Cin)
    acc = jnp.dot(patch, w2d, preferred_element_type=jnp.float32)
    acc = acc + b_row
    return jnp.maximum(acc, 0.0)


def _make_residual_kernel(H, W, Cin, Cout, KH, KW, remove_residual):
    def kernel(x_ref, w0_ref, b0_ref, w1_ref, b1_ref, w2_ref, b2_ref, o_ref):
        x = x_ref[0]                                               # (H, W, Cin)
        # preprocess
        h0 = _conv_bnfold_relu(x, w0_ref[...], b0_ref[...], KH, KW)        # (H*W, Cout)
        # conv_0
        h1 = _conv_bnfold_relu(h0.reshape(H, W, Cout), w1_ref[...], b1_ref[...], 3, 3)
        # conv_1
        h2 = _conv_bnfold_relu(h1.reshape(H, W, Cout), w2_ref[...], b2_ref[...], 3, 3)
        out = h2 if remove_residual else h2 + h0                   # ai8x.Add
        # lane-dense store in NCHW order: (Cout, H*W) -> last dim 256 (unmasked vst)
        o_ref[0] = out.T
    return kernel


# ---------------------------------- wrapper -----------------------------------
def _fold_bn(w, b, bn_mean, bn_var):
    """Fold eval-mode BatchNorm2d (no affine) into conv weight/bias.

    w: (KH, KW, Cin, Cout) -> returns (KH*KW*Cin, Cout), (1, Cout)
    """
    scale = jax.lax.rsqrt(bn_var.astype(jnp.float32) + BN_EPS)     # (Cout,)
    wf = w.astype(jnp.float32) * scale[None, None, None, :]
    bf = (b.astype(jnp.float32) - bn_mean.astype(jnp.float32)) * scale
    KH, KW, Cin, Cout = w.shape
    return wf.reshape(KH * KW * Cin, Cout), bf.reshape(1, Cout)


def residual_forward_nchw(x_nchw, params, remove_residual=False):
    """Residual block forward. Input NCHW (PyTorch layout), output NCHW."""
    N, Cin, H, W = x_nchw.shape
    w_pre = params["preprocess"][0]
    KH, KW, _, Cout = w_pre.shape

    w0, b0 = _fold_bn(*params["preprocess"])
    w1, b1 = _fold_bn(*params["conv_0"])
    w2, b2 = _fold_bn(*params["conv_1"])

    x_nhwc = jnp.transpose(x_nchw, (0, 2, 3, 1)).astype(jnp.float32)

    kernel = _make_residual_kernel(H, W, Cin, Cout, KH, KW, remove_residual)
    out_flat = pl.pallas_call(
        kernel,
        out_shape=jax.ShapeDtypeStruct((N, Cout, H * W), jnp.float32),
        grid=(N,),
        in_specs=[
            pl.BlockSpec((1, H, W, Cin), lambda n: (n, 0, 0, 0)),
            pl.BlockSpec(w0.shape, lambda n: (0, 0)),
            pl.BlockSpec(b0.shape, lambda n: (0, 0)),
            pl.BlockSpec(w1.shape, lambda n: (0, 0)),
            pl.BlockSpec(b1.shape, lambda n: (0, 0)),
            pl.BlockSpec(w2.shape, lambda n: (0, 0)),
            pl.BlockSpec(b2.shape, lambda n: (0, 0)),
        ],
        out_specs=pl.BlockSpec((1, Cout, H * W), lambda n: (n, 0, 0)),
        compiler_params=pltpu.CompilerParams(
            dimension_semantics=("parallel",)),
    )(x_nhwc, w0, b0, w1, b1, w2, b2)

    return out_flat.reshape(N, Cout, H, W)                         # NCHW


# ---------------- plain-JAX reference (for correctness check) ----------------
def _ref_conv_bn_relu(x, w, b, mean, var):
    y = jax.lax.conv_general_dilated(
        x, w, window_strides=(1, 1), padding="SAME",
        dimension_numbers=("NHWC", "HWIO", "NHWC"))
    y = y + b[None, None, None, :]
    y = (y - mean[None, None, None, :]) * jax.lax.rsqrt(var[None, None, None, :] + BN_EPS)
    return jnp.maximum(y, 0.0)


def _ref_forward_nchw(x_nchw, params, remove_residual=False):
    x = jnp.transpose(x_nchw, (0, 2, 3, 1))
    x = _ref_conv_bn_relu(x, *params["preprocess"])
    x1 = x
    x = _ref_conv_bn_relu(x, *params["conv_0"])
    x = _ref_conv_bn_relu(x, *params["conv_1"])
    if not remove_residual:
        x = x + x1
    return jnp.transpose(x, (0, 3, 1, 2))


# ------------------------------- parameter init ------------------------------
def _init_layer(key, cin, cout, ksz=3):
    kw, kb, km, kv = jax.random.split(key, 4)
    fan_in = cin * ksz * ksz
    w = jax.random.normal(kw, (ksz, ksz, cin, cout), jnp.float32) / np.sqrt(fan_in)
    b = 0.01 * jax.random.normal(kb, (cout,), jnp.float32)
    # BatchNorm2d('NoAffine') running stats (non-trivial, to exercise the fold)
    bn_mean = 0.05 * jax.random.normal(km, (cout,), jnp.float32)
    bn_var = 0.5 + jax.random.uniform(kv, (cout,), jnp.float32)
    return (w, b, bn_mean, bn_var)


if __name__ == "__main__":
    key = jax.random.PRNGKey(0)
    N, Cin, H, W = 2, 4, 16, 16
    Cout = 8

    kx, k_pre, k_r0, k_r1 = jax.random.split(key, 4)
    x_nchw = jax.random.normal(kx, (N, Cin, H, W), jnp.float32)

    params = {
        "preprocess": _init_layer(k_pre, Cin, Cout),
        "conv_0": _init_layer(k_r0, Cout, Cout),
        "conv_1": _init_layer(k_r1, Cout, Cout),
    }

    y_nchw = residual_forward_nchw(x_nchw, params)
    jax.block_until_ready(y_nchw)

    # correctness vs plain-JAX reference (un-folded BN)
    y_ref = _ref_forward_nchw(x_nchw, params)
    np.testing.assert_allclose(np.asarray(y_nchw), np.asarray(y_ref),
                               rtol=1e-4, atol=1e-4)

    print("KERNEL_OK")
</pallas_src>

<mosaic_0001>
module attributes {stable_mosaic.version = 11 : i64} {
  func.func @kernel(%arg0: i32, %arg1: memref<1x16x16x4xf32, #tpu.memory_space<vmem>>, %arg2: memref<36x8xf32, #tpu.memory_space<vmem>>, %arg3: memref<1x8xf32, #tpu.memory_space<vmem>>, %arg4: memref<72x8xf32, #tpu.memory_space<vmem>>, %arg5: memref<1x8xf32, #tpu.memory_space<vmem>>, %arg6: memref<72x8xf32, #tpu.memory_space<vmem>>, %arg7: memref<1x8xf32, #tpu.memory_space<vmem>>, %arg8: memref<1x8x256xf32, #tpu.memory_space<vmem>>) attributes {dimension_semantics = [#tpu.dimension_semantics<parallel>], iteration_bounds = array<i64: 2>, scalar_prefetch = 0 : i64, scratch_operands = 0 : i64, tpu.core_type = #tpu.core_type<tc>, window_params = [{transform_indices = @transform_0, window_bounds = array<i64: 1, 16, 16, 4>}, {pipeline_mode = #tpu.pipeline_mode<synchronous>, transform_indices = @transform_1, window_bounds = array<i64: 36, 8>}, {pipeline_mode = #tpu.pipeline_mode<synchronous>, transform_indices = @transform_2, window_bounds = array<i64: 1, 8>}, {pipeline_mode = #tpu.pipeline_mode<synchronous>, transform_indices = @transform_3, window_bounds = array<i64: 72, 8>}, {pipeline_mode = #tpu.pipeline_mode<synchronous>, transform_indices = @transform_4, window_bounds = array<i64: 1, 8>}, {pipeline_mode = #tpu.pipeline_mode<synchronous>, transform_indices = @transform_5, window_bounds = array<i64: 72, 8>}, {pipeline_mode = #tpu.pipeline_mode<synchronous>, transform_indices = @transform_6, window_bounds = array<i64: 1, 8>}, {transform_indices = @transform_7, window_bounds = array<i64: 1, 8, 256>}]} {
    %c0 = arith.constant 0 : index
    %c0_0 = arith.constant 0 : index
    %c0_1 = arith.constant 0 : index
    %c0_2 = arith.constant 0 : index
    %0 = vector.load %arg1[%c0, %c0_0, %c0_1, %c0_2] : memref<1x16x16x4xf32, #tpu.memory_space<vmem>>, vector<1x16x16x4xf32>
    %1 = vector.shape_cast %0 : vector<1x16x16x4xf32> to vector<16x16x4xf32>
    %c0_3 = arith.constant 0 : index
    %c0_4 = arith.constant 0 : index
    %2 = vector.load %arg2[%c0_3, %c0_4] : memref<36x8xf32, #tpu.memory_space<vmem>>, vector<36x8xf32>
    %c0_5 = arith.constant 0 : index
    %c0_6 = arith.constant 0 : index
    %3 = vector.load %arg3[%c0_5, %c0_6] : memref<1x8xf32, #tpu.memory_space<vmem>>, vector<1x8xf32>
    %cst = arith.constant 0.000000e+00 : f32
    %4 = vector.broadcast %cst : f32 to vector<1x16x4xf32>
    %5 = tpu.concatenate %4, %1, %4 in 0 : vector<1x16x4xf32>, vector<16x16x4xf32>, vector<1x16x4xf32> -> vector<18x16x4xf32>
    %cst_7 = arith.constant 0.000000e+00 : f32
    %6 = vector.broadcast %cst_7 : f32 to vector<18x1x4xf32>
    %7 = tpu.concatenate %6, %5, %6 in 1 : vector<18x1x4xf32>, vector<18x16x4xf32>, vector<18x1x4xf32> -> vector<18x18x4xf32>
    %8 = vector.extract_strided_slice %7 {offsets = [0, 0, 0], sizes = [16, 16, 4], strides = [1, 1, 1]} : vector<18x18x4xf32> to vector<16x16x4xf32>
    %9 = vector.shape_cast %8 : vector<16x16x4xf32> to vector<256x4xf32>
    %10 = vector.extract_strided_slice %7 {offsets = [0, 1, 0], sizes = [16, 16, 4], strides = [1, 1, 1]} : vector<18x18x4xf32> to vector<16x16x4xf32>
    %11 = vector.shape_cast %10 : vector<16x16x4xf32> to vector<256x4xf32>
    %12 = vector.extract_strided_slice %7 {offsets = [0, 2, 0], sizes = [16, 16, 4], strides = [1, 1, 1]} : vector<18x18x4xf32> to vector<16x16x4xf32>
    %13 = vector.shape_cast %12 : vector<16x16x4xf32> to vector<256x4xf32>
    %14 = vector.extract_strided_slice %7 {offsets = [1, 0, 0], sizes = [16, 16, 4], strides = [1, 1, 1]} : vector<18x18x4xf32> to vector<16x16x4xf32>
    %15 = vector.shape_cast %14 : vector<16x16x4xf32> to vector<256x4xf32>
    %16 = vector.extract_strided_slice %7 {offsets = [1, 1, 0], sizes = [16, 16, 4], strides = [1, 1, 1]} : vector<18x18x4xf32> to vector<16x16x4xf32>
    %17 = vector.shape_cast %16 : vector<16x16x4xf32> to vector<256x4xf32>
    %18 = vector.extract_strided_slice %7 {offsets = [1, 2, 0], sizes = [16, 16, 4], strides = [1, 1, 1]} : vector<18x18x4xf32> to vector<16x16x4xf32>
    %19 = vector.shape_cast %18 : vector<16x16x4xf32> to vector<256x4xf32>
    %20 = vector.extract_strided_slice %7 {offsets = [2, 0, 0], sizes = [16, 16, 4], strides = [1, 1, 1]} : vector<18x18x4xf32> to vector<16x16x4xf32>
    %21 = vector.shape_cast %20 : vector<16x16x4xf32> to vector<256x4xf32>
    %22 = vector.extract_strided_slice %7 {offsets = [2, 1, 0], sizes = [16, 16, 4], strides = [1, 1, 1]} : vector<18x18x4xf32> to vector<16x16x4xf32>
    %23 = vector.shape_cast %22 : vector<16x16x4xf32> to vector<256x4xf32>
    %24 = vector.extract_strided_slice %7 {offsets = [2, 2, 0], sizes = [16, 16, 4], strides = [1, 1, 1]} : vector<18x18x4xf32> to vector<16x16x4xf32>
    %25 = vector.shape_cast %24 : vector<16x16x4xf32> to vector<256x4xf32>
    %26 = tpu.concatenate %9, %11, %13, %15, %17, %19, %21, %23, %25 in 1 : vector<256x4xf32>, vector<256x4xf32>, vector<256x4xf32>, vector<256x4xf32>, vector<256x4xf32>, vector<256x4xf32>, vector<256x4xf32>, vector<256x4xf32>, vector<256x4xf32> -> vector<256x36xf32>
    %cst_8 = arith.constant dense<0.000000e+00> : vector<256x8xf32>
    %27 = tpu.matmul %26, %2, %cst_8 {dimension_numbers = #tpu.dot_dimension_numbers<[1], [0], [0], [1], [0, 0, 1, 1], [], []>} : vector<256x36xf32>, vector<36x8xf32>, vector<256x8xf32> -> vector<256x8xf32>
    %28 = vector.broadcast %3 : vector<1x8xf32> to vector<256x8xf32>
    %29 = arith.addf %27, %28 : vector<256x8xf32>
    %cst_9 = arith.constant 0.000000e+00 : f32
    %30 = vector.broadcast %cst_9 : f32 to vector<256x8xf32>
    %31 = arith.maximumf %29, %30 : vector<256x8xf32>
    %32 = vector.shape_cast %31 : vector<256x8xf32> to vector<16x16x8xf32>
    %c0_10 = arith.constant 0 : index
    %c0_11 = arith.constant 0 : index
    %33 = vector.load %arg4[%c0_10, %c0_11] : memref<72x8xf32, #tpu.memory_space<vmem>>, vector<72x8xf32>
    %c0_12 = arith.constant 0 : index
    %c0_13 = arith.constant 0 : index
    %34 = vector.load %arg5[%c0_12, %c0_13] : memref<1x8xf32, #tpu.memory_space<vmem>>, vector<1x8xf32>
    %cst_14 = arith.constant 0.000000e+00 : f32
    %35 = vector.broadcast %cst_14 : f32 to vector<1x16x8xf32>
    %36 = tpu.concatenate %35, %32, %35 in 0 : vector<1x16x8xf32>, vector<16x16x8xf32>, vector<1x16x8xf32> -> vector<18x16x8xf32>
    %cst_15 = arith.constant 0.000000e+00 : f32
    %37 = vector.broadcast %cst_15 : f32 to vector<18x1x8xf32>
    %38 = tpu.concatenate %37, %36, %37 in 1 : vector<18x1x8xf32>, vector<18x16x8xf32>, vector<18x1x8xf32> -> vector<18x18x8xf32>
    %39 = vector.extract_strided_slice %38 {offsets = [0, 0, 0], sizes = [16, 16, 8], strides = [1, 1, 1]} : vector<18x18x8xf32> to vector<16x16x8xf32>
    %40 = vector.shape_cast %39 : vector<16x16x8xf32> to vector<256x8xf32>
    %41 = vector.extract_strided_slice %38 {offsets = [0, 1, 0], sizes = [16, 16, 8], strides = [1, 1, 1]} : vector<18x18x8xf32> to vector<16x16x8xf32>
    %42 = vector.shape_cast %41 : vector<16x16x8xf32> to vector<256x8xf32>
    %43 = vector.extract_strided_slice %38 {offsets = [0, 2, 0], sizes = [16, 16, 8], strides = [1, 1, 1]} : vector<18x18x8xf32> to vector<16x16x8xf32>
    %44 = vector.shape_cast %43 : vector<16x16x8xf32> to vector<256x8xf32>
    %45 = vector.extract_strided_slice %38 {offsets = [1, 0, 0], sizes = [16, 16, 8], strides = [1, 1, 1]} : vector<18x18x8xf32> to vector<16x16x8xf32>
    %46 = vector.shape_cast %45 : vector<16x16x8xf32> to vector<256x8xf32>
    %47 = vector.extract_strided_slice %38 {offsets = [1, 1, 0], sizes = [16, 16, 8], strides = [1, 1, 1]} : vector<18x18x8xf32> to vector<16x16x8xf32>
    %48 = vector.shape_cast %47 : vector<16x16x8xf32> to vector<256x8xf32>
    %49 = vector.extract_strided_slice %38 {offsets = [1, 2, 0], sizes = [16, 16, 8], strides = [1, 1, 1]} : vector<18x18x8xf32> to vector<16x16x8xf32>
    %50 = vector.shape_cast %49 : vector<16x16x8xf32> to vector<256x8xf32>
    %51 = vector.extract_strided_slice %38 {offsets = [2, 0, 0], sizes = [16, 16, 8], strides = [1, 1, 1]} : vector<18x18x8xf32> to vector<16x16x8xf32>
    %52 = vector.shape_cast %51 : vector<16x16x8xf32> to vector<256x8xf32>
    %53 = vector.extract_strided_slice %38 {offsets = [2, 1, 0], sizes = [16, 16, 8], strides = [1, 1, 1]} : vector<18x18x8xf32> to vector<16x16x8xf32>
    %54 = vector.shape_cast %53 : vector<16x16x8xf32> to vector<256x8xf32>
    %55 = vector.extract_strided_slice %38 {offsets = [2, 2, 0], sizes = [16, 16, 8], strides = [1, 1, 1]} : vector<18x18x8xf32> to vector<16x16x8xf32>
    %56 = vector.shape_cast %55 : vector<16x16x8xf32> to vector<256x8xf32>
    %57 = tpu.concatenate %40, %42, %44, %46, %48, %50, %52, %54, %56 in 1 : vector<256x8xf32>, vector<256x8xf32>, vector<256x8xf32>, vector<256x8xf32>, vector<256x8xf32>, vector<256x8xf32>, vector<256x8xf32>, vector<256x8xf32>, vector<256x8xf32> -> vector<256x72xf32>
    %cst_16 = arith.constant dense<0.000000e+00> : vector<256x8xf32>
    %58 = tpu.matmul %57, %33, %cst_16 {dimension_numbers = #tpu.dot_dimension_numbers<[1], [0], [0], [1], [0, 0, 1, 1], [], []>} : vector<256x72xf32>, vector<72x8xf32>, vector<256x8xf32> -> vector<256x8xf32>
    %59 = vector.broadcast %34 : vector<1x8xf32> to vector<256x8xf32>
    %60 = arith.addf %58, %59 : vector<256x8xf32>
    %cst_17 = arith.constant 0.000000e+00 : f32
    %61 = vector.broadcast %cst_17 : f32 to vector<256x8xf32>
    %62 = arith.maximumf %60, %61 : vector<256x8xf32>
    %63 = vector.shape_cast %62 : vector<256x8xf32> to vector<16x16x8xf32>
    %c0_18 = arith.constant 0 : index
    %c0_19 = arith.constant 0 : index
    %64 = vector.load %arg6[%c0_18, %c0_19] : memref<72x8xf32, #tpu.memory_space<vmem>>, vector<72x8xf32>
    %c0_20 = arith.constant 0 : index
    %c0_21 = arith.constant 0 : index
    %65 = vector.load %arg7[%c0_20, %c0_21] : memref<1x8xf32, #tpu.memory_space<vmem>>, vector<1x8xf32>
    %cst_22 = arith.constant 0.000000e+00 : f32
    %66 = vector.broadcast %cst_22 : f32 to vector<1x16x8xf32>
    %67 = tpu.concatenate %66, %63, %66 in 0 : vector<1x16x8xf32>, vector<16x16x8xf32>, vector<1x16x8xf32> -> vector<18x16x8xf32>
    %cst_23 = arith.constant 0.000000e+00 : f32
    %68 = vector.broadcast %cst_23 : f32 to vector<18x1x8xf32>
    %69 = tpu.concatenate %68, %67, %68 in 1 : vector<18x1x8xf32>, vector<18x16x8xf32>, vector<18x1x8xf32> -> vector<18x18x8xf32>
    %70 = vector.extract_strided_slice %69 {offsets = [0, 0, 0], sizes = [16, 16, 8], strides = [1, 1, 1]} : vector<18x18x8xf32> to vector<16x16x8xf32>
    %71 = vector.shape_cast %70 : vector<16x16x8xf32> to vector<256x8xf32>
    %72 = vector.extract_strided_slice %69 {offsets = [0, 1, 0], sizes = [16, 16, 8], strides = [1, 1, 1]} : vector<18x18x8xf32> to vector<16x16x8xf32>
    %73 = vector.shape_cast %72 : vector<16x16x8xf32> to vector<256x8xf32>
    %74 = vector.extract_strided_slice %69 {offsets = [0, 2, 0], sizes = [16, 16, 8], strides = [1, 1, 1]} : vector<18x18x8xf32> to vector<16x16x8xf32>
    %75 = vector.shape_cast %74 : vector<16x16x8xf32> to vector<256x8xf32>
    %76 = vector.extract_strided_slice %69 {offsets = [1, 0, 0], sizes = [16, 16, 8], strides = [1, 1, 1]} : vector<18x18x8xf32> to vector<16x16x8xf32>
    %77 = vector.shape_cast %76 : vector<16x16x8xf32> to vector<256x8xf32>
    %78 = vector.extract_strided_slice %69 {offsets = [1, 1, 0], sizes = [16, 16, 8], strides = [1, 1, 1]} : vector<18x18x8xf32> to vector<16x16x8xf32>
    %79 = vector.shape_cast %78 : vector<16x16x8xf32> to vector<256x8xf32>
    %80 = vector.extract_strided_slice %69 {offsets = [1, 2, 0], sizes = [16, 16, 8], strides = [1, 1, 1]} : vector<18x18x8xf32> to vector<16x16x8xf32>
    %81 = vector.shape_cast %80 : vector<16x16x8xf32> to vector<256x8xf32>
    %82 = vector.extract_strided_slice %69 {offsets = [2, 0, 0], sizes = [16, 16, 8], strides = [1, 1, 1]} : vector<18x18x8xf32> to vector<16x16x8xf32>
    %83 = vector.shape_cast %82 : vector<16x16x8xf32> to vector<256x8xf32>
    %84 = vector.extract_strided_slice %69 {offsets = [2, 1, 0], sizes = [16, 16, 8], strides = [1, 1, 1]} : vector<18x18x8xf32> to vector<16x16x8xf32>
    %85 = vector.shape_cast %84 : vector<16x16x8xf32> to vector<256x8xf32>
    %86 = vector.extract_strided_slice %69 {offsets = [2, 2, 0], sizes = [16, 16, 8], strides = [1, 1, 1]} : vector<18x18x8xf32> to vector<16x16x8xf32>
    %87 = vector.shape_cast %86 : vector<16x16x8xf32> to vector<256x8xf32>
    %88 = tpu.concatenate %71, %73, %75, %77, %79, %81, %83, %85, %87 in 1 : vector<256x8xf32>, vector<256x8xf32>, vector<256x8xf32>, vector<256x8xf32>, vector<256x8xf32>, vector<256x8xf32>, vector<256x8xf32>, vector<256x8xf32>, vector<256x8xf32> -> vector<256x72xf32>
    %cst_24 = arith.constant dense<0.000000e+00> : vector<256x8xf32>
    %89 = tpu.matmul %88, %64, %cst_24 {dimension_numbers = #tpu.dot_dimension_numbers<[1], [0], [0], [1], [0, 0, 1, 1], [], []>} : vector<256x72xf32>, vector<72x8xf32>, vector<256x8xf32> -> vector<256x8xf32>
    %90 = vector.broadcast %65 : vector<1x8xf32> to vector<256x8xf32>
    %91 = arith.addf %89, %90 : vector<256x8xf32>
    %cst_25 = arith.constant 0.000000e+00 : f32
    %92 = vector.broadcast %cst_25 : f32 to vector<256x8xf32>
    %93 = arith.maximumf %91, %92 : vector<256x8xf32>
    %94 = arith.addf %93, %31 : vector<256x8xf32>
    %95 = tpu.transpose %94, [1, 0] : vector<256x8xf32> -> vector<8x256xf32>
    %c0_26 = arith.constant 0 : index
    %c0_27 = arith.constant 0 : index
    %c0_28 = arith.constant 0 : index
    %96 = vector.load %arg8[%c0_26, %c0_27, %c0_28] : memref<1x8x256xf32, #tpu.memory_space<vmem>>, vector<1x8x256xf32>
    %97 = vector.shape_cast %96 : vector<1x8x256xf32> to vector<8x256xf32>
    %98 = vector.shape_cast %95 : vector<8x256xf32> to vector<1x8x256xf32>
    tpu.vector_store %arg8[%c0_26, %c0_27, %c0_28], %98 {strides = array<i32>} : memref<1x8x256xf32, #tpu.memory_space<vmem>>, vector<1x8x256xf32>,
    return
  }
  func.func @transform_0(%arg0: i32) -> (i32, i32, i32, i32) {
    %c0_i32 = arith.constant 0 : i32
    %c0_i32_0 = arith.constant 0 : i32
    %c0_i32_1 = arith.constant 0 : i32
    %c0_i32_2 = arith.constant 0 : i32
    return %arg0, %c0_i32, %c0_i32_0, %c0_i32_1 : i32, i32, i32, i32
  }
  func.func @transform_1(%arg0: i32) -> (i32, i32) {
    %c0_i32 = arith.constant 0 : i32
    %c0_i32_0 = arith.constant 0 : i32
    %c0_i32_1 = arith.constant 0 : i32
    return %c0_i32, %c0_i32_0 : i32, i32
  }
  func.func @transform_2(%arg0: i32) -> (i32, i32) {
    %c0_i32 = arith.constant 0 : i32
    %c0_i32_0 = arith.constant 0 : i32
    %c0_i32_1 = arith.constant 0 : i32
    return %c0_i32, %c0_i32_0 : i32, i32
  }
  func.func @transform_3(%arg0: i32) -> (i32, i32) {
    %c0_i32 = arith.constant 0 : i32
    %c0_i32_0 = arith.constant 0 : i32
    %c0_i32_1 = arith.constant 0 : i32
    return %c0_i32, %c0_i32_0 : i32, i32
  }
  func.func @transform_4(%arg0: i32) -> (i32, i32) {
    %c0_i32 = arith.constant 0 : i32
    %c0_i32_0 = arith.constant 0 : i32
    %c0_i32_1 = arith.constant 0 : i32
    return %c0_i32, %c0_i32_0 : i32, i32
  }
  func.func @transform_5(%arg0: i32) -> (i32, i32) {
    %c0_i32 = arith.constant 0 : i32
    %c0_i32_0 = arith.constant 0 : i32
    %c0_i32_1 = arith.constant 0 : i32
    return %c0_i32, %c0_i32_0 : i32, i32
  }
  func.func @transform_6(%arg0: i32) -> (i32, i32) {
    %c0_i32 = arith.constant 0 : i32
    %c0_i32_0 = arith.constant 0 : i32
    %c0_i32_1 = arith.constant 0 : i32
    return %c0_i32, %c0_i32_0 : i32, i32
  }
  func.func @transform_7(%arg0: i32) -> (i32, i32, i32) {
    %c0_i32 = arith.constant 0 : i32
    %c0_i32_0 = arith.constant 0 : i32
    %c0_i32_1 = arith.constant 0 : i32
    return %arg0, %c0_i32, %c0_i32_0 : i32, i32, i32
  }
}

</mosaic_0001>

<llo_original>
// kernel: tpu_custom_call.1
$region0: #{tpu_custom_call.1}
  #allocation0 [shape = 'u32[]', space=smem, size = 0x4, offset = 0x4, fixed_abs, tag = 'smem constant byte address 0x4 - core index']
  #allocation1 [shape = 'u32[144,128]{1,0:T(1,128)}', space=vmem, size = 0x12000, scoped, tag = 'internal scratch']
  %s0 = inlined_call_operand.vmem [shape: f32[2,16,16,4], index: 0, kind: input, shape index: {}]
  %s1 = inlined_call_operand.vmem [shape: f32[36,8], index: 1, kind: input, shape index: {}]
  %s2 = inlined_call_operand.vmem [shape: f32[1,8], index: 2, kind: input, shape index: {}]
  %s3 = inlined_call_operand.vmem [shape: f32[72,8], index: 3, kind: input, shape index: {}]
  %s4 = inlined_call_operand.vmem [shape: f32[1,8], index: 4, kind: input, shape index: {}]
  %s5 = inlined_call_operand.vmem [shape: f32[72,8], index: 5, kind: input, shape index: {}]
  %s6 = inlined_call_operand.vmem [shape: f32[1,8], index: 6, kind: input, shape index: {}]
  %s7 = inlined_call_operand.hbm [shape: f32[2,8,256], index: 7, kind: output, shape index: {}]
  %s8 = sld [smem:[#allocation0]]
  $region61: #{tpu_custom_call.1} parent=0
    _
  %s10 = ssub.s32 1, %s8
  %s11 = scalar_select 0, %s10, %s8
  $region1: #{tpu_custom_call.1} parent=0
    #allocation2 [shape = 'u8[16384]{0}', space=vmem, size = 0x4000, scoped, tag = 'output window, operand 0']
    #allocation3 [shape = 's32[2]{0}', space=sflag, size = 0x8, scoped, tag = 'scoped memory for tpu_custom_call.1']
    %12 = vsyncpa [#allocation3], 0
    %s13 = scalar_lea.sflag [#allocation3], 1
    %14 = vsyncpa %s13, 0
    loop: start=0, step=1, limit=4
    $region2: #{tpu_custom_call.1} parent=1 // loop_pre_header
      _
    $region3: #{tpu_custom_call.1} parent=1 // loop_header
      %s16 = sphi 0, %s20
      %p17 = scmp.ge.s32.totalorder %s16, 4
      %s26 = sphi 0, %s28
      %s29 = sphi 0, %s26
      %s30 = sphi 0, %s29
      %s46 = sphi 0, %s30
      %s50 = sphi 0, %s50
      %s52 = sphi 0, %s50
      %s53 = sphi 0, %s52
      %s67 = sphi 0, %s53
      %s71 = sphi 0, %s71
      %s73 = sphi 0, %s71
      %s74 = sphi 0, %s73
      %s88 = sphi 0, %s74
      %s92 = sphi 0, %s92
      %s94 = sphi 0, %s92
      %s95 = sphi 0, %s94
      %s109 = sphi 0, %s95
      %s113 = sphi 0, %s113
      %s115 = sphi 0, %s113
      %s116 = sphi 0, %s115
      %s130 = sphi 0, %s116
      %s134 = sphi 0, %s134
      %s136 = sphi 0, %s134
      %s137 = sphi 0, %s136
      %s151 = sphi 0, %s137
      %s155 = sphi 0, %s155
      %s157 = sphi 0, %s155
      %s158 = sphi 0, %s157
      %s172 = sphi 0, %s158
      %s178 = sphi 0, %s180
      %s181 = sphi 0, %s178
      %s182 = sphi 0, %s181
      %s198 = sphi 0, %s182
    $region4: #{tpu_custom_call.1} parent=1 // loop_header_branch
      %19 = sbr.rel (%p17) target = $region8
    $region5: #{tpu_custom_call.1} parent=1 // loop_body
      %s21 = ssub.s32 %s16, 1
      %s22 = ssub.s32 %s16, 2
      %s23 = sadd.s32 %s16, 1
      %s24 = ssub.s32 %s16, %s23
      %p25 = scmp.eq.s32.totalorder %s24, 0
      %s27 = sadd.s32 %s26, 1
      %s28 = scalar_select %p25, %s26, %s27
      %p31 = pneg %p25
      %p32 = scmp.eq.s32.totalorder %s16, 1
      %p33 = por %p31, %p32
      %p34 = scmp.ne.s32.totalorder %s26, %s29
      %p35 = scmp.eq.s32.totalorder %s16, 0
      %p36 = por %p34, %p35
      %p37 = scmp.ne.s32.totalorder %s26, %s29
      %p38 = scmp.eq.s32.totalorder %s21, 1
      %p39 = por %p37, %p38
      %p40 = scmp.ne.s32.totalorder %s29, %s30
      %p41 = scmp.eq.s32.totalorder %s21, 0
      %p42 = por %p40, %p41
      %p43 = scmp.ne.s32.totalorder %s29, %s30
      %p44 = scmp.eq.s32.totalorder %s22, 1
      %p45 = por %p43, %p44
      %p47 = scmp.ne.s32.totalorder %s30, %s46
      %p48 = scmp.eq.s32.totalorder %s22, 0
      %p49 = por %p47, %p48
      %s51 = sadd.s32 %s50, 1
      %p54 = scmp.eq.s32.totalorder %s16, 1
      %p55 = scmp.ne.s32.totalorder %s50, %s52
      %p56 = scmp.eq.s32.totalorder %s16, 0
      %p57 = por %p55, %p56
      %p58 = scmp.ne.s32.totalorder %s50, %s52
      %p59 = scmp.eq.s32.totalorder %s21, 1
      %p60 = por %p58, %p59
      %p61 = scmp.ne.s32.totalorder %s52, %s53
      %p62 = scmp.eq.s32.totalorder %s21, 0
      %p63 = por %p61, %p62
      %p64 = scmp.ne.s32.totalorder %s52, %s53
      %p65 = scmp.eq.s32.totalorder %s22, 1
      %p66 = por %p64, %p65
      %p68 = scmp.ne.s32.totalorder %s53, %s67
      %p69 = scmp.eq.s32.totalorder %s22, 0
      %p70 = por %p68, %p69
      %s72 = sadd.s32 %s71, 1
      %p75 = scmp.eq.s32.totalorder %s16, 1
      %p76 = scmp.ne.s32.totalorder %s71, %s73
      %p77 = scmp.eq.s32.totalorder %s16, 0
      %p78 = por %p76, %p77
      %p79 = scmp.ne.s32.totalorder %s71, %s73
      %p80 = scmp.eq.s32.totalorder %s21, 1
      %p81 = por %p79, %p80
      %p82 = scmp.ne.s32.totalorder %s73, %s74
      %p83 = scmp.eq.s32.totalorder %s21, 0
      %p84 = por %p82, %p83
      %p85 = scmp.ne.s32.totalorder %s73, %s74
      %p86 = scmp.eq.s32.totalorder %s22, 1
      %p87 = por %p85, %p86
      %p89 = scmp.ne.s32.totalorder %s74, %s88
      %p90 = scmp.eq.s32.totalorder %s22, 0
      %p91 = por %p89, %p90
      %s93 = sadd.s32 %s92, 1
      %p96 = scmp.eq.s32.totalorder %s16, 1
      %p97 = scmp.ne.s32.totalorder %s92, %s94
      %p98 = scmp.eq.s32.totalorder %s16, 0
      %p99 = por %p97, %p98
      %p100 = scmp.ne.s32.totalorder %s92, %s94
      %p101 = scmp.eq.s32.totalorder %s21, 1
      %p102 = por %p100, %p101
      %p103 = scmp.ne.s32.totalorder %s94, %s95
      %p104 = scmp.eq.s32.totalorder %s21, 0
      %p105 = por %p103, %p104
      %p106 = scmp.ne.s32.totalorder %s94, %s95
      %p107 = scmp.eq.s32.totalorder %s22, 1
      %p108 = por %p106, %p107
      %p110 = scmp.ne.s32.totalorder %s95, %s109
      %p111 = scmp.eq.s32.totalorder %s22, 0
      %p112 = por %p110, %p111
      %s114 = sadd.s32 %s113, 1
      %p117 = scmp.eq.s32.totalorder %s16, 1
      %p118 = scmp.ne.s32.totalorder %s113, %s115
      %p119 = scmp.eq.s32.totalorder %s16, 0
      %p120 = por %p118, %p119
      %p121 = scmp.ne.s32.totalorder %s113, %s115
      %p122 = scmp.eq.s32.totalorder %s21, 1
      %p123 = por %p121, %p122
      %p124 = scmp.ne.s32.totalorder %s115, %s116
      %p125 = scmp.eq.s32.totalorder %s21, 0
      %p126 = por %p124, %p125
      %p127 = scmp.ne.s32.totalorder %s115, %s116
      %p128 = scmp.eq.s32.totalorder %s22, 1
      %p129 = por %p127, %p128
      %p131 = scmp.ne.s32.totalorder %s116, %s130
      %p132 = scmp.eq.s32.totalorder %s22, 0
      %p133 = por %p131, %p132
      %s135 = sadd.s32 %s134, 1
      %p138 = scmp.eq.s32.totalorder %s16, 1
      %p139 = scmp.ne.s32.totalorder %s134, %s136
      %p140 = scmp.eq.s32.totalorder %s16, 0
      %p141 = por %p139, %p140
      %p142 = scmp.ne.s32.totalorder %s134, %s136
      %p143 = scmp.eq.s32.totalorder %s21, 1
      %p144 = por %p142, %p143
      %p145 = scmp.ne.s32.totalorder %s136, %s137
      %p146 = scmp.eq.s32.totalorder %s21, 0
      %p147 = por %p145, %p146
      %p148 = scmp.ne.s32.totalorder %s136, %s137
      %p149 = scmp.eq.s32.totalorder %s22, 1
      %p150 = por %p148, %p149
      %p152 = scmp.ne.s32.totalorder %s137, %s151
      %p153 = scmp.eq.s32.totalorder %s22, 0
      %p154 = por %p152, %p153
      %s156 = sadd.s32 %s155, 1
      %p159 = scmp.eq.s32.totalorder %s16, 1
      %p160 = scmp.ne.s32.totalorder %s155, %s157
      %p161 = scmp.eq.s32.totalorder %s16, 0
      %p162 = por %p160, %p161
      %p163 = scmp.ne.s32.totalorder %s155, %s157
      %p164 = scmp.eq.s32.totalorder %s21, 1
      %p165 = por %p163, %p164
      %p166 = scmp.ne.s32.totalorder %s157, %s158
      %p167 = scmp.eq.s32.totalorder %s21, 0
      %p168 = por %p166, %p167
      %p169 = scmp.ne.s32.totalorder %s157, %s158
      %p170 = scmp.eq.s32.totalorder %s22, 1
      %p171 = por %p169, %p170
      %p173 = scmp.ne.s32.totalorder %s158, %s172
      %p174 = scmp.eq.s32.totalorder %s22, 0
      %p175 = por %p173, %p174
      %s176 = ssub.s32 %s16, %s23
      %p177 = scmp.eq.s32.totalorder %s176, 0
      %s179 = sadd.s32 %s178, 1
      %s180 = scalar_select %p177, %s178, %s179
      %p183 = pneg %p177
      %p184 = scmp.eq.s32.totalorder %s16, 1
      %p185 = por %p183, %p184
      %p186 = scmp.ne.s32.totalorder %s178, %s181
      %p187 = scmp.eq.s32.totalorder %s16, 0
      %p188 = por %p186, %p187
      %p189 = scmp.ne.s32.totalorder %s178, %s181
      %p190 = scmp.eq.s32.totalorder %s21, 1
      %p191 = por %p189, %p190
      %p192 = scmp.ne.s32.totalorder %s181, %s182
      %p193 = scmp.eq.s32.totalorder %s21, 0
      %p194 = por %p192, %p193
      %p195 = scmp.ne.s32.totalorder %s181, %s182
      %p196 = scmp.eq.s32.totalorder %s22, 1
      %p197 = por %p195, %p196
      %p199 = scmp.ne.s32.totalorder %s182, %s198
      %p200 = scmp.eq.s32.totalorder %s22, 0
      %p201 = por %p199, %p200
      %p202 = scmp.le.s32.totalorder 1, %s16
      %p203 = scmp.lt.s32.totalorder %s16, 3
      %p204 = pnand %p202, %p203
      %p205 = pneg %p204
      // Predicated region
      $region9: #{tpu_custom_call.1} parent=5 // pred_check
        _
      $region10: #{tpu_custom_call.1} parent=5 // pred_check_branch
        %207 = sbr.rel (%p204) target = $region12
      $region11: #{tpu_custom_call.1} parent=5 // pred_region
        %s208 = ssub.s32 %s16, 1
        // Predicated region
        $region13: #{tpu_custom_call.1} parent=11 // pred_check
          %p209 = pneg %p63
        $region14: #{tpu_custom_call.1} parent=11 // pred_check_branch
          %211 = sbr.rel (%p209) target = $region16
        $region15: #{tpu_custom_call.1} parent=11 // pred_region
          _
        $region16: #{tpu_custom_call.1} parent=11 // pred_fallthru
          _
        // Predicated region
        $region17: #{tpu_custom_call.1} parent=11 // pred_check
          %p212 = pneg %p84
        $region18: #{tpu_custom_call.1} parent=11 // pred_check_branch
          %214 = sbr.rel (%p212) target = $region20
        $region19: #{tpu_custom_call.1} parent=11 // pred_region
          _
        $region20: #{tpu_custom_call.1} parent=11 // pred_fallthru
          _
        // Predicated region
        $region21: #{tpu_custom_call.1} parent=11 // pred_check
          %p215 = pneg %p105
        $region22: #{tpu_custom_call.1} parent=11 // pred_check_branch
          %217 = sbr.rel (%p215) target = $region24
        $region23: #{tpu_custom_call.1} parent=11 // pred_region
          _
        $region24: #{tpu_custom_call.1} parent=11 // pred_fallthru
          _
        // Predicated region
        $region25: #{tpu_custom_call.1} parent=11 // pred_check
          %p218 = pneg %p126
        $region26: #{tpu_custom_call.1} parent=11 // pred_check_branch
          %220 = sbr.rel (%p218) target = $region28
        $region27: #{tpu_custom_call.1} parent=11 // pred_region
          _
        $region28: #{tpu_custom_call.1} parent=11 // pred_fallthru
          _
        // Predicated region
        $region29: #{tpu_custom_call.1} parent=11 // pred_check
          %p221 = pneg %p147
        $region30: #{tpu_custom_call.1} parent=11 // pred_check_branch
          %223 = sbr.rel (%p221) target = $region32
        $region31: #{tpu_custom_call.1} parent=11 // pred_region
          _
        $region32: #{tpu_custom_call.1} parent=11 // pred_fallthru
          _
        // Predicated region
        $region33: #{tpu_custom_call.1} parent=11 // pred_check
          %p224 = pneg %p168
        $region34: #{tpu_custom_call.1} parent=11 // pred_check_branch
          %226 = sbr.rel (%p224) target = $region36
        $region35: #{tpu_custom_call.1} parent=11 // pred_region
          _
        $region36: #{tpu_custom_call.1} parent=11 // pred_fallthru
          _
      $region12: #{tpu_custom_call.1} parent=5 // pred_fallthru
        _
      %p227 = scmp.lt.s32.totalorder %s16, 2
      // Predicated region
      $region37: #{tpu_custom_call.1} parent=5 // pred_check
        %p228 = pneg %p227
      $region38: #{tpu_custom_call.1} parent=5 // pred_check_branch
        %230 = sbr.rel (%p228) target = $region40
      $region39: #{tpu_custom_call.1} parent=5 // pred_region
        // Predicated region
        $region41: #{tpu_custom_call.1} parent=39 // pred_check
          %p231 = pneg %p36
        $region42: #{tpu_custom_call.1} parent=39 // pred_check_branch
          %233 = sbr.rel (%p231) target = $region44
        $region43: #{tpu_custom_call.1} parent=39 // pred_region
          %p234 = scmp.lt.s32.totalorder %s16, 1
          %s235 = scalar_select %p234, %s16, 1
          %s236 = smul.addr %s235, 32
          %s237 = smul.addr %s236, 8
          %s238 = scalar_lea.vmem %s0, %s237
        $region44: #{tpu_custom_call.1} parent=39 // pred_fallthru
          _
      $region40: #{tpu_custom_call.1} parent=5 // pred_fallthru
        _
      %p239 = scmp.le.s32.totalorder 1, %s16
      %p240 = scmp.lt.s32.totalorder %s16, 3
      %p241 = pnand %p239, %p240
      %p242 = pneg %p241
      // Predicated region
      $region45: #{tpu_custom_call.1} parent=5 // pred_check
        _
      $region46: #{tpu_custom_call.1} parent=5 // pred_check_branch
        %244 = sbr.rel (%p241) target = $region48
      $region47: #{tpu_custom_call.1} parent=5 // pred_region
        %s245 = ssub.s32 %s16, 1
        %p246 = scmp.lt.s32.totalorder %s21, 1
        %s247 = scalar_select %p246, %s21, 1
        %s248 = smul.addr %s247, 32
        %s249 = smul.addr %s248, 8
        %s250 = scalar_lea.vmem %s0, %s249
        %p251 = pneg %p42
        %p252 = pneg %p39
        %p253 = pneg %p63
        %p254 = pneg %p60
        %p255 = pneg %p84
        %p256 = pneg %p81
        %p257 = pneg %p105
        %p258 = pneg %p102
        %p259 = pneg %p126
        %p260 = pneg %p123
        %p261 = pneg %p147
        %p262 = pneg %p144
        %p263 = pneg %p168
        %p264 = pneg %p165
        %p265 = pneg %p194
        %p266 = pneg %p191
        %s267 = sand.u32 %s181, 1
        %s268 = scalar_lea.sflag [#allocation3], %s267
        %s269 = sand.u32 %s181, 1
        %s270 = smul.addr %s269, 16
        %s271 = scalar_lea.vmem [#allocation2], %s270
        %p272 = scmp.lt.s32.totalorder %s21, 1
        %s273 = scalar_select %p272, %s21, 1
        %s274 = smul.addr %s273, 32
        %s275 = smul.addr %s274, 8
        %s276 = scalar_lea.vmem %s0, %s275
        %v277 = vld [vmem:[%s276] sm:$0xff]
        %v278 = vld [vmem:[%s276 + $0x8] sm:$0xff]
        %v279 = vld [vmem:[%s276 + $0x10] sm:$0xff]
        %v280 = vld [vmem:[%s276 + $0x18] sm:$0xff]
        %v281 = vld [vmem:[%s276 + $0x20] sm:$0xff]
        %v282 = vld [vmem:[%s276 + $0x28] sm:$0xff]
        %v283 = vld [vmem:[%s276 + $0x30] sm:$0xff]
        %v284 = vld [vmem:[%s276 + $0x38] sm:$0xff]
        %v285 = vld [vmem:[%s276 + $0x40] sm:$0xff]
        %v286 = vld [vmem:[%s276 + $0x48] sm:$0xff]
        %v287 = vld [vmem:[%s276 + $0x50] sm:$0xff]
        %v288 = vld [vmem:[%s276 + $0x58] sm:$0xff]
        %v289 = vld [vmem:[%s276 + $0x60] sm:$0xff]
        %v290 = vld [vmem:[%s276 + $0x68] sm:$0xff]
        %v291 = vld [vmem:[%s276 + $0x70] sm:$0xff]
        %v292 = vld [vmem:[%s276 + $0x78] sm:$0xff]
        %v293 = vld [vmem:[%s276 + $0x80] sm:$0xff]
        %v294 = vld [vmem:[%s276 + $0x88] sm:$0xff]
        %v295 = vld [vmem:[%s276 + $0x90] sm:$0xff]
        %v296 = vld [vmem:[%s276 + $0x98] sm:$0xff]
        %v297 = vld [vmem:[%s276 + $0xa0] sm:$0xff]
        %v298 = vld [vmem:[%s276 + $0xa8] sm:$0xff]
        %v299 = vld [vmem:[%s276 + $0xb0] sm:$0xff]
        %v300 = vld [vmem:[%s276 + $0xb8] sm:$0xff]
        %v301 = vld [vmem:[%s276 + $0xc0] sm:$0xff]
        %v302 = vld [vmem:[%s276 + $0xc8] sm:$0xff]
        %v303 = vld [vmem:[%s276 + $0xd0] sm:$0xff]
        %v304 = vld [vmem:[%s276 + $0xd8] sm:$0xff]
        %v305 = vld [vmem:[%s276 + $0xe0] sm:$0xff]
        %v306 = vld [vmem:[%s276 + $0xe8] sm:$0xff]
        %v307 = vld [vmem:[%s276 + $0xf0] sm:$0xff]
        %v308 = vld [vmem:[%s276 + $0xf8] sm:$0xff]
        %v309 = vld [vmem:[%s1] sm:$0xff]
        %v310 = vld [vmem:[%s1 + $0x8] sm:$0xff]
        %v311 = vld [vmem:[%s1 + $0x10] sm:$0xff]
        %v312 = vld [vmem:[%s1 + $0x18] sm:$0xff]
        %v313 = vld [vmem:[%s1 + $0x20] sm:$0xf]
        %v314 = vld [vmem:[%s2] sm:$0x1]
        %vm348 = vcmask 1040384
        %v349 = vrot.slane 0.0, 7
        %v350 = vsel %vm348, %v349, %v349
        %v351 = vrot.slane %v277, 7
        %v352 = vrot.slane %v278, 7
        %v353 = vsel %vm348, %v351, %v352
        %v354 = vrot.slane %v279, 7
        %v355 = vrot.slane %v280, 7
        %v356 = vsel %vm348, %v354, %v355
        %v357 = vrot.slane %v281, 7
        %v358 = vrot.slane %v282, 7
        %v359 = vsel %vm348, %v357, %v358
        %v360 = vrot.slane %v283, 7
        %v361 = vrot.slane %v284, 7
        %v362 = vsel %vm348, %v360, %v361
        %v363 = vrot.slane %v285, 7
        %v364 = vrot.slane %v286, 7
        %v365 = vsel %vm348, %v363, %v364
        %v366 = vrot.slane %v287, 7
        %v367 = vrot.slane %v288, 7
        %v368 = vsel %vm348, %v366, %v367
        %v369 = vrot.slane %v289, 7
        %v370 = vrot.slane %v290, 7
        %v371 = vsel %vm348, %v369, %v370
        %v372 = vrot.slane %v291, 7
        %v373 = vrot.slane %v292, 7
        %v374 = vsel %vm348, %v372, %v373
        %v375 = vrot.slane %v293, 7
        %v376 = vrot.slane %v294, 7
        %v377 = vsel %vm348, %v375, %v376
        %v378 = vrot.slane %v295, 7
        %v379 = vrot.slane %v296, 7
        %v380 = vsel %vm348, %v378, %v379
        %v381 = vrot.slane %v297, 7
        %v382 = vrot.slane %v298, 7
        %v383 = vsel %vm348, %v381, %v382
        %v384 = vrot.slane %v299, 7
        %v385 = vrot.slane %v300, 7
        %v386 = vsel %vm348, %v384, %v385
        %v387 = vrot.slane %v301, 7
        %v388 = vrot.slane %v302, 7
        %v389 = vsel %vm348, %v387, %v388
        %v390 = vrot.slane %v303, 7
        %v391 = vrot.slane %v304, 7
        %v392 = vsel %vm348, %v390, %v391
        %v393 = vrot.slane %v305, 7
        %v394 = vrot.slane %v306, 7
        %v395 = vsel %vm348, %v393, %v394
        %v396 = vrot.slane %v307, 7
        %v397 = vrot.slane %v308, 7
        %v398 = vsel %vm348, %v396, %v397
        %v448 = vsel %vm348, 0.0, %v349
        %v449 = vsel %vm348, 0.0, %v351
        %v450 = vsel %vm348, 0.0, %v354
        %v451 = vsel %vm348, 0.0, %v357
        %v452 = vsel %vm348, 0.0, %v360
        %v453 = vsel %vm348, 0.0, %v363
        %v454 = vsel %vm348, 0.0, %v366
        %v455 = vsel %vm348, 0.0, %v369
        %v456 = vsel %vm348, 0.0, %v372
        %v457 = vsel %vm348, 0.0, %v375
        %v458 = vsel %vm348, 0.0, %v378
        %v459 = vsel %vm348, 0.0, %v381
        %v460 = vsel %vm348, 0.0, %v384
        %v461 = vsel %vm348, 0.0, %v387
        %v462 = vsel %vm348, 0.0, %v390
        %v463 = vsel %vm348, 0.0, %v393
        %v464 = vsel %vm348, 0.0, %v396
        %v465 = vsel %vm348, %v349, 0.0
        %v466 = vsel %vm348, %v352, 0.0
        %v467 = vsel %vm348, %v355, 0.0
        %v468 = vsel %vm348, %v358, 0.0
        %v469 = vsel %vm348, %v361, 0.0
        %v470 = vsel %vm348, %v364, 0.0
        %v471 = vsel %vm348, %v367, 0.0
        %v472 = vsel %vm348, %v370, 0.0
        %v473 = vsel %vm348, %v373, 0.0
        %v474 = vsel %vm348, %v376, 0.0
        %v475 = vsel %vm348, %v379, 0.0
        %v476 = vsel %vm348, %v382, 0.0
        %v477 = vsel %vm348, %v385, 0.0
        %v478 = vsel %vm348, %v388, 0.0
        %v479 = vsel %vm348, %v391, 0.0
        %v480 = vsel %vm348, %v394, 0.0
        %v481 = vsel %vm348, %v397, 0.0
        %vm514 = vcmask 1046528
        %v515 = vrot.slane %v448, 1
        %v516 = vrot.slane %v350, 1
        %v517 = vsel %vm514, %v515, %v516
        %v518 = vrot.slane %v465, 1
        %v519 = vsel %vm514, %v516, %v518
        %v520 = vrot.slane %v449, 1
        %v521 = vrot.slane %v353, 1
        %v522 = vsel %vm514, %v520, %v521
        %v523 = vrot.slane %v466, 1
        %v524 = vsel %vm514, %v521, %v523
        %v525 = vrot.slane %v450, 1
        %v526 = vrot.slane %v356, 1
        %v527 = vsel %vm514, %v525, %v526
        %v528 = vrot.slane %v467, 1
        %v529 = vsel %vm514, %v526, %v528
        %v530 = vrot.slane %v451, 1
        %v531 = vrot.slane %v359, 1
        %v532 = vsel %vm514, %v530, %v531
        %v533 = vrot.slane %v468, 1
        %v534 = vsel %vm514, %v531, %v533
        %v535 = vrot.slane %v452, 1
        %v536 = vrot.slane %v362, 1
        %v537 = vsel %vm514, %v535, %v536
        %v538 = vrot.slane %v469, 1
        %v539 = vsel %vm514, %v536, %v538
        %v540 = vrot.slane %v453, 1
        %v541 = vrot.slane %v365, 1
        %v542 = vsel %vm514, %v540, %v541
        %v543 = vrot.slane %v470, 1
        %v544 = vsel %vm514, %v541, %v543
        %v545 = vrot.slane %v454, 1
        %v546 = vrot.slane %v368, 1
        %v547 = vsel %vm514, %v545, %v546
        %v548 = vrot.slane %v471, 1
        %v549 = vsel %vm514, %v546, %v548
        %v550 = vrot.slane %v455, 1
        %v551 = vrot.slane %v371, 1
        %v552 = vsel %vm514, %v550, %v551
        %v553 = vrot.slane %v472, 1
        %v554 = vsel %vm514, %v551, %v553
        %v555 = vrot.slane %v456, 1
        %v556 = vrot.slane %v374, 1
        %v557 = vsel %vm514, %v555, %v556
        %v558 = vrot.slane %v473, 1
        %v559 = vsel %vm514, %v556, %v558
        %v560 = vrot.slane %v457, 1
        %v561 = vrot.slane %v377, 1
        %v562 = vsel %vm514, %v560, %v561
        %v563 = vrot.slane %v474, 1
        %v564 = vsel %vm514, %v561, %v563
        %v565 = vrot.slane %v458, 1
        %v566 = vrot.slane %v380, 1
        %v567 = vsel %vm514, %v565, %v566
        %v568 = vrot.slane %v475, 1
        %v569 = vsel %vm514, %v566, %v568
        %v570 = vrot.slane %v459, 1
        %v571 = vrot.slane %v383, 1
        %v572 = vsel %vm514, %v570, %v571
        %v573 = vrot.slane %v476, 1
        %v574 = vsel %vm514, %v571, %v573
        %v575 = vrot.slane %v460, 1
        %v576 = vrot.slane %v386, 1
        %v577 = vsel %vm514, %v575, %v576
        %v578 = vrot.slane %v477, 1
        %v579 = vsel %vm514, %v576, %v578
        %v580 = vrot.slane %v461, 1
        %v581 = vrot.slane %v389, 1
        %v582 = vsel %vm514, %v580, %v581
        %v583 = vrot.slane %v478, 1
        %v584 = vsel %vm514, %v581, %v583
        %v585 = vrot.slane %v462, 1
        %v586 = vrot.slane %v392, 1
        %v587 = vsel %vm514, %v585, %v586
        %v588 = vrot.slane %v479, 1
        %v589 = vsel %vm514, %v586, %v588
        %v590 = vrot.slane %v463, 1
        %v591 = vrot.slane %v395, 1
        %v592 = vsel %vm514, %v590, %v591
        %v593 = vrot.slane %v480, 1
        %v594 = vsel %vm514, %v591, %v593
        %vm595 = vcmask 1045504
        %v596 = vrot.slane %v448, 2
        %v597 = vrot.slane %v350, 2
        %v598 = vsel %vm595, %v596, %v597
        %v599 = vrot.slane %v465, 2
        %v600 = vsel %vm595, %v597, %v599
        %v601 = vrot.slane %v449, 2
        %v602 = vrot.slane %v353, 2
        %v603 = vsel %vm595, %v601, %v602
        %v604 = vrot.slane %v466, 2
        %v605 = vsel %vm595, %v602, %v604
        %v606 = vrot.slane %v450, 2
        %v607 = vrot.slane %v356, 2
        %v608 = vsel %vm595, %v606, %v607
        %v609 = vrot.slane %v467, 2
        %v610 = vsel %vm595, %v607, %v609
        %v611 = vrot.slane %v451, 2
        %v612 = vrot.slane %v359, 2
        %v613 = vsel %vm595, %v611, %v612
        %v614 = vrot.slane %v468, 2
        %v615 = vsel %vm595, %v612, %v614
        %v616 = vrot.slane %v452, 2
        %v617 = vrot.slane %v362, 2
        %v618 = vsel %vm595, %v616, %v617
        %v619 = vrot.slane %v469, 2
        %v620 = vsel %vm595, %v617, %v619
        %v621 = vrot.slane %v453, 2
        %v622 = vrot.slane %v365, 2
        %v623 = vsel %vm595, %v621, %v622
        %v624 = vrot.slane %v470, 2
        %v625 = vsel %vm595, %v622, %v624
        %v626 = vrot.slane %v454, 2
        %v627 = vrot.slane %v368, 2
        %v628 = vsel %vm595, %v626, %v627
        %v629 = vrot.slane %v471, 2
        %v630 = vsel %vm595, %v627, %v629
        %v631 = vrot.slane %v455, 2
        %v632 = vrot.slane %v371, 2
        %v633 = vsel %vm595, %v631, %v632
        %v634 = vrot.slane %v472, 2
        %v635 = vsel %vm595, %v632, %v634
        %v636 = vrot.slane %v456, 2
        %v637 = vrot.slane %v374, 2
        %v638 = vsel %vm595, %v636, %v637
        %v639 = vrot.slane %v473, 2
        %v640 = vsel %vm595, %v637, %v639
        %v641 = vrot.slane %v457, 2
        %v642 = vrot.slane %v377, 2
        %v643 = vsel %vm595, %v641, %v642
        %v644 = vrot.slane %v474, 2
        %v645 = vsel %vm595, %v642, %v644
        %v646 = vrot.slane %v458, 2
        %v647 = vrot.slane %v380, 2
        %v648 = vsel %vm595, %v646, %v647
        %v649 = vrot.slane %v475, 2
        %v650 = vsel %vm595, %v647, %v649
        %v651 = vrot.slane %v459, 2
        %v652 = vrot.slane %v383, 2
        %v653 = vsel %vm595, %v651, %v652
        %v654 = vrot.slane %v476, 2
        %v655 = vsel %vm595, %v652, %v654
        %v656 = vrot.slane %v460, 2
        %v657 = vrot.slane %v386, 2
        %v658 = vsel %vm595, %v656, %v657
        %v659 = vrot.slane %v477, 2
        %v660 = vsel %vm595, %v657, %v659
        %v661 = vrot.slane %v461, 2
        %v662 = vrot.slane %v389, 2
        %v663 = vsel %vm595, %v661, %v662
        %v664 = vrot.slane %v478, 2
        %v665 = vsel %vm595, %v662, %v664
        %v666 = vrot.slane %v462, 2
        %v667 = vrot.slane %v392, 2
        %v668 = vsel %vm595, %v666, %v667
        %v669 = vrot.slane %v479, 2
        %v670 = vsel %vm595, %v667, %v669
        %v671 = vrot.slane %v463, 2
        %v672 = vrot.slane %v395, 2
        %v673 = vsel %vm595, %v671, %v672
        %v674 = vrot.slane %v480, 2
        %v675 = vsel %vm595, %v672, %v674
        %v678 = vrot.slane %v464, 1
        %v679 = vrot.slane %v398, 1
        %v680 = vsel %vm514, %v678, %v679
        %v681 = vrot.slane %v481, 1
        %v682 = vsel %vm514, %v679, %v681
        %v683 = vrot.slane %v464, 2
        %v684 = vrot.slane %v398, 2
        %v685 = vsel %vm595, %v683, %v684
        %v686 = vrot.slane %v481, 2
        %v687 = vsel %vm595, %v684, %v686
        %688 = vrot.lane.b32.xlu0 %v517, 4
        %v689 = vpop.permute.xlu0 %688
        %690 = vrot.lane.b32.xlu0 %v519, 4
        %v691 = vpop.permute.xlu0 %690
        %692 = vrot.lane.b32.xlu0 %v522, 4
        %v693 = vpop.permute.xlu0 %692
        %694 = vrot.lane.b32.xlu0 %v524, 4
        %v695 = vpop.permute.xlu0 %694
        %696 = vrot.lane.b32.xlu0 %v527, 4
        %v697 = vpop.permute.xlu0 %696
        %698 = vrot.lane.b32.xlu0 %v529, 4
        %v699 = vpop.permute.xlu0 %698
        %700 = vrot.lane.b32.xlu0 %v532, 4
        %v701 = vpop.permute.xlu0 %700
        %702 = vrot.lane.b32.xlu0 %v534, 4
        %v703 = vpop.permute.xlu0 %702
        %704 = vrot.lane.b32.xlu0 %v537, 4
        %v705 = vpop.permute.xlu0 %704
        %706 = vrot.lane.b32.xlu0 %v539, 4
        %v707 = vpop.permute.xlu0 %706
        %708 = vrot.lane.b32.xlu0 %v542, 4
        %v709 = vpop.permute.xlu0 %708
        %710 = vrot.lane.b32.xlu0 %v544, 4
        %v711 = vpop.permute.xlu0 %710
        %712 = vrot.lane.b32.xlu0 %v547, 4
        %v713 = vpop.permute.xlu0 %712
        %714 = vrot.lane.b32.xlu0 %v549, 4
        %v715 = vpop.permute.xlu0 %714
        %716 = vrot.lane.b32.xlu0 %v552, 4
        %v717 = vpop.permute.xlu0 %716
        %718 = vrot.lane.b32.xlu0 %v554, 4
        %v719 = vpop.permute.xlu0 %718
        %720 = vrot.lane.b32.xlu0 %v557, 4
        %v721 = vpop.permute.xlu0 %720
        %722 = vrot.lane.b32.xlu0 %v559, 4
        %v723 = vpop.permute.xlu0 %722
        %724 = vrot.lane.b32.xlu0 %v562, 4
        %v725 = vpop.permute.xlu0 %724
        %726 = vrot.lane.b32.xlu0 %v564, 4
        %v727 = vpop.permute.xlu0 %726
        %728 = vrot.lane.b32.xlu0 %v567, 4
        %v729 = vpop.permute.xlu0 %728
        %730 = vrot.lane.b32.xlu0 %v569, 4
        %v731 = vpop.permute.xlu0 %730
        %732 = vrot.lane.b32.xlu0 %v572, 4
        %v733 = vpop.permute.xlu0 %732
        %734 = vrot.lane.b32.xlu0 %v574, 4
        %v735 = vpop.permute.xlu0 %734
        %736 = vrot.lane.b32.xlu0 %v577, 4
        %v737 = vpop.permute.xlu0 %736
        %738 = vrot.lane.b32.xlu0 %v579, 4
        %v739 = vpop.permute.xlu0 %738
        %740 = vrot.lane.b32.xlu0 %v582, 4
        %v741 = vpop.permute.xlu0 %740
        %742 = vrot.lane.b32.xlu0 %v584, 4
        %v743 = vpop.permute.xlu0 %742
        %744 = vrot.lane.b32.xlu0 %v587, 4
        %v745 = vpop.permute.xlu0 %744
        %746 = vrot.lane.b32.xlu0 %v589, 4
        %v747 = vpop.permute.xlu0 %746
        %748 = vrot.lane.b32.xlu0 %v592, 4
        %v749 = vpop.permute.xlu0 %748
        %750 = vrot.lane.b32.xlu0 %v594, 4
        %v751 = vpop.permute.xlu0 %750
        %784 = vrot.lane.b32.xlu0 %v598, 8
        %v785 = vpop.permute.xlu0 %784
        %786 = vrot.lane.b32.xlu0 %v600, 8
        %v787 = vpop.permute.xlu0 %786
        %788 = vrot.lane.b32.xlu0 %v603, 8
        %v789 = vpop.permute.xlu0 %788
        %790 = vrot.lane.b32.xlu0 %v605, 8
        %v791 = vpop.permute.xlu0 %790
        %792 = vrot.lane.b32.xlu0 %v608, 8
        %v793 = vpop.permute.xlu0 %792
        %794 = vrot.lane.b32.xlu0 %v610, 8
        %v795 = vpop.permute.xlu0 %794
        %796 = vrot.lane.b32.xlu0 %v613, 8
        %v797 = vpop.permute.xlu0 %796
        %798 = vrot.lane.b32.xlu0 %v615, 8
        %v799 = vpop.permute.xlu0 %798
        %800 = vrot.lane.b32.xlu0 %v618, 8
        %v801 = vpop.permute.xlu0 %800
        %802 = vrot.lane.b32.xlu0 %v620, 8
        %v803 = vpop.permute.xlu0 %802
        %804 = vrot.lane.b32.xlu0 %v623, 8
        %v805 = vpop.permute.xlu0 %804
        %806 = vrot.lane.b32.xlu0 %v625, 8
        %v807 = vpop.permute.xlu0 %806
        %808 = vrot.lane.b32.xlu0 %v628, 8
        %v809 = vpop.permute.xlu0 %808
        %810 = vrot.lane.b32.xlu0 %v630, 8
        %v811 = vpop.permute.xlu0 %810
        %812 = vrot.lane.b32.xlu0 %v633, 8
        %v813 = vpop.permute.xlu0 %812
        %814 = vrot.lane.b32.xlu0 %v635, 8
        %v815 = vpop.permute.xlu0 %814
        %816 = vrot.lane.b32.xlu0 %v638, 8
        %v817 = vpop.permute.xlu0 %816
        %818 = vrot.lane.b32.xlu0 %v640, 8
        %v819 = vpop.permute.xlu0 %818
        %820 = vrot.lane.b32.xlu0 %v643, 8
        %v821 = vpop.permute.xlu0 %820
        %822 = vrot.lane.b32.xlu0 %v645, 8
        %v823 = vpop.permute.xlu0 %822
        %824 = vrot.lane.b32.xlu0 %v648, 8
        %v825 = vpop.permute.xlu0 %824
        %826 = vrot.lane.b32.xlu0 %v650, 8
        %v827 = vpop.permute.xlu0 %826
        %828 = vrot.lane.b32.xlu0 %v653, 8
        %v829 = vpop.permute.xlu0 %828
        %830 = vrot.lane.b32.xlu0 %v655, 8
        %v831 = vpop.permute.xlu0 %830
        %832 = vrot.lane.b32.xlu0 %v658, 8
        %v833 = vpop.permute.xlu0 %832
        %834 = vrot.lane.b32.xlu0 %v660, 8
        %v835 = vpop.permute.xlu0 %834
        %836 = vrot.lane.b32.xlu0 %v663, 8
        %v837 = vpop.permute.xlu0 %836
        %838 = vrot.lane.b32.xlu0 %v665, 8
        %v839 = vpop.permute.xlu0 %838
        %840 = vrot.lane.b32.xlu0 %v668, 8
        %v841 = vpop.permute.xlu0 %840
        %842 = vrot.lane.b32.xlu0 %v670, 8
        %v843 = vpop.permute.xlu0 %842
        %844 = vrot.lane.b32.xlu0 %v673, 8
        %v845 = vpop.permute.xlu0 %844
        %846 = vrot.lane.b32.xlu0 %v675, 8
        %v847 = vpop.permute.xlu0 %846
        %880 = vrot.lane.b32.xlu0 %v449, 12
        %v881 = vpop.permute.xlu0 %880
        %882 = vrot.lane.b32.xlu0 %v353, 12
        %v883 = vpop.permute.xlu0 %882
        %884 = vrot.lane.b32.xlu0 %v450, 12
        %v885 = vpop.permute.xlu0 %884
        %886 = vrot.lane.b32.xlu0 %v356, 12
        %v887 = vpop.permute.xlu0 %886
        %888 = vrot.lane.b32.xlu0 %v451, 12
        %v889 = vpop.permute.xlu0 %888
        %890 = vrot.lane.b32.xlu0 %v359, 12
        %v891 = vpop.permute.xlu0 %890
        %892 = vrot.lane.b32.xlu0 %v452, 12
        %v893 = vpop.permute.xlu0 %892
        %894 = vrot.lane.b32.xlu0 %v362, 12
        %v895 = vpop.permute.xlu0 %894
        %896 = vrot.lane.b32.xlu0 %v453, 12
        %v897 = vpop.permute.xlu0 %896
        %898 = vrot.lane.b32.xlu0 %v365, 12
        %v899 = vpop.permute.xlu0 %898
        %900 = vrot.lane.b32.xlu0 %v454, 12
        %v901 = vpop.permute.xlu0 %900
        %902 = vrot.lane.b32.xlu0 %v368, 12
        %v903 = vpop.permute.xlu0 %902
        %904 = vrot.lane.b32.xlu0 %v455, 12
        %v905 = vpop.permute.xlu0 %904
        %906 = vrot.lane.b32.xlu0 %v371, 12
        %v907 = vpop.permute.xlu0 %906
        %908 = vrot.lane.b32.xlu0 %v456, 12
        %v909 = vpop.permute.xlu0 %908
        %910 = vrot.lane.b32.xlu0 %v374, 12
        %v911 = vpop.permute.xlu0 %910
        %912 = vrot.lane.b32.xlu0 %v457, 12
        %v913 = vpop.permute.xlu0 %912
        %914 = vrot.lane.b32.xlu0 %v377, 12
        %v915 = vpop.permute.xlu0 %914
        %916 = vrot.lane.b32.xlu0 %v458, 12
        %v917 = vpop.permute.xlu0 %916
        %918 = vrot.lane.b32.xlu0 %v380, 12
        %v919 = vpop.permute.xlu0 %918
        %920 = vrot.lane.b32.xlu0 %v459, 12
        %v921 = vpop.permute.xlu0 %920
        %922 = vrot.lane.b32.xlu0 %v383, 12
        %v923 = vpop.permute.xlu0 %922
        %924 = vrot.lane.b32.xlu0 %v460, 12
        %v925 = vpop.permute.xlu0 %924
        %926 = vrot.lane.b32.xlu0 %v386, 12
        %v927 = vpop.permute.xlu0 %926
        %928 = vrot.lane.b32.xlu0 %v461, 12
        %v929 = vpop.permute.xlu0 %928
        %930 = vrot.lane.b32.xlu0 %v389, 12
        %v931 = vpop.permute.xlu0 %930
        %932 = vrot.lane.b32.xlu0 %v462, 12
        %v933 = vpop.permute.xlu0 %932
        %934 = vrot.lane.b32.xlu0 %v392, 12
        %v935 = vpop.permute.xlu0 %934
        %936 = vrot.lane.b32.xlu0 %v463, 12
        %v937 = vpop.permute.xlu0 %936
        %938 = vrot.lane.b32.xlu0 %v395, 12
        %v939 = vpop.permute.xlu0 %938
        %940 = vrot.lane.b32.xlu0 %v464, 12
        %v941 = vpop.permute.xlu0 %940
        %942 = vrot.lane.b32.xlu0 %v398, 12
        %v943 = vpop.permute.xlu0 %942
        %976 = vrot.lane.b32.xlu0 %v522, 16
        %v977 = vpop.permute.xlu0 %976
        %978 = vrot.lane.b32.xlu0 %v524, 16
        %v979 = vpop.permute.xlu0 %978
        %980 = vrot.lane.b32.xlu0 %v527, 16
        %v981 = vpop.permute.xlu0 %980
        %982 = vrot.lane.b32.xlu0 %v529, 16
        %v983 = vpop.permute.xlu0 %982
        %984 = vrot.lane.b32.xlu0 %v532, 16
        %v985 = vpop.permute.xlu0 %984
        %986 = vrot.lane.b32.xlu0 %v534, 16
        %v987 = vpop.permute.xlu0 %986
        %988 = vrot.lane.b32.xlu0 %v537, 16
        %v989 = vpop.permute.xlu0 %988
        %990 = vrot.lane.b32.xlu0 %v539, 16
        %v991 = vpop.permute.xlu0 %990
        %992 = vrot.lane.b32.xlu0 %v542, 16
        %v993 = vpop.permute.xlu0 %992
        %994 = vrot.lane.b32.xlu0 %v544, 16
        %v995 = vpop.permute.xlu0 %994
        %996 = vrot.lane.b32.xlu0 %v547, 16
        %v997 = vpop.permute.xlu0 %996
        %998 = vrot.lane.b32.xlu0 %v549, 16
        %v999 = vpop.permute.xlu0 %998
        %1000 = vrot.lane.b32.xlu0 %v552, 16
        %v1001 = vpop.permute.xlu0 %1000
        %1002 = vrot.lane.b32.xlu0 %v554, 16
        %v1003 = vpop.permute.xlu0 %1002
        %1004 = vrot.lane.b32.xlu0 %v557, 16
        %v1005 = vpop.permute.xlu0 %1004
        %1006 = vrot.lane.b32.xlu0 %v559, 16
        %v1007 = vpop.permute.xlu0 %1006
        %1008 = vrot.lane.b32.xlu0 %v562, 16
        %v1009 = vpop.permute.xlu0 %1008
        %1010 = vrot.lane.b32.xlu0 %v564, 16
        %v1011 = vpop.permute.xlu0 %1010
        %1012 = vrot.lane.b32.xlu0 %v567, 16
        %v1013 = vpop.permute.xlu0 %1012
        %1014 = vrot.lane.b32.xlu0 %v569, 16
        %v1015 = vpop.permute.xlu0 %1014
        %1016 = vrot.lane.b32.xlu0 %v572, 16
        %v1017 = vpop.permute.xlu0 %1016
        %1018 = vrot.lane.b32.xlu0 %v574, 16
        %v1019 = vpop.permute.xlu0 %1018
        %1020 = vrot.lane.b32.xlu0 %v577, 16
        %v1021 = vpop.permute.xlu0 %1020
        %1022 = vrot.lane.b32.xlu0 %v579, 16
        %v1023 = vpop.permute.xlu0 %1022
        %1024 = vrot.lane.b32.xlu0 %v582, 16
        %v1025 = vpop.permute.xlu0 %1024
        %1026 = vrot.lane.b32.xlu0 %v584, 16
        %v1027 = vpop.permute.xlu0 %1026
        %1028 = vrot.lane.b32.xlu0 %v587, 16
        %v1029 = vpop.permute.xlu0 %1028
        %1030 = vrot.lane.b32.xlu0 %v589, 16
        %v1031 = vpop.permute.xlu0 %1030
        %1032 = vrot.lane.b32.xlu0 %v592, 16
        %v1033 = vpop.permute.xlu0 %1032
        %1034 = vrot.lane.b32.xlu0 %v594, 16
        %v1035 = vpop.permute.xlu0 %1034
        %1036 = vrot.lane.b32.xlu0 %v680, 16
        %v1037 = vpop.permute.xlu0 %1036
        %1038 = vrot.lane.b32.xlu0 %v682, 16
        %v1039 = vpop.permute.xlu0 %1038
        %1072 = vrot.lane.b32.xlu0 %v603, 20
        %v1073 = vpop.permute.xlu0 %1072
        %1074 = vrot.lane.b32.xlu0 %v605, 20
        %v1075 = vpop.permute.xlu0 %1074
        %1076 = vrot.lane.b32.xlu0 %v608, 20
        %v1077 = vpop.permute.xlu0 %1076
        %1078 = vrot.lane.b32.xlu0 %v610, 20
        %v1079 = vpop.permute.xlu0 %1078
        %1080 = vrot.lane.b32.xlu0 %v613, 20
        %v1081 = vpop.permute.xlu0 %1080
        %1082 = vrot.lane.b32.xlu0 %v615, 20
        %v1083 = vpop.permute.xlu0 %1082
        %1084 = vrot.lane.b32.xlu0 %v618, 20
        %v1085 = vpop.permute.xlu0 %1084
        %1086 = vrot.lane.b32.xlu0 %v620, 20
        %v1087 = vpop.permute.xlu0 %1086
        %1088 = vrot.lane.b32.xlu0 %v623, 20
        %v1089 = vpop.permute.xlu0 %1088
        %1090 = vrot.lane.b32.xlu0 %v625, 20
        %v1091 = vpop.permute.xlu0 %1090
        %1092 = vrot.lane.b32.xlu0 %v628, 20
        %v1093 = vpop.permute.xlu0 %1092
        %1094 = vrot.lane.b32.xlu0 %v630, 20
        %v1095 = vpop.permute.xlu0 %1094
        %1096 = vrot.lane.b32.xlu0 %v633, 20
        %v1097 = vpop.permute.xlu0 %1096
        %1098 = vrot.lane.b32.xlu0 %v635, 20
        %v1099 = vpop.permute.xlu0 %1098
        %1100 = vrot.lane.b32.xlu0 %v638, 20
        %v1101 = vpop.permute.xlu0 %1100
        %1102 = vrot.lane.b32.xlu0 %v640, 20
        %v1103 = vpop.permute.xlu0 %1102
        %1104 = vrot.lane.b32.xlu0 %v643, 20
        %v1105 = vpop.permute.xlu0 %1104
        %1106 = vrot.lane.b32.xlu0 %v645, 20
        %v1107 = vpop.permute.xlu0 %1106
        %1108 = vrot.lane.b32.xlu0 %v648, 20
        %v1109 = vpop.permute.xlu0 %1108
        %1110 = vrot.lane.b32.xlu0 %v650, 20
        %v1111 = vpop.permute.xlu0 %1110
        %1112 = vrot.lane.b32.xlu0 %v653, 20
        %v1113 = vpop.permute.xlu0 %1112
        %1114 = vrot.lane.b32.xlu0 %v655, 20
        %v1115 = vpop.permute.xlu0 %1114
        %1116 = vrot.lane.b32.xlu0 %v658, 20
        %v1117 = vpop.permute.xlu0 %1116
        %1118 = vrot.lane.b32.xlu0 %v660, 20
        %v1119 = vpop.permute.xlu0 %1118
        %1120 = vrot.lane.b32.xlu0 %v663, 20
        %v1121 = vpop.permute.xlu0 %1120
        %1122 = vrot.lane.b32.xlu0 %v665, 20
        %v1123 = vpop.permute.xlu0 %1122
        %1124 = vrot.lane.b32.xlu0 %v668, 20
        %v1125 = vpop.permute.xlu0 %1124
        %1126 = vrot.lane.b32.xlu0 %v670, 20
        %v1127 = vpop.permute.xlu0 %1126
        %1128 = vrot.lane.b32.xlu0 %v673, 20
        %v1129 = vpop.permute.xlu0 %1128
        %1130 = vrot.lane.b32.xlu0 %v675, 20
        %v1131 = vpop.permute.xlu0 %1130
        %1132 = vrot.lane.b32.xlu0 %v685, 20
        %v1133 = vpop.permute.xlu0 %1132
        %1134 = vrot.lane.b32.xlu0 %v687, 20
        %v1135 = vpop.permute.xlu0 %1134
        %1168 = vrot.lane.b32.xlu0 %v450, 24
        %v1169 = vpop.permute.xlu0 %1168
        %1170 = vrot.lane.b32.xlu0 %v356, 24
        %v1171 = vpop.permute.xlu0 %1170
        %1172 = vrot.lane.b32.xlu0 %v451, 24
        %v1173 = vpop.permute.xlu0 %1172
        %1174 = vrot.lane.b32.xlu0 %v359, 24
        %v1175 = vpop.permute.xlu0 %1174
        %1176 = vrot.lane.b32.xlu0 %v452, 24
        %v1177 = vpop.permute.xlu0 %1176
        %1178 = vrot.lane.b32.xlu0 %v362, 24
        %v1179 = vpop.permute.xlu0 %1178
        %1180 = vrot.lane.b32.xlu0 %v453, 24
        %v1181 = vpop.permute.xlu0 %1180
        %1182 = vrot.lane.b32.xlu0 %v365, 24
        %v1183 = vpop.permute.xlu0 %1182
        %1184 = vrot.lane.b32.xlu0 %v454, 24
        %v1185 = vpop.permute.xlu0 %1184
        %1186 = vrot.lane.b32.xlu0 %v368, 24
        %v1187 = vpop.permute.xlu0 %1186
        %1188 = vrot.lane.b32.xlu0 %v455, 24
        %v1189 = vpop.permute.xlu0 %1188
        %1190 = vrot.lane.b32.xlu0 %v371, 24
        %v1191 = vpop.permute.xlu0 %1190
        %1192 = vrot.lane.b32.xlu0 %v456, 24
        %v1193 = vpop.permute.xlu0 %1192
        %1194 = vrot.lane.b32.xlu0 %v374, 24
        %v1195 = vpop.permute.xlu0 %1194
        %1196 = vrot.lane.b32.xlu0 %v457, 24
        %v1197 = vpop.permute.xlu0 %1196
        %1198 = vrot.lane.b32.xlu0 %v377, 24
        %v1199 = vpop.permute.xlu0 %1198
        %1200 = vrot.lane.b32.xlu0 %v458, 24
        %v1201 = vpop.permute.xlu0 %1200
        %1202 = vrot.lane.b32.xlu0 %v380, 24
        %v1203 = vpop.permute.xlu0 %1202
        %1204 = vrot.lane.b32.xlu0 %v459, 24
        %v1205 = vpop.permute.xlu0 %1204
        %1206 = vrot.lane.b32.xlu0 %v383, 24
        %v1207 = vpop.permute.xlu0 %1206
        %1208 = vrot.lane.b32.xlu0 %v460, 24
        %v1209 = vpop.permute.xlu0 %1208
        %1210 = vrot.lane.b32.xlu0 %v386, 24
        %v1211 = vpop.permute.xlu0 %1210
        %1212 = vrot.lane.b32.xlu0 %v461, 24
        %v1213 = vpop.permute.xlu0 %1212
        %1214 = vrot.lane.b32.xlu0 %v389, 24
        %v1215 = vpop.permute.xlu0 %1214
        %1216 = vrot.lane.b32.xlu0 %v462, 24
        %v1217 = vpop.permute.xlu0 %1216
        %1218 = vrot.lane.b32.xlu0 %v392, 24
        %v1219 = vpop.permute.xlu0 %1218
        %1220 = vrot.lane.b32.xlu0 %v463, 24
        %v1221 = vpop.permute.xlu0 %1220
        %1222 = vrot.lane.b32.xlu0 %v395, 24
        %v1223 = vpop.permute.xlu0 %1222
        %1224 = vrot.lane.b32.xlu0 %v464, 24
        %v1225 = vpop.permute.xlu0 %1224
        %1226 = vrot.lane.b32.xlu0 %v398, 24
        %v1227 = vpop.permute.xlu0 %1226
        %1228 = vrot.lane.b32.xlu0 %v448, 24
        %v1229 = vpop.permute.xlu0 %1228
        %1230 = vrot.lane.b32.xlu0 %v350, 24
        %v1231 = vpop.permute.xlu0 %1230
        %1264 = vrot.lane.b32.xlu0 %v527, 28
        %v1265 = vpop.permute.xlu0 %1264
        %1266 = vrot.lane.b32.xlu0 %v529, 28
        %v1267 = vpop.permute.xlu0 %1266
        %1268 = vrot.lane.b32.xlu0 %v532, 28
        %v1269 = vpop.permute.xlu0 %1268
        %1270 = vrot.lane.b32.xlu0 %v534, 28
        %v1271 = vpop.permute.xlu0 %1270
        %1272 = vrot.lane.b32.xlu0 %v537, 28
        %v1273 = vpop.permute.xlu0 %1272
        %1274 = vrot.lane.b32.xlu0 %v539, 28
        %v1275 = vpop.permute.xlu0 %1274
        %1276 = vrot.lane.b32.xlu0 %v542, 28
        %v1277 = vpop.permute.xlu0 %1276
        %1278 = vrot.lane.b32.xlu0 %v544, 28
        %v1279 = vpop.permute.xlu0 %1278
        %1280 = vrot.lane.b32.xlu0 %v547, 28
        %v1281 = vpop.permute.xlu0 %1280
        %1282 = vrot.lane.b32.xlu0 %v549, 28
        %v1283 = vpop.permute.xlu0 %1282
        %1284 = vrot.lane.b32.xlu0 %v552, 28
        %v1285 = vpop.permute.xlu0 %1284
        %1286 = vrot.lane.b32.xlu0 %v554, 28
        %v1287 = vpop.permute.xlu0 %1286
        %1288 = vrot.lane.b32.xlu0 %v557, 28
        %v1289 = vpop.permute.xlu0 %1288
        %1290 = vrot.lane.b32.xlu0 %v559, 28
        %v1291 = vpop.permute.xlu0 %1290
        %1292 = vrot.lane.b32.xlu0 %v562, 28
        %v1293 = vpop.permute.xlu0 %1292
        %1294 = vrot.lane.b32.xlu0 %v564, 28
        %v1295 = vpop.permute.xlu0 %1294
        %1296 = vrot.lane.b32.xlu0 %v567, 28
        %v1297 = vpop.permute.xlu0 %1296
        %1298 = vrot.lane.b32.xlu0 %v569, 28
        %v1299 = vpop.permute.xlu0 %1298
        %1300 = vrot.lane.b32.xlu0 %v572, 28
        %v1301 = vpop.permute.xlu0 %1300
        %1302 = vrot.lane.b32.xlu0 %v574, 28
        %v1303 = vpop.permute.xlu0 %1302
        %1304 = vrot.lane.b32.xlu0 %v577, 28
        %v1305 = vpop.permute.xlu0 %1304
        %1306 = vrot.lane.b32.xlu0 %v579, 28
        %v1307 = vpop.permute.xlu0 %1306
        %1308 = vrot.lane.b32.xlu0 %v582, 28
        %v1309 = vpop.permute.xlu0 %1308
        %1310 = vrot.lane.b32.xlu0 %v584, 28
        %v1311 = vpop.permute.xlu0 %1310
        %1312 = vrot.lane.b32.xlu0 %v587, 28
        %v1313 = vpop.permute.xlu0 %1312
        %1314 = vrot.lane.b32.xlu0 %v589, 28
        %v1315 = vpop.permute.xlu0 %1314
        %1316 = vrot.lane.b32.xlu0 %v592, 28
        %v1317 = vpop.permute.xlu0 %1316
        %1318 = vrot.lane.b32.xlu0 %v594, 28
        %v1319 = vpop.permute.xlu0 %1318
        %1320 = vrot.lane.b32.xlu0 %v680, 28
        %v1321 = vpop.permute.xlu0 %1320
        %1322 = vrot.lane.b32.xlu0 %v682, 28
        %v1323 = vpop.permute.xlu0 %1322
        %1324 = vrot.lane.b32.xlu0 %v517, 28
        %v1325 = vpop.permute.xlu0 %1324
        %1326 = vrot.lane.b32.xlu0 %v519, 28
        %v1327 = vpop.permute.xlu0 %1326
        %1360 = vrot.lane.b32.xlu0 %v608, 32
        %v1361 = vpop.permute.xlu0 %1360
        %1362 = vrot.lane.b32.xlu0 %v610, 32
        %v1363 = vpop.permute.xlu0 %1362
        %1364 = vrot.lane.b32.xlu0 %v613, 32
        %v1365 = vpop.permute.xlu0 %1364
        %1366 = vrot.lane.b32.xlu0 %v615, 32
        %v1367 = vpop.permute.xlu0 %1366
        %1368 = vrot.lane.b32.xlu0 %v618, 32
        %v1369 = vpop.permute.xlu0 %1368
        %1370 = vrot.lane.b32.xlu0 %v620, 32
        %v1371 = vpop.permute.xlu0 %1370
        %1372 = vrot.lane.b32.xlu0 %v623, 32
        %v1373 = vpop.permute.xlu0 %1372
        %1374 = vrot.lane.b32.xlu0 %v625, 32
        %v1375 = vpop.permute.xlu0 %1374
        %1376 = vrot.lane.b32.xlu0 %v628, 32
        %v1377 = vpop.permute.xlu0 %1376
        %1378 = vrot.lane.b32.xlu0 %v630, 32
        %v1379 = vpop.permute.xlu0 %1378
        %1380 = vrot.lane.b32.xlu0 %v633, 32
        %v1381 = vpop.permute.xlu0 %1380
        %1382 = vrot.lane.b32.xlu0 %v635, 32
        %v1383 = vpop.permute.xlu0 %1382
        %1384 = vrot.lane.b32.xlu0 %v638, 32
        %v1385 = vpop.permute.xlu0 %1384
        %1386 = vrot.lane.b32.xlu0 %v640, 32
        %v1387 = vpop.permute.xlu0 %1386
        %1388 = vrot.lane.b32.xlu0 %v643, 32
        %v1389 = vpop.permute.xlu0 %1388
        %1390 = vrot.lane.b32.xlu0 %v645, 32
        %v1391 = vpop.permute.xlu0 %1390
        %1392 = vrot.lane.b32.xlu0 %v648, 32
        %v1393 = vpop.permute.xlu0 %1392
        %1394 = vrot.lane.b32.xlu0 %v650, 32
        %v1395 = vpop.permute.xlu0 %1394
        %1396 = vrot.lane.b32.xlu0 %v653, 32
        %v1397 = vpop.permute.xlu0 %1396
        %1398 = vrot.lane.b32.xlu0 %v655, 32
        %v1399 = vpop.permute.xlu0 %1398
        %1400 = vrot.lane.b32.xlu0 %v658, 32
        %v1401 = vpop.permute.xlu0 %1400
        %1402 = vrot.lane.b32.xlu0 %v660, 32
        %v1403 = vpop.permute.xlu0 %1402
        %1404 = vrot.lane.b32.xlu0 %v663, 32
        %v1405 = vpop.permute.xlu0 %1404
        %1406 = vrot.lane.b32.xlu0 %v665, 32
        %v1407 = vpop.permute.xlu0 %1406
        %1408 = vrot.lane.b32.xlu0 %v668, 32
        %v1409 = vpop.permute.xlu0 %1408
        %1410 = vrot.lane.b32.xlu0 %v670, 32
        %v1411 = vpop.permute.xlu0 %1410
        %1412 = vrot.lane.b32.xlu0 %v673, 32
        %v1413 = vpop.permute.xlu0 %1412
        %1414 = vrot.lane.b32.xlu0 %v675, 32
        %v1415 = vpop.permute.xlu0 %1414
        %1416 = vrot.lane.b32.xlu0 %v685, 32
        %v1417 = vpop.permute.xlu0 %1416
        %1418 = vrot.lane.b32.xlu0 %v687, 32
        %v1419 = vpop.permute.xlu0 %1418
        %1420 = vrot.lane.b32.xlu0 %v598, 32
        %v1421 = vpop.permute.xlu0 %1420
        %1422 = vrot.lane.b32.xlu0 %v600, 32
        %v1423 = vpop.permute.xlu0 %1422
        %vm1456 = vcmask 31744
        %v1457 = vsel %vm1456, %v448, %v689
        %v1458 = vsel %vm1456, %v350, %v691
        %v1459 = vsel %vm1456, %v449, %v693
        %v1460 = vsel %vm1456, %v353, %v695
        %v1461 = vsel %vm1456, %v450, %v697
        %v1462 = vsel %vm1456, %v356, %v699
        %v1463 = vsel %vm1456, %v451, %v701
        %v1464 = vsel %vm1456, %v359, %v703
        %v1465 = vsel %vm1456, %v452, %v705
        %v1466 = vsel %vm1456, %v362, %v707
        %v1467 = vsel %vm1456, %v453, %v709
        %v1468 = vsel %vm1456, %v365, %v711
        %v1469 = vsel %vm1456, %v454, %v713
        %v1470 = vsel %vm1456, %v368, %v715
        %v1471 = vsel %vm1456, %v455, %v717
        %v1472 = vsel %vm1456, %v371, %v719
        %v1473 = vsel %vm1456, %v456, %v721
        %v1474 = vsel %vm1456, %v374, %v723
        %v1475 = vsel %vm1456, %v457, %v725
        %v1476 = vsel %vm1456, %v377, %v727
        %v1477 = vsel %vm1456, %v458, %v729
        %v1478 = vsel %vm1456, %v380, %v731
        %v1479 = vsel %vm1456, %v459, %v733
        %v1480 = vsel %vm1456, %v383, %v735
        %v1481 = vsel %vm1456, %v460, %v737
        %v1482 = vsel %vm1456, %v386, %v739
        %v1483 = vsel %vm1456, %v461, %v741
        %v1484 = vsel %vm1456, %v389, %v743
        %v1485 = vsel %vm1456, %v462, %v745
        %v1486 = vsel %vm1456, %v392, %v747
        %v1487 = vsel %vm1456, %v463, %v749
        %v1488 = vsel %vm1456, %v395, %v751
        %vm1489 = vcmask 64512
        %v1490 = vsel %vm1489, %v1457, %v785
        %v1491 = vsel %vm1489, %v1458, %v787
        %v1492 = vsel %vm1489, %v1459, %v789
        %v1493 = vsel %vm1489, %v1460, %v791
        %v1494 = vsel %vm1489, %v1461, %v793
        %v1495 = vsel %vm1489, %v1462, %v795
        %v1496 = vsel %vm1489, %v1463, %v797
        %v1497 = vsel %vm1489, %v1464, %v799
        %v1498 = vsel %vm1489, %v1465, %v801
        %v1499 = vsel %vm1489, %v1466, %v803
        %v1500 = vsel %vm1489, %v1467, %v805
        %v1501 = vsel %vm1489, %v1468, %v807
        %v1502 = vsel %vm1489, %v1469, %v809
        %v1503 = vsel %vm1489, %v1470, %v811
        %v1504 = vsel %vm1489, %v1471, %v813
        %v1505 = vsel %vm1489, %v1472, %v815
        %v1506 = vsel %vm1489, %v1473, %v817
        %v1507 = vsel %vm1489, %v1474, %v819
        %v1508 = vsel %vm1489, %v1475, %v821
        %v1509 = vsel %vm1489, %v1476, %v823
        %v1510 = vsel %vm1489, %v1477, %v825
        %v1511 = vsel %vm1489, %v1478, %v827
        %v1512 = vsel %vm1489, %v1479, %v829
        %v1513 = vsel %vm1489, %v1480, %v831
        %v1514 = vsel %vm1489, %v1481, %v833
        %v1515 = vsel %vm1489, %v1482, %v835
        %v1516 = vsel %vm1489, %v1483, %v837
        %v1517 = vsel %vm1489, %v1484, %v839
        %v1518 = vsel %vm1489, %v1485, %v841
        %v1519 = vsel %vm1489, %v1486, %v843
        %v1520 = vsel %vm1489, %v1487, %v845
        %v1521 = vsel %vm1489, %v1488, %v847
        %vm1522 = vcmask 97280
        %v1523 = vsel %vm1522, %v1490, %v881
        %v1524 = vsel %vm1522, %v1491, %v883
        %v1525 = vsel %vm1522, %v1492, %v885
        %v1526 = vsel %vm1522, %v1493, %v887
        %v1527 = vsel %vm1522, %v1494, %v889
        %v1528 = vsel %vm1522, %v1495, %v891
        %v1529 = vsel %vm1522, %v1496, %v893
        %v1530 = vsel %vm1522, %v1497, %v895
        %v1531 = vsel %vm1522, %v1498, %v897
        %v1532 = vsel %vm1522, %v1499, %v899
        %v1533 = vsel %vm1522, %v1500, %v901
        %v1534 = vsel %vm1522, %v1501, %v903
        %v1535 = vsel %vm1522, %v1502, %v905
        %v1536 = vsel %vm1522, %v1503, %v907
        %v1537 = vsel %vm1522, %v1504, %v909
        %v1538 = vsel %vm1522, %v1505, %v911
        %v1539 = vsel %vm1522, %v1506, %v913
        %v1540 = vsel %vm1522, %v1507, %v915
        %v1541 = vsel %vm1522, %v1508, %v917
        %v1542 = vsel %vm1522, %v1509, %v919
        %v1543 = vsel %vm1522, %v1510, %v921
        %v1544 = vsel %vm1522, %v1511, %v923
        %v1545 = vsel %vm1522, %v1512, %v925
        %v1546 = vsel %vm1522, %v1513, %v927
        %v1547 = vsel %vm1522, %v1514, %v929
        %v1548 = vsel %vm1522, %v1515, %v931
        %v1549 = vsel %vm1522, %v1516, %v933
        %v1550 = vsel %vm1522, %v1517, %v935
        %v1551 = vsel %vm1522, %v1518, %v937
        %v1552 = vsel %vm1522, %v1519, %v939
        %v1553 = vsel %vm1522, %v1520, %v941
        %v1554 = vsel %vm1522, %v1521, %v943
        %vm1555 = vcmask 130048
        %v1556 = vsel %vm1555, %v1523, %v977
        %v1557 = vsel %vm1555, %v1524, %v979
        %v1558 = vsel %vm1555, %v1525, %v981
        %v1559 = vsel %vm1555, %v1526, %v983
        %v1560 = vsel %vm1555, %v1527, %v985
        %v1561 = vsel %vm1555, %v1528, %v987
        %v1562 = vsel %vm1555, %v1529, %v989
        %v1563 = vsel %vm1555, %v1530, %v991
        %v1564 = vsel %vm1555, %v1531, %v993
        %v1565 = vsel %vm1555, %v1532, %v995
        %v1566 = vsel %vm1555, %v1533, %v997
        %v1567 = vsel %vm1555, %v1534, %v999
        %v1568 = vsel %vm1555, %v1535, %v1001
        %v1569 = vsel %vm1555, %v1536, %v1003
        %v1570 = vsel %vm1555, %v1537, %v1005
        %v1571 = vsel %vm1555, %v1538, %v1007
        %v1572 = vsel %vm1555, %v1539, %v1009
        %v1573 = vsel %vm1555, %v1540, %v1011
        %v1574 = vsel %vm1555, %v1541, %v1013
        %v1575 = vsel %vm1555, %v1542, %v1015
        %v1576 = vsel %vm1555, %v1543, %v1017
        %v1577 = vsel %vm1555, %v1544, %v1019
        %v1578 = vsel %vm1555, %v1545, %v1021
        %v1579 = vsel %vm1555, %v1546, %v1023
        %v1580 = vsel %vm1555, %v1547, %v1025
        %v1581 = vsel %vm1555, %v1548, %v1027
        %v1582 = vsel %vm1555, %v1549, %v1029
        %v1583 = vsel %vm1555, %v1550, %v1031
        %v1584 = vsel %vm1555, %v1551, %v1033
        %v1585 = vsel %vm1555, %v1552, %v1035
        %v1586 = vsel %vm1555, %v1553, %v1037
        %v1587 = vsel %vm1555, %v1554, %v1039
        %vm1588 = vcmask 162816
        %v1589 = vsel %vm1588, %v1556, %v1073
        %v1590 = vsel %vm1588, %v1557, %v1075
        %v1591 = vsel %vm1588, %v1558, %v1077
        %v1592 = vsel %vm1588, %v1559, %v1079
        %v1593 = vsel %vm1588, %v1560, %v1081
        %v1594 = vsel %vm1588, %v1561, %v1083
        %v1595 = vsel %vm1588, %v1562, %v1085
        %v1596 = vsel %vm1588, %v1563, %v1087
        %v1597 = vsel %vm1588, %v1564, %v1089
        %v1598 = vsel %vm1588, %v1565, %v1091
        %v1599 = vsel %vm1588, %v1566, %v1093
        %v1600 = vsel %vm1588, %v1567, %v1095
        %v1601 = vsel %vm1588, %v1568, %v1097
        %v1602 = vsel %vm1588, %v1569, %v1099
        %v1603 = vsel %vm1588, %v1570, %v1101
        %v1604 = vsel %vm1588, %v1571, %v1103
        %v1605 = vsel %vm1588, %v1572, %v1105
        %v1606 = vsel %vm1588, %v1573, %v1107
        %v1607 = vsel %vm1588, %v1574, %v1109
        %v1608 = vsel %vm1588, %v1575, %v1111
        %v1609 = vsel %vm1588, %v1576, %v1113
        %v1610 = vsel %vm1588, %v1577, %v1115
        %v1611 = vsel %vm1588, %v1578, %v1117
        %v1612 = vsel %vm1588, %v1579, %v1119
        %v1613 = vsel %vm1588, %v1580, %v1121
        %v1614 = vsel %vm1588, %v1581, %v1123
        %v1615 = vsel %vm1588, %v1582, %v1125
        %v1616 = vsel %vm1588, %v1583, %v1127
        %v1617 = vsel %vm1588, %v1584, %v1129
        %v1618 = vsel %vm1588, %v1585, %v1131
        %v1619 = vsel %vm1588, %v1586, %v1133
        %v1620 = vsel %vm1588, %v1587, %v1135
        %vm1621 = vcmask 195584
        %v1622 = vsel %vm1621, %v1589, %v1169
        %v1623 = vsel %vm1621, %v1590, %v1171
        %v1624 = vsel %vm1621, %v1591, %v1173
        %v1625 = vsel %vm1621, %v1592, %v1175
        %v1626 = vsel %vm1621, %v1593, %v1177
        %v1627 = vsel %vm1621, %v1594, %v1179
        %v1628 = vsel %vm1621, %v1595, %v1181
        %v1629 = vsel %vm1621, %v1596, %v1183
        %v1630 = vsel %vm1621, %v1597, %v1185
        %v1631 = vsel %vm1621, %v1598, %v1187
        %v1632 = vsel %vm1621, %v1599, %v1189
        %v1633 = vsel %vm1621, %v1600, %v1191
        %v1634 = vsel %vm1621, %v1601, %v1193
        %v1635 = vsel %vm1621, %v1602, %v1195
        %v1636 = vsel %vm1621, %v1603, %v1197
        %v1637 = vsel %vm1621, %v1604, %v1199
        %v1638 = vsel %vm1621, %v1605, %v1201
        %v1639 = vsel %vm1621, %v1606, %v1203
        %v1640 = vsel %vm1621, %v1607, %v1205
        %v1641 = vsel %vm1621, %v1608, %v1207
        %v1642 = vsel %vm1621, %v1609, %v1209
        %v1643 = vsel %vm1621, %v1610, %v1211
        %v1644 = vsel %vm1621, %v1611, %v1213
        %v1645 = vsel %vm1621, %v1612, %v1215
        %v1646 = vsel %vm1621, %v1613, %v1217
        %v1647 = vsel %vm1621, %v1614, %v1219
        %v1648 = vsel %vm1621, %v1615, %v1221
        %v1649 = vsel %vm1621, %v1616, %v1223
        %v1650 = vsel %vm1621, %v1617, %v1225
        %v1651 = vsel %vm1621, %v1618, %v1227
        %v1652 = vsel %vm1621, %v1619, %v1229
        %v1653 = vsel %vm1621, %v1620, %v1231
        %vm1654 = vcmask 228352
        %v1655 = vsel %vm1654, %v1622, %v1265
        %v1656 = vsel %vm1654, %v1623, %v1267
        %v1657 = vsel %vm1654, %v1624, %v1269
        %v1658 = vsel %vm1654, %v1625, %v1271
        %v1659 = vsel %vm1654, %v1626, %v1273
        %v1660 = vsel %vm1654, %v1627, %v1275
        %v1661 = vsel %vm1654, %v1628, %v1277
        %v1662 = vsel %vm1654, %v1629, %v1279
        %v1663 = vsel %vm1654, %v1630, %v1281
        %v1664 = vsel %vm1654, %v1631, %v1283
        %v1665 = vsel %vm1654, %v1632, %v1285
        %v1666 = vsel %vm1654, %v1633, %v1287
        %v1667 = vsel %vm1654, %v1634, %v1289
        %v1668 = vsel %vm1654, %v1635, %v1291
        %v1669 = vsel %vm1654, %v1636, %v1293
        %v1670 = vsel %vm1654, %v1637, %v1295
        %v1671 = vsel %vm1654, %v1638, %v1297
        %v1672 = vsel %vm1654, %v1639, %v1299
        %v1673 = vsel %vm1654, %v1640, %v1301
        %v1674 = vsel %vm1654, %v1641, %v1303
        %v1675 = vsel %vm1654, %v1642, %v1305
        %v1676 = vsel %vm1654, %v1643, %v1307
        %v1677 = vsel %vm1654, %v1644, %v1309
        %v1678 = vsel %vm1654, %v1645, %v1311
        %v1679 = vsel %vm1654, %v1646, %v1313
        %v1680 = vsel %vm1654, %v1647, %v1315
        %v1681 = vsel %vm1654, %v1648, %v1317
        %v1682 = vsel %vm1654, %v1649, %v1319
        %v1683 = vsel %vm1654, %v1650, %v1321
        %v1684 = vsel %vm1654, %v1651, %v1323
        %v1685 = vsel %vm1654, %v1652, %v1325
        %v1686 = vsel %vm1654, %v1653, %v1327
        %vm1687 = vcmask 261120
        %v1688 = vsel %vm1687, %v1655, %v1361
        %v1689 = vsel %vm1687, %v1656, %v1363
        %v1690 = vsel %vm1687, %v1657, %v1365
        %v1691 = vsel %vm1687, %v1658, %v1367
        %v1692 = vsel %vm1687, %v1659, %v1369
        %v1693 = vsel %vm1687, %v1660, %v1371
        %v1694 = vsel %vm1687, %v1661, %v1373
        %v1695 = vsel %vm1687, %v1662, %v1375
        %v1696 = vsel %vm1687, %v1663, %v1377
        %v1697 = vsel %vm1687, %v1664, %v1379
        %v1698 = vsel %vm1687, %v1665, %v1381
        %v1699 = vsel %vm1687, %v1666, %v1383
        %v1700 = vsel %vm1687, %v1667, %v1385
        %v1701 = vsel %vm1687, %v1668, %v1387
        %v1702 = vsel %vm1687, %v1669, %v1389
        %v1703 = vsel %vm1687, %v1670, %v1391
        %v1704 = vsel %vm1687, %v1671, %v1393
        %v1705 = vsel %vm1687, %v1672, %v1395
        %v1706 = vsel %vm1687, %v1673, %v1397
        %v1707 = vsel %vm1687, %v1674, %v1399
        %v1708 = vsel %vm1687, %v1675, %v1401
        %v1709 = vsel %vm1687, %v1676, %v1403
        %v1710 = vsel %vm1687, %v1677, %v1405
        %v1711 = vsel %vm1687, %v1678, %v1407
        %v1712 = vsel %vm1687, %v1679, %v1409
        %v1713 = vsel %vm1687, %v1680, %v1411
        %v1714 = vsel %vm1687, %v1681, %v1413
        %v1715 = vsel %vm1687, %v1682, %v1415
        %v1716 = vsel %vm1687, %v1683, %v1417
        %v1717 = vsel %vm1687, %v1684, %v1419
        %v1718 = vsel %vm1687, %v1685, %v1421
        %v1719 = vsel %vm1687, %v1686, %v1423
        %v1721 = vlaneseq
        %v1722 = vshrl.u32 %v1721, 7
        %v1723 = vsub.s32 0, %v1722
        %v1724 = vrot.slane %v314, %v1723
        %vm1726 = vcmask 293888
        %v1728 = vsel %vm1726, %v1688, 0
        %v1731 = vsel %vm1726, %v1689, 0
        %v1734 = vsel %vm1726, %v1690, 0
        %v1737 = vsel %vm1726, %v1691, 0
        %v1740 = vsel %vm1726, %v1692, 0
        %v1743 = vsel %vm1726, %v1693, 0
        %v1746 = vsel %vm1726, %v1694, 0
        %v1749 = vsel %vm1726, %v1695, 0
        %v1752 = vsel %vm1726, %v1696, 0
        %v1755 = vsel %vm1726, %v1697, 0
        %v1758 = vsel %vm1726, %v1698, 0
        %v1761 = vsel %vm1726, %v1699, 0
        %v1764 = vsel %vm1726, %v1700, 0
        %v1767 = vsel %vm1726, %v1701, 0
        %v1770 = vsel %vm1726, %v1702, 0
        %v1773 = vsel %vm1726, %v1703, 0
        %v1776 = vsel %vm1726, %v1704, 0
        %v1779 = vsel %vm1726, %v1705, 0
        %v1782 = vsel %vm1726, %v1706, 0
        %v1785 = vsel %vm1726, %v1707, 0
        %v1788 = vsel %vm1726, %v1708, 0
        %v1791 = vsel %vm1726, %v1709, 0
        %v1794 = vsel %vm1726, %v1710, 0
        %v1797 = vsel %vm1726, %v1711, 0
        %v1800 = vsel %vm1726, %v1712, 0
        %v1803 = vsel %vm1726, %v1713, 0
        %v1806 = vsel %vm1726, %v1714, 0
        %v1809 = vsel %vm1726, %v1715, 0
        %v1812 = vsel %vm1726, %v1716, 0
        %v1815 = vsel %vm1726, %v1717, 0
        %v1818 = vsel %vm1726, %v1718, 0
        %v1821 = vsel %vm1726, %v1719, 0
        %vm1823 = vcmask 1043456
        %v1825 = vsel %vm1823, %v313, 0
        %1827 = vmatprep.subr.mxu0 0.0
        %1828 = vmatpush1.msra.mxu0 %v309
        %1829 = vmatprep.subr.mxu0 0.0
        %1830 = vmatpush1.msra.mxu0 %v310
        %1831 = vmatprep.subr.mxu0 0.0
        %1832 = vmatpush1.msra.mxu0 %v311
        %1833 = vmatprep.subr.mxu0 0.0
        %1834 = vmatpush1.msra.mxu0 %v312
        %1835 = vmatprep.subr.mxu0 0.0
        %1836 = vmatpush1.msra.mxu0 %v1825
        %1837 = vmatprep.subr.mxu0 0.0
        %1838 = vmatpush1.msra.mxu0 0.0
        %1839 = vmatprep.subr.mxu0 0.0
        %1840 = vmatpush1.msra.mxu0 0.0
        %1841 = vmatprep.subr.mxu0 0.0
        %1842 = vmatpush1.msra.mxu0 0.0
        %1843 = vmatprep.subr.mxu0 0.0
        %1844 = vmatpush1.msra.mxu0 0.0
        %1845 = vmatprep.subr.mxu0 0.0
        %1846 = vmatpush1.msra.mxu0 0.0
        %1847 = vmatprep.subr.mxu0 0.0
        %1848 = vmatpush1.msra.mxu0 0.0
        %1849 = vmatprep.subr.mxu0 0.0
        %1850 = vmatpush1.msra.mxu0 0.0
        %1851 = vmatprep.subr.mxu0 0.0
        %1852 = vmatpush1.msra.mxu0 0.0
        %1853 = vmatprep.subr.mxu0 0.0
        %1854 = vmatpush1.msra.mxu0 0.0
        %1855 = vmatprep.subr.mxu0 0.0
        %1856 = vmatpush1.msra.mxu0 0.0
        %1857 = vmatprep.subr.mxu0 0.0
        %1858 = vmatpush1.msra.mxu0 0.0
        %1859 = vmatprep.subr.mxu0 0.0
        %1860 = vmatpush1.msra.mxu0 0.0
        %1861 = vmatprep.subr.mxu0 0.0
        %1862 = vmatpush1.msra.mxu0 0.0
        %1863 = vmatprep.subr.mxu0 0.0
        %1864 = vmatpush1.msra.mxu0 0.0
        %1865 = vmatprep.subr.mxu0 0.0
        %1866 = vmatpush1.msra.mxu0 0.0
        %1867 = vmatprep.subr.mxu0 0.0
        %1868 = vmatpush1.msra.mxu0 0.0
        %1869 = vmatprep.subr.mxu0 0.0
        %1870 = vmatpush1.msra.mxu0 0.0
        %1871 = vmatprep.subr.mxu0 0.0
        %1872 = vmatpush1.msra.mxu0 0.0
        %1873 = vmatprep.subr.mxu0 0.0
        %1874 = vmatpush1.msra.mxu0 0.0
        %1875 = vmatprep.subr.mxu0 0.0
        %1876 = vmatpush1.msra.mxu0 0.0
        %1877 = vmatprep.subr.mxu0 0.0
        %1878 = vmatpush1.msra.mxu0 0.0
        %1879 = vmatprep.subr.mxu0 0.0
        %1880 = vmatpush1.msra.mxu0 0.0
        %1881 = vmatprep.subr.mxu0 0.0
        %1882 = vmatpush1.msra.mxu0 0.0
        %1883 = vmatprep.subr.mxu0 0.0
        %1884 = vmatpush1.msra.mxu0 0.0
        %1885 = vmatprep.subr.mxu0 0.0
        %1886 = vmatpush1.msra.mxu0 0.0
        %1887 = vmatprep.subr.mxu0 0.0
        %1888 = vmatpush1.msra.mxu0 0.0
        %1889 = vmatprep.subr.mxu0 0.0
        %1890 = vmatpush1.msra.mxu0 0.0
        %1891 = vmatprep.mubr.f32.mxu0 0.0
        %1892 = vmatmul.mubr.f32.gmra.mrb[0].mxu0 %v1728
        %v1893 = vpop.f32.mrb[0].mxu0
        %v1894 = vadd.f32 %v1724, %v1893
        %v1895 = vpop.f32.mrb[0].mxu0
        %1896 = vmatprep.mubr.f32.mxu0 0.0
        %1897 = vmatmul.mubr.f32.gmra.mrb[0].mxu0 %v1731
        %v1898 = vpop.f32.mrb[0].mxu0
        %v1899 = vadd.f32 %v1724, %v1898
        %v1900 = vpop.f32.mrb[0].mxu0
        %1901 = vmatprep.mubr.f32.mxu0 0.0
        %1902 = vmatmul.mubr.f32.gmra.mrb[0].mxu0 %v1734
        %v1903 = vpop.f32.mrb[0].mxu0
        %v1904 = vadd.f32 %v1724, %v1903
        %v1905 = vpop.f32.mrb[0].mxu0
        %1906 = vmatprep.mubr.f32.mxu0 0.0
        %1907 = vmatmul.mubr.f32.gmra.mrb[0].mxu0 %v1737
        %v1908 = vpop.f32.mrb[0].mxu0
        %v1909 = vadd.f32 %v1724, %v1908
        %v1910 = vpop.f32.mrb[0].mxu0
        %1911 = vmatprep.mubr.f32.mxu0 0.0
        %1912 = vmatmul.mubr.f32.gmra.mrb[0].mxu0 %v1740
        %v1913 = vpop.f32.mrb[0].mxu0
        %v1914 = vadd.f32 %v1724, %v1913
        %v1915 = vpop.f32.mrb[0].mxu0
        %1916 = vmatprep.mubr.f32.mxu0 0.0
        %1917 = vmatmul.mubr.f32.gmra.mrb[0].mxu0 %v1743
        %v1918 = vpop.f32.mrb[0].mxu0
        %v1919 = vadd.f32 %v1724, %v1918
        %v1920 = vpop.f32.mrb[0].mxu0
        %1921 = vmatprep.mubr.f32.mxu0 0.0
        %1922 = vmatmul.mubr.f32.gmra.mrb[0].mxu0 %v1746
        %v1923 = vpop.f32.mrb[0].mxu0
        %v1924 = vadd.f32 %v1724, %v1923
        %v1925 = vpop.f32.mrb[0].mxu0
        %1926 = vmatprep.mubr.f32.mxu0 0.0
        %1927 = vmatmul.mubr.f32.gmra.mrb[0].mxu0 %v1749
        %v1928 = vpop.f32.mrb[0].mxu0
        %v1929 = vadd.f32 %v1724, %v1928
        %v1930 = vpop.f32.mrb[0].mxu0
        %1931 = vmatprep.mubr.f32.mxu0 0.0
        %1932 = vmatmul.mubr.f32.gmra.mrb[0].mxu0 %v1752
        %v1933 = vpop.f32.mrb[0].mxu0
        %v1934 = vadd.f32 %v1724, %v1933
        %v1935 = vpop.f32.mrb[0].mxu0
        %1936 = vmatprep.mubr.f32.mxu0 0.0
        %1937 = vmatmul.mubr.f32.gmra.mrb[0].mxu0 %v1755
        %v1938 = vpop.f32.mrb[0].mxu0
        %v1939 = vadd.f32 %v1724, %v1938
        %v1940 = vpop.f32.mrb[0].mxu0
        %1941 = vmatprep.mubr.f32.mxu0 0.0
        %1942 = vmatmul.mubr.f32.gmra.mrb[0].mxu0 %v1758
        %v1943 = vpop.f32.mrb[0].mxu0
        %v1944 = vadd.f32 %v1724, %v1943
        %v1945 = vpop.f32.mrb[0].mxu0
        %1946 = vmatprep.mubr.f32.mxu0 0.0
        %1947 = vmatmul.mubr.f32.gmra.mrb[0].mxu0 %v1761
        %v1948 = vpop.f32.mrb[0].mxu0
        %v1949 = vadd.f32 %v1724, %v1948
        %v1950 = vpop.f32.mrb[0].mxu0
        %1951 = vmatprep.mubr.f32.mxu0 0.0
        %1952 = vmatmul.mubr.f32.gmra.mrb[0].mxu0 %v1764
        %v1953 = vpop.f32.mrb[0].mxu0
        %v1954 = vadd.f32 %v1724, %v1953
        %v1955 = vpop.f32.mrb[0].mxu0
        %1956 = vmatprep.mubr.f32.mxu0 0.0
        %1957 = vmatmul.mubr.f32.gmra.mrb[0].mxu0 %v1767
        %v1958 = vpop.f32.mrb[0].mxu0
        %v1959 = vadd.f32 %v1724, %v1958
        %v1960 = vpop.f32.mrb[0].mxu0
        %1961 = vmatprep.mubr.f32.mxu0 0.0
        %1962 = vmatmul.mubr.f32.gmra.mrb[0].mxu0 %v1770
        %v1963 = vpop.f32.mrb[0].mxu0
        %v1964 = vadd.f32 %v1724, %v1963
        %v1965 = vpop.f32.mrb[0].mxu0
        %1966 = vmatprep.mubr.f32.mxu0 0.0
        %1967 = vmatmul.mubr.f32.gmra.mrb[0].mxu0 %v1773
        %v1968 = vpop.f32.mrb[0].mxu0
        %v1969 = vadd.f32 %v1724, %v1968
        %v1970 = vpop.f32.mrb[0].mxu0
        %1971 = vmatprep.mubr.f32.mxu0 0.0
        %1972 = vmatmul.mubr.f32.gmra.mrb[0].mxu0 %v1776
        %v1973 = vpop.f32.mrb[0].mxu0
        %v1974 = vadd.f32 %v1724, %v1973
        %v1975 = vpop.f32.mrb[0].mxu0
        %1976 = vmatprep.mubr.f32.mxu0 0.0
        %1977 = vmatmul.mubr.f32.gmra.mrb[0].mxu0 %v1779
        %v1978 = vpop.f32.mrb[0].mxu0
        %v1979 = vadd.f32 %v1724, %v1978
        %v1980 = vpop.f32.mrb[0].mxu0
        %1981 = vmatprep.mubr.f32.mxu0 0.0
        %1982 = vmatmul.mubr.f32.gmra.mrb[0].mxu0 %v1782
        %v1983 = vpop.f32.mrb[0].mxu0
        %v1984 = vadd.f32 %v1724, %v1983
        %v1985 = vpop.f32.mrb[0].mxu0
        %1986 = vmatprep.mubr.f32.mxu0 0.0
        %1987 = vmatmul.mubr.f32.gmra.mrb[0].mxu0 %v1785
        %v1988 = vpop.f32.mrb[0].mxu0
        %v1989 = vadd.f32 %v1724, %v1988
        %v1990 = vpop.f32.mrb[0].mxu0
        %1991 = vmatprep.mubr.f32.mxu0 0.0
        %1992 = vmatmul.mubr.f32.gmra.mrb[0].mxu0 %v1788
        %v1993 = vpop.f32.mrb[0].mxu0
        %v1994 = vadd.f32 %v1724, %v1993
        %v1995 = vpop.f32.mrb[0].mxu0
        %1996 = vmatprep.mubr.f32.mxu0 0.0
        %1997 = vmatmul.mubr.f32.gmra.mrb[0].mxu0 %v1791
        %v1998 = vpop.f32.mrb[0].mxu0
        %v1999 = vadd.f32 %v1724, %v1998
        %v2000 = vpop.f32.mrb[0].mxu0
        %2001 = vmatprep.mubr.f32.mxu0 0.0
        %2002 = vmatmul.mubr.f32.gmra.mrb[0].mxu0 %v1794
        %v2003 = vpop.f32.mrb[0].mxu0
        %v2004 = vadd.f32 %v1724, %v2003
        %v2005 = vpop.f32.mrb[0].mxu0
        %2006 = vmatprep.mubr.f32.mxu0 0.0
        %2007 = vmatmul.mubr.f32.gmra.mrb[0].mxu0 %v1797
        %v2008 = vpop.f32.mrb[0].mxu0
        %v2009 = vadd.f32 %v1724, %v2008
        %v2010 = vpop.f32.mrb[0].mxu0
        %2011 = vmatprep.mubr.f32.mxu0 0.0
        %2012 = vmatmul.mubr.f32.gmra.mrb[0].mxu0 %v1800
        %v2013 = vpop.f32.mrb[0].mxu0
        %v2014 = vadd.f32 %v1724, %v2013
        %v2015 = vpop.f32.mrb[0].mxu0
        %2016 = vmatprep.mubr.f32.mxu0 0.0
        %2017 = vmatmul.mubr.f32.gmra.mrb[0].mxu0 %v1803
        %v2018 = vpop.f32.mrb[0].mxu0
        %v2019 = vadd.f32 %v1724, %v2018
        %v2020 = vpop.f32.mrb[0].mxu0
        %2021 = vmatprep.mubr.f32.mxu0 0.0
        %2022 = vmatmul.mubr.f32.gmra.mrb[0].mxu0 %v1806
        %v2023 = vpop.f32.mrb[0].mxu0
        %v2024 = vadd.f32 %v1724, %v2023
        %v2025 = vpop.f32.mrb[0].mxu0
        %2026 = vmatprep.mubr.f32.mxu0 0.0
        %2027 = vmatmul.mubr.f32.gmra.mrb[0].mxu0 %v1809
        %v2028 = vpop.f32.mrb[0].mxu0
        %v2029 = vadd.f32 %v1724, %v2028
        %v2030 = vpop.f32.mrb[0].mxu0
        %2031 = vmatprep.mubr.f32.mxu0 0.0
        %2032 = vmatmul.mubr.f32.gmra.mrb[0].mxu0 %v1812
        %v2033 = vpop.f32.mrb[0].mxu0
        %v2034 = vadd.f32 %v1724, %v2033
        %v2035 = vpop.f32.mrb[0].mxu0
        %2036 = vmatprep.mubr.f32.mxu0 0.0
        %2037 = vmatmul.mubr.f32.gmra.mrb[0].mxu0 %v1815
        %v2038 = vpop.f32.mrb[0].mxu0
        %v2039 = vadd.f32 %v1724, %v2038
        %v2040 = vpop.f32.mrb[0].mxu0
        %2041 = vmatprep.mubr.f32.mxu0 0.0
        %2042 = vmatmul.mubr.f32.gmra.mrb[0].mxu0 %v1818
        %v2043 = vpop.f32.mrb[0].mxu0
        %v2044 = vadd.f32 %v1724, %v2043
        %v2045 = vpop.f32.mrb[0].mxu0
        %2046 = vmatprep.mubr.f32.mxu0 0.0
        %2047 = vmatmul.mubr.f32.gmra.mrb[0].mxu0 %v1821
        %v2048 = vpop.f32.mrb[0].mxu0
        %v2049 = vadd.f32 %v1724, %v2048
        %v2050 = vpop.f32.mrb[0].mxu0
        %2051 = vdwg.mxu0
        %v2052 = vmax.f32 %v1894, 0.0
        %v2053 = vmax.f32 %v1899, 0.0
        %v2054 = vmax.f32 %v1904, 0.0
        %v2055 = vmax.f32 %v1909, 0.0
        %v2056 = vmax.f32 %v1914, 0.0
        %v2057 = vmax.f32 %v1919, 0.0
        %v2058 = vmax.f32 %v1924, 0.0
        %v2059 = vmax.f32 %v1929, 0.0
        %v2060 = vmax.f32 %v1934, 0.0
        %v2061 = vmax.f32 %v1939, 0.0
        %v2062 = vmax.f32 %v1944, 0.0
        %v2063 = vmax.f32 %v1949, 0.0
        %v2064 = vmax.f32 %v1954, 0.0
        %v2065 = vmax.f32 %v1959, 0.0
        %v2066 = vmax.f32 %v1964, 0.0
        %v2067 = vmax.f32 %v1969, 0.0
        %v2068 = vmax.f32 %v1974, 0.0
        %v2069 = vmax.f32 %v1979, 0.0
        %v2070 = vmax.f32 %v1984, 0.0
        %v2071 = vmax.f32 %v1989, 0.0
        %v2072 = vmax.f32 %v1994, 0.0
        %v2073 = vmax.f32 %v1999, 0.0
        %v2074 = vmax.f32 %v2004, 0.0
        %v2075 = vmax.f32 %v2009, 0.0
        %v2076 = vmax.f32 %v2014, 0.0
        %v2077 = vmax.f32 %v2019, 0.0
        %v2078 = vmax.f32 %v2024, 0.0
        %v2079 = vmax.f32 %v2029, 0.0
        %v2080 = vmax.f32 %v2034, 0.0
        %v2081 = vmax.f32 %v2039, 0.0
        %v2082 = vmax.f32 %v2044, 0.0
        %v2083 = vmax.f32 %v2049, 0.0
        %v2084 = vld [vmem:[%s3] sm:$0xff]
        %v2085 = vld [vmem:[%s3 + $0x8] sm:$0xff]
        %v2086 = vld [vmem:[%s3 + $0x10] sm:$0xff]
        %v2087 = vld [vmem:[%s3 + $0x18] sm:$0xff]
        %v2088 = vld [vmem:[%s3 + $0x20] sm:$0xff]
        %v2089 = vld [vmem:[%s3 + $0x28] sm:$0xff]
        %v2090 = vld [vmem:[%s3 + $0x30] sm:$0xff]
        %v2091 = vld [vmem:[%s3 + $0x38] sm:$0xff]
        %v2092 = vld [vmem:[%s3 + $0x40] sm:$0xff]
        %v2093 = vld [vmem:[%s4] sm:$0x1]
        %v2126 = vrot.slane %v2052, 7
        %v2127 = vrot.slane %v2053, 7
        %v2128 = vsel %vm348, %v2126, %v2127
        %v2129 = vrot.slane %v2054, 7
        %v2130 = vrot.slane %v2055, 7
        %v2131 = vsel %vm348, %v2129, %v2130
        %v2132 = vrot.slane %v2056, 7
        %v2133 = vrot.slane %v2057, 7
        %v2134 = vsel %vm348, %v2132, %v2133
        %v2135 = vrot.slane %v2058, 7
        %v2136 = vrot.slane %v2059, 7
        %v2137 = vsel %vm348, %v2135, %v2136
        %v2138 = vrot.slane %v2060, 7
        %v2139 = vrot.slane %v2061, 7
        %v2140 = vsel %vm348, %v2138, %v2139
        %v2141 = vrot.slane %v2062, 7
        %v2142 = vrot.slane %v2063, 7
        %v2143 = vsel %vm348, %v2141, %v2142
        %v2144 = vrot.slane %v2064, 7
        %v2145 = vrot.slane %v2065, 7
        %v2146 = vsel %vm348, %v2144, %v2145
        %v2147 = vrot.slane %v2066, 7
        %v2148 = vrot.slane %v2067, 7
        %v2149 = vsel %vm348, %v2147, %v2148
        %v2150 = vrot.slane %v2068, 7
        %v2151 = vrot.slane %v2069, 7
        %v2152 = vsel %vm348, %v2150, %v2151
        %v2153 = vrot.slane %v2070, 7
        %v2154 = vrot.slane %v2071, 7
        %v2155 = vsel %vm348, %v2153, %v2154
        %v2156 = vrot.slane %v2072, 7
        %v2157 = vrot.slane %v2073, 7
        %v2158 = vsel %vm348, %v2156, %v2157
        %v2159 = vrot.slane %v2074, 7
        %v2160 = vrot.slane %v2075, 7
        %v2161 = vsel %vm348, %v2159, %v2160
        %v2162 = vrot.slane %v2076, 7
        %v2163 = vrot.slane %v2077, 7
        %v2164 = vsel %vm348, %v2162, %v2163
        %v2165 = vrot.slane %v2078, 7
        %v2166 = vrot.slane %v2079, 7
        %v2167 = vsel %vm348, %v2165, %v2166
        %v2168 = vrot.slane %v2080, 7
        %v2169 = vrot.slane %v2081, 7
        %v2170 = vsel %vm348, %v2168, %v2169
        %v2171 = vrot.slane %v2082, 7
        %v2172 = vrot.slane %v2083, 7
        %v2173 = vsel %vm348, %v2171, %v2172
        %v2221 = vsel %vm348, 0.0, %v2126
        %v2222 = vsel %vm348, 0.0, %v2129
        %v2223 = vsel %vm348, 0.0, %v2132
        %v2224 = vsel %vm348, 0.0, %v2135
        %v2225 = vsel %vm348, 0.0, %v2138
        %v2226 = vsel %vm348, 0.0, %v2141
        %v2227 = vsel %vm348, 0.0, %v2144
        %v2228 = vsel %vm348, 0.0, %v2147
        %v2229 = vsel %vm348, 0.0, %v2150
        %v2230 = vsel %vm348, 0.0, %v2153
        %v2231 = vsel %vm348, 0.0, %v2156
        %v2232 = vsel %vm348, 0.0, %v2159
        %v2233 = vsel %vm348, 0.0, %v2162
        %v2234 = vsel %vm348, 0.0, %v2165
        %v2235 = vsel %vm348, 0.0, %v2168
        %v2236 = vsel %vm348, 0.0, %v2171
        %v2237 = vsel %vm348, %v2127, 0.0
        %v2238 = vsel %vm348, %v2130, 0.0
        %v2239 = vsel %vm348, %v2133, 0.0
        %v2240 = vsel %vm348, %v2136, 0.0
        %v2241 = vsel %vm348, %v2139, 0.0
        %v2242 = vsel %vm348, %v2142, 0.0
        %v2243 = vsel %vm348, %v2145, 0.0
        %v2244 = vsel %vm348, %v2148, 0.0
        %v2245 = vsel %vm348, %v2151, 0.0
        %v2246 = vsel %vm348, %v2154, 0.0
        %v2247 = vsel %vm348, %v2157, 0.0
        %v2248 = vsel %vm348, %v2160, 0.0
        %v2249 = vsel %vm348, %v2163, 0.0
        %v2250 = vsel %vm348, %v2166, 0.0
        %v2251 = vsel %vm348, %v2169, 0.0
        %v2252 = vsel %vm348, %v2172, 0.0
        %v2283 = vrot.slane %v2221, 1
        %v2284 = vrot.slane %v2128, 1
        %v2285 = vsel %vm514, %v2283, %v2284
        %v2286 = vrot.slane %v2237, 1
        %v2287 = vsel %vm514, %v2284, %v2286
        %v2288 = vrot.slane %v2222, 1
        %v2289 = vrot.slane %v2131, 1
        %v2290 = vsel %vm514, %v2288, %v2289
        %v2291 = vrot.slane %v2238, 1
        %v2292 = vsel %vm514, %v2289, %v2291
        %v2293 = vrot.slane %v2223, 1
        %v2294 = vrot.slane %v2134, 1
        %v2295 = vsel %vm514, %v2293, %v2294
        %v2296 = vrot.slane %v2239, 1
        %v2297 = vsel %vm514, %v2294, %v2296
        %v2298 = vrot.slane %v2224, 1
        %v2299 = vrot.slane %v2137, 1
        %v2300 = vsel %vm514, %v2298, %v2299
        %v2301 = vrot.slane %v2240, 1
        %v2302 = vsel %vm514, %v2299, %v2301
        %v2303 = vrot.slane %v2225, 1
        %v2304 = vrot.slane %v2140, 1
        %v2305 = vsel %vm514, %v2303, %v2304
        %v2306 = vrot.slane %v2241, 1
        %v2307 = vsel %vm514, %v2304, %v2306
        %v2308 = vrot.slane %v2226, 1
        %v2309 = vrot.slane %v2143, 1
        %v2310 = vsel %vm514, %v2308, %v2309
        %v2311 = vrot.slane %v2242, 1
        %v2312 = vsel %vm514, %v2309, %v2311
        %v2313 = vrot.slane %v2227, 1
        %v2314 = vrot.slane %v2146, 1
        %v2315 = vsel %vm514, %v2313, %v2314
        %v2316 = vrot.slane %v2243, 1
        %v2317 = vsel %vm514, %v2314, %v2316
        %v2318 = vrot.slane %v2228, 1
        %v2319 = vrot.slane %v2149, 1
        %v2320 = vsel %vm514, %v2318, %v2319
        %v2321 = vrot.slane %v2244, 1
        %v2322 = vsel %vm514, %v2319, %v2321
        %v2323 = vrot.slane %v2229, 1
        %v2324 = vrot.slane %v2152, 1
        %v2325 = vsel %vm514, %v2323, %v2324
        %v2326 = vrot.slane %v2245, 1
        %v2327 = vsel %vm514, %v2324, %v2326
        %v2328 = vrot.slane %v2230, 1
        %v2329 = vrot.slane %v2155, 1
        %v2330 = vsel %vm514, %v2328, %v2329
        %v2331 = vrot.slane %v2246, 1
        %v2332 = vsel %vm514, %v2329, %v2331
        %v2333 = vrot.slane %v2231, 1
        %v2334 = vrot.slane %v2158, 1
        %v2335 = vsel %vm514, %v2333, %v2334
        %v2336 = vrot.slane %v2247, 1
        %v2337 = vsel %vm514, %v2334, %v2336
        %v2338 = vrot.slane %v2232, 1
        %v2339 = vrot.slane %v2161, 1
        %v2340 = vsel %vm514, %v2338, %v2339
        %v2341 = vrot.slane %v2248, 1
        %v2342 = vsel %vm514, %v2339, %v2341
        %v2343 = vrot.slane %v2233, 1
        %v2344 = vrot.slane %v2164, 1
        %v2345 = vsel %vm514, %v2343, %v2344
        %v2346 = vrot.slane %v2249, 1
        %v2347 = vsel %vm514, %v2344, %v2346
        %v2348 = vrot.slane %v2234, 1
        %v2349 = vrot.slane %v2167, 1
        %v2350 = vsel %vm514, %v2348, %v2349
        %v2351 = vrot.slane %v2250, 1
        %v2352 = vsel %vm514, %v2349, %v2351
        %v2353 = vrot.slane %v2235, 1
        %v2354 = vrot.slane %v2170, 1
        %v2355 = vsel %vm514, %v2353, %v2354
        %v2356 = vrot.slane %v2251, 1
        %v2357 = vsel %vm514, %v2354, %v2356
        %v2358 = vrot.slane %v2221, 2
        %v2359 = vrot.slane %v2128, 2
        %v2360 = vsel %vm595, %v2358, %v2359
        %v2361 = vrot.slane %v2237, 2
        %v2362 = vsel %vm595, %v2359, %v2361
        %v2363 = vrot.slane %v2222, 2
        %v2364 = vrot.slane %v2131, 2
        %v2365 = vsel %vm595, %v2363, %v2364
        %v2366 = vrot.slane %v2238, 2
        %v2367 = vsel %vm595, %v2364, %v2366
        %v2368 = vrot.slane %v2223, 2
        %v2369 = vrot.slane %v2134, 2
        %v2370 = vsel %vm595, %v2368, %v2369
        %v2371 = vrot.slane %v2239, 2
        %v2372 = vsel %vm595, %v2369, %v2371
        %v2373 = vrot.slane %v2224, 2
        %v2374 = vrot.slane %v2137, 2
        %v2375 = vsel %vm595, %v2373, %v2374
        %v2376 = vrot.slane %v2240, 2
        %v2377 = vsel %vm595, %v2374, %v2376
        %v2378 = vrot.slane %v2225, 2
        %v2379 = vrot.slane %v2140, 2
        %v2380 = vsel %vm595, %v2378, %v2379
        %v2381 = vrot.slane %v2241, 2
        %v2382 = vsel %vm595, %v2379, %v2381
        %v2383 = vrot.slane %v2226, 2
        %v2384 = vrot.slane %v2143, 2
        %v2385 = vsel %vm595, %v2383, %v2384
        %v2386 = vrot.slane %v2242, 2
        %v2387 = vsel %vm595, %v2384, %v2386
        %v2388 = vrot.slane %v2227, 2
        %v2389 = vrot.slane %v2146, 2
        %v2390 = vsel %vm595, %v2388, %v2389
        %v2391 = vrot.slane %v2243, 2
        %v2392 = vsel %vm595, %v2389, %v2391
        %v2393 = vrot.slane %v2228, 2
        %v2394 = vrot.slane %v2149, 2
        %v2395 = vsel %vm595, %v2393, %v2394
        %v2396 = vrot.slane %v2244, 2
        %v2397 = vsel %vm595, %v2394, %v2396
        %v2398 = vrot.slane %v2229, 2
        %v2399 = vrot.slane %v2152, 2
        %v2400 = vsel %vm595, %v2398, %v2399
        %v2401 = vrot.slane %v2245, 2
        %v2402 = vsel %vm595, %v2399, %v2401
        %v2403 = vrot.slane %v2230, 2
        %v2404 = vrot.slane %v2155, 2
        %v2405 = vsel %vm595, %v2403, %v2404
        %v2406 = vrot.slane %v2246, 2
        %v2407 = vsel %vm595, %v2404, %v2406
        %v2408 = vrot.slane %v2231, 2
        %v2409 = vrot.slane %v2158, 2
        %v2410 = vsel %vm595, %v2408, %v2409
        %v2411 = vrot.slane %v2247, 2
        %v2412 = vsel %vm595, %v2409, %v2411
        %v2413 = vrot.slane %v2232, 2
        %v2414 = vrot.slane %v2161, 2
        %v2415 = vsel %vm595, %v2413, %v2414
        %v2416 = vrot.slane %v2248, 2
        %v2417 = vsel %vm595, %v2414, %v2416
        %v2418 = vrot.slane %v2233, 2
        %v2419 = vrot.slane %v2164, 2
        %v2420 = vsel %vm595, %v2418, %v2419
        %v2421 = vrot.slane %v2249, 2
        %v2422 = vsel %vm595, %v2419, %v2421
        %v2423 = vrot.slane %v2234, 2
        %v2424 = vrot.slane %v2167, 2
        %v2425 = vsel %vm595, %v2423, %v2424
        %v2426 = vrot.slane %v2250, 2
        %v2427 = vsel %vm595, %v2424, %v2426
        %v2428 = vrot.slane %v2235, 2
        %v2429 = vrot.slane %v2170, 2
        %v2430 = vsel %vm595, %v2428, %v2429
        %v2431 = vrot.slane %v2251, 2
        %v2432 = vsel %vm595, %v2429, %v2431
        %v2435 = vrot.slane %v2236, 1
        %v2436 = vrot.slane %v2173, 1
        %v2437 = vsel %vm514, %v2435, %v2436
        %v2438 = vrot.slane %v2252, 1
        %v2439 = vsel %vm514, %v2436, %v2438
        %v2440 = vrot.slane %v2236, 2
        %v2441 = vrot.slane %v2173, 2
        %v2442 = vsel %vm595, %v2440, %v2441
        %v2443 = vrot.slane %v2252, 2
        %v2444 = vsel %vm595, %v2441, %v2443
        %2445 = vrot.lane.b32.xlu0 %v517, 8
        %v2446 = vpop.permute.xlu0 %2445
        %2447 = vrot.lane.b32.xlu0 %v519, 8
        %v2448 = vpop.permute.xlu0 %2447
        %2449 = vrot.lane.b32.xlu0 %v2285, 8
        %v2450 = vpop.permute.xlu0 %2449
        %2451 = vrot.lane.b32.xlu0 %v2287, 8
        %v2452 = vpop.permute.xlu0 %2451
        %2453 = vrot.lane.b32.xlu0 %v2290, 8
        %v2454 = vpop.permute.xlu0 %2453
        %2455 = vrot.lane.b32.xlu0 %v2292, 8
        %v2456 = vpop.permute.xlu0 %2455
        %2457 = vrot.lane.b32.xlu0 %v2295, 8
        %v2458 = vpop.permute.xlu0 %2457
        %2459 = vrot.lane.b32.xlu0 %v2297, 8
        %v2460 = vpop.permute.xlu0 %2459
        %2461 = vrot.lane.b32.xlu0 %v2300, 8
        %v2462 = vpop.permute.xlu0 %2461
        %2463 = vrot.lane.b32.xlu0 %v2302, 8
        %v2464 = vpop.permute.xlu0 %2463
        %2465 = vrot.lane.b32.xlu0 %v2305, 8
        %v2466 = vpop.permute.xlu0 %2465
        %2467 = vrot.lane.b32.xlu0 %v2307, 8
        %v2468 = vpop.permute.xlu0 %2467
        %2469 = vrot.lane.b32.xlu0 %v2310, 8
        %v2470 = vpop.permute.xlu0 %2469
        %2471 = vrot.lane.b32.xlu0 %v2312, 8
        %v2472 = vpop.permute.xlu0 %2471
        %2473 = vrot.lane.b32.xlu0 %v2315, 8
        %v2474 = vpop.permute.xlu0 %2473
        %2475 = vrot.lane.b32.xlu0 %v2317, 8
        %v2476 = vpop.permute.xlu0 %2475
        %2477 = vrot.lane.b32.xlu0 %v2320, 8
        %v2478 = vpop.permute.xlu0 %2477
        %2479 = vrot.lane.b32.xlu0 %v2322, 8
        %v2480 = vpop.permute.xlu0 %2479
        %2481 = vrot.lane.b32.xlu0 %v2325, 8
        %v2482 = vpop.permute.xlu0 %2481
        %2483 = vrot.lane.b32.xlu0 %v2327, 8
        %v2484 = vpop.permute.xlu0 %2483
        %2485 = vrot.lane.b32.xlu0 %v2330, 8
        %v2486 = vpop.permute.xlu0 %2485
        %2487 = vrot.lane.b32.xlu0 %v2332, 8
        %v2488 = vpop.permute.xlu0 %2487
        %2489 = vrot.lane.b32.xlu0 %v2335, 8
        %v2490 = vpop.permute.xlu0 %2489
        %2491 = vrot.lane.b32.xlu0 %v2337, 8
        %v2492 = vpop.permute.xlu0 %2491
        %2493 = vrot.lane.b32.xlu0 %v2340, 8
        %v2494 = vpop.permute.xlu0 %2493
        %2495 = vrot.lane.b32.xlu0 %v2342, 8
        %v2496 = vpop.permute.xlu0 %2495
        %2497 = vrot.lane.b32.xlu0 %v2345, 8
        %v2498 = vpop.permute.xlu0 %2497
        %2499 = vrot.lane.b32.xlu0 %v2347, 8
        %v2500 = vpop.permute.xlu0 %2499
        %2501 = vrot.lane.b32.xlu0 %v2350, 8
        %v2502 = vpop.permute.xlu0 %2501
        %2503 = vrot.lane.b32.xlu0 %v2352, 8
        %v2504 = vpop.permute.xlu0 %2503
        %2505 = vrot.lane.b32.xlu0 %v2355, 8
        %v2506 = vpop.permute.xlu0 %2505
        %2507 = vrot.lane.b32.xlu0 %v2357, 8
        %v2508 = vpop.permute.xlu0 %2507
        %2541 = vrot.lane.b32.xlu0 %v598, 16
        %v2542 = vpop.permute.xlu0 %2541
        %2543 = vrot.lane.b32.xlu0 %v600, 16
        %v2544 = vpop.permute.xlu0 %2543
        %2545 = vrot.lane.b32.xlu0 %v2360, 16
        %v2546 = vpop.permute.xlu0 %2545
        %2547 = vrot.lane.b32.xlu0 %v2362, 16
        %v2548 = vpop.permute.xlu0 %2547
        %2549 = vrot.lane.b32.xlu0 %v2365, 16
        %v2550 = vpop.permute.xlu0 %2549
        %2551 = vrot.lane.b32.xlu0 %v2367, 16
        %v2552 = vpop.permute.xlu0 %2551
        %2553 = vrot.lane.b32.xlu0 %v2370, 16
        %v2554 = vpop.permute.xlu0 %2553
        %2555 = vrot.lane.b32.xlu0 %v2372, 16
        %v2556 = vpop.permute.xlu0 %2555
        %2557 = vrot.lane.b32.xlu0 %v2375, 16
        %v2558 = vpop.permute.xlu0 %2557
        %2559 = vrot.lane.b32.xlu0 %v2377, 16
        %v2560 = vpop.permute.xlu0 %2559
        %2561 = vrot.lane.b32.xlu0 %v2380, 16
        %v2562 = vpop.permute.xlu0 %2561
        %2563 = vrot.lane.b32.xlu0 %v2382, 16
        %v2564 = vpop.permute.xlu0 %2563
        %2565 = vrot.lane.b32.xlu0 %v2385, 16
        %v2566 = vpop.permute.xlu0 %2565
        %2567 = vrot.lane.b32.xlu0 %v2387, 16
        %v2568 = vpop.permute.xlu0 %2567
        %2569 = vrot.lane.b32.xlu0 %v2390, 16
        %v2570 = vpop.permute.xlu0 %2569
        %2571 = vrot.lane.b32.xlu0 %v2392, 16
        %v2572 = vpop.permute.xlu0 %2571
        %2573 = vrot.lane.b32.xlu0 %v2395, 16
        %v2574 = vpop.permute.xlu0 %2573
        %2575 = vrot.lane.b32.xlu0 %v2397, 16
        %v2576 = vpop.permute.xlu0 %2575
        %2577 = vrot.lane.b32.xlu0 %v2400, 16
        %v2578 = vpop.permute.xlu0 %2577
        %2579 = vrot.lane.b32.xlu0 %v2402, 16
        %v2580 = vpop.permute.xlu0 %2579
        %2581 = vrot.lane.b32.xlu0 %v2405, 16
        %v2582 = vpop.permute.xlu0 %2581
        %2583 = vrot.lane.b32.xlu0 %v2407, 16
        %v2584 = vpop.permute.xlu0 %2583
        %2585 = vrot.lane.b32.xlu0 %v2410, 16
        %v2586 = vpop.permute.xlu0 %2585
        %2587 = vrot.lane.b32.xlu0 %v2412, 16
        %v2588 = vpop.permute.xlu0 %2587
        %2589 = vrot.lane.b32.xlu0 %v2415, 16
        %v2590 = vpop.permute.xlu0 %2589
        %2591 = vrot.lane.b32.xlu0 %v2417, 16
        %v2592 = vpop.permute.xlu0 %2591
        %2593 = vrot.lane.b32.xlu0 %v2420, 16
        %v2594 = vpop.permute.xlu0 %2593
        %2595 = vrot.lane.b32.xlu0 %v2422, 16
        %v2596 = vpop.permute.xlu0 %2595
        %2597 = vrot.lane.b32.xlu0 %v2425, 16
        %v2598 = vpop.permute.xlu0 %2597
        %2599 = vrot.lane.b32.xlu0 %v2427, 16
        %v2600 = vpop.permute.xlu0 %2599
        %2601 = vrot.lane.b32.xlu0 %v2430, 16
        %v2602 = vpop.permute.xlu0 %2601
        %2603 = vrot.lane.b32.xlu0 %v2432, 16
        %v2604 = vpop.permute.xlu0 %2603
        %2637 = vrot.lane.b32.xlu0 %v2221, 24
        %v2638 = vpop.permute.xlu0 %2637
        %2639 = vrot.lane.b32.xlu0 %v2128, 24
        %v2640 = vpop.permute.xlu0 %2639
        %2641 = vrot.lane.b32.xlu0 %v2222, 24
        %v2642 = vpop.permute.xlu0 %2641
        %2643 = vrot.lane.b32.xlu0 %v2131, 24
        %v2644 = vpop.permute.xlu0 %2643
        %2645 = vrot.lane.b32.xlu0 %v2223, 24
        %v2646 = vpop.permute.xlu0 %2645
        %2647 = vrot.lane.b32.xlu0 %v2134, 24
        %v2648 = vpop.permute.xlu0 %2647
        %2649 = vrot.lane.b32.xlu0 %v2224, 24
        %v2650 = vpop.permute.xlu0 %2649
        %2651 = vrot.lane.b32.xlu0 %v2137, 24
        %v2652 = vpop.permute.xlu0 %2651
        %2653 = vrot.lane.b32.xlu0 %v2225, 24
        %v2654 = vpop.permute.xlu0 %2653
        %2655 = vrot.lane.b32.xlu0 %v2140, 24
        %v2656 = vpop.permute.xlu0 %2655
        %2657 = vrot.lane.b32.xlu0 %v2226, 24
        %v2658 = vpop.permute.xlu0 %2657
        %2659 = vrot.lane.b32.xlu0 %v2143, 24
        %v2660 = vpop.permute.xlu0 %2659
        %2661 = vrot.lane.b32.xlu0 %v2227, 24
        %v2662 = vpop.permute.xlu0 %2661
        %2663 = vrot.lane.b32.xlu0 %v2146, 24
        %v2664 = vpop.permute.xlu0 %2663
        %2665 = vrot.lane.b32.xlu0 %v2228, 24
        %v2666 = vpop.permute.xlu0 %2665
        %2667 = vrot.lane.b32.xlu0 %v2149, 24
        %v2668 = vpop.permute.xlu0 %2667
        %2669 = vrot.lane.b32.xlu0 %v2229, 24
        %v2670 = vpop.permute.xlu0 %2669
        %2671 = vrot.lane.b32.xlu0 %v2152, 24
        %v2672 = vpop.permute.xlu0 %2671
        %2673 = vrot.lane.b32.xlu0 %v2230, 24
        %v2674 = vpop.permute.xlu0 %2673
        %2675 = vrot.lane.b32.xlu0 %v2155, 24
        %v2676 = vpop.permute.xlu0 %2675
        %2677 = vrot.lane.b32.xlu0 %v2231, 24
        %v2678 = vpop.permute.xlu0 %2677
        %2679 = vrot.lane.b32.xlu0 %v2158, 24
        %v2680 = vpop.permute.xlu0 %2679
        %2681 = vrot.lane.b32.xlu0 %v2232, 24
        %v2682 = vpop.permute.xlu0 %2681
        %2683 = vrot.lane.b32.xlu0 %v2161, 24
        %v2684 = vpop.permute.xlu0 %2683
        %2685 = vrot.lane.b32.xlu0 %v2233, 24
        %v2686 = vpop.permute.xlu0 %2685
        %2687 = vrot.lane.b32.xlu0 %v2164, 24
        %v2688 = vpop.permute.xlu0 %2687
        %2689 = vrot.lane.b32.xlu0 %v2234, 24
        %v2690 = vpop.permute.xlu0 %2689
        %2691 = vrot.lane.b32.xlu0 %v2167, 24
        %v2692 = vpop.permute.xlu0 %2691
        %2693 = vrot.lane.b32.xlu0 %v2235, 24
        %v2694 = vpop.permute.xlu0 %2693
        %2695 = vrot.lane.b32.xlu0 %v2170, 24
        %v2696 = vpop.permute.xlu0 %2695
        %2697 = vrot.lane.b32.xlu0 %v2236, 24
        %v2698 = vpop.permute.xlu0 %2697
        %2699 = vrot.lane.b32.xlu0 %v2173, 24
        %v2700 = vpop.permute.xlu0 %2699
        %2733 = vrot.lane.b32.xlu0 %v2285, 32
        %v2734 = vpop.permute.xlu0 %2733
        %2735 = vrot.lane.b32.xlu0 %v2287, 32
        %v2736 = vpop.permute.xlu0 %2735
        %2737 = vrot.lane.b32.xlu0 %v2290, 32
        %v2738 = vpop.permute.xlu0 %2737
        %2739 = vrot.lane.b32.xlu0 %v2292, 32
        %v2740 = vpop.permute.xlu0 %2739
        %2741 = vrot.lane.b32.xlu0 %v2295, 32
        %v2742 = vpop.permute.xlu0 %2741
        %2743 = vrot.lane.b32.xlu0 %v2297, 32
        %v2744 = vpop.permute.xlu0 %2743
        %2745 = vrot.lane.b32.xlu0 %v2300, 32
        %v2746 = vpop.permute.xlu0 %2745
        %2747 = vrot.lane.b32.xlu0 %v2302, 32
        %v2748 = vpop.permute.xlu0 %2747
        %2749 = vrot.lane.b32.xlu0 %v2305, 32
        %v2750 = vpop.permute.xlu0 %2749
        %2751 = vrot.lane.b32.xlu0 %v2307, 32
        %v2752 = vpop.permute.xlu0 %2751
        %2753 = vrot.lane.b32.xlu0 %v2310, 32
        %v2754 = vpop.permute.xlu0 %2753
        %2755 = vrot.lane.b32.xlu0 %v2312, 32
        %v2756 = vpop.permute.xlu0 %2755
        %2757 = vrot.lane.b32.xlu0 %v2315, 32
        %v2758 = vpop.permute.xlu0 %2757
        %2759 = vrot.lane.b32.xlu0 %v2317, 32
        %v2760 = vpop.permute.xlu0 %2759
        %2761 = vrot.lane.b32.xlu0 %v2320, 32
        %v2762 = vpop.permute.xlu0 %2761
        %2763 = vrot.lane.b32.xlu0 %v2322, 32
        %v2764 = vpop.permute.xlu0 %2763
        %2765 = vrot.lane.b32.xlu0 %v2325, 32
        %v2766 = vpop.permute.xlu0 %2765
        %2767 = vrot.lane.b32.xlu0 %v2327, 32
        %v2768 = vpop.permute.xlu0 %2767
        %2769 = vrot.lane.b32.xlu0 %v2330, 32
        %v2770 = vpop.permute.xlu0 %2769
        %2771 = vrot.lane.b32.xlu0 %v2332, 32
        %v2772 = vpop.permute.xlu0 %2771
        %2773 = vrot.lane.b32.xlu0 %v2335, 32
        %v2774 = vpop.permute.xlu0 %2773
        %2775 = vrot.lane.b32.xlu0 %v2337, 32
        %v2776 = vpop.permute.xlu0 %2775
        %2777 = vrot.lane.b32.xlu0 %v2340, 32
        %v2778 = vpop.permute.xlu0 %2777
        %2779 = vrot.lane.b32.xlu0 %v2342, 32
        %v2780 = vpop.permute.xlu0 %2779
        %2781 = vrot.lane.b32.xlu0 %v2345, 32
        %v2782 = vpop.permute.xlu0 %2781
        %2783 = vrot.lane.b32.xlu0 %v2347, 32
        %v2784 = vpop.permute.xlu0 %2783
        %2785 = vrot.lane.b32.xlu0 %v2350, 32
        %v2786 = vpop.permute.xlu0 %2785
        %2787 = vrot.lane.b32.xlu0 %v2352, 32
        %v2788 = vpop.permute.xlu0 %2787
        %2789 = vrot.lane.b32.xlu0 %v2355, 32
        %v2790 = vpop.permute.xlu0 %2789
        %2791 = vrot.lane.b32.xlu0 %v2357, 32
        %v2792 = vpop.permute.xlu0 %2791
        %2793 = vrot.lane.b32.xlu0 %v2437, 32
        %v2794 = vpop.permute.xlu0 %2793
        %2795 = vrot.lane.b32.xlu0 %v2439, 32
        %v2796 = vpop.permute.xlu0 %2795
        %2829 = vrot.lane.b32.xlu0 %v2360, 40
        %v2830 = vpop.permute.xlu0 %2829
        %2831 = vrot.lane.b32.xlu0 %v2362, 40
        %v2832 = vpop.permute.xlu0 %2831
        %2833 = vrot.lane.b32.xlu0 %v2365, 40
        %v2834 = vpop.permute.xlu0 %2833
        %2835 = vrot.lane.b32.xlu0 %v2367, 40
        %v2836 = vpop.permute.xlu0 %2835
        %2837 = vrot.lane.b32.xlu0 %v2370, 40
        %v2838 = vpop.permute.xlu0 %2837
        %2839 = vrot.lane.b32.xlu0 %v2372, 40
        %v2840 = vpop.permute.xlu0 %2839
        %2841 = vrot.lane.b32.xlu0 %v2375, 40
        %v2842 = vpop.permute.xlu0 %2841
        %2843 = vrot.lane.b32.xlu0 %v2377, 40
        %v2844 = vpop.permute.xlu0 %2843
        %2845 = vrot.lane.b32.xlu0 %v2380, 40
        %v2846 = vpop.permute.xlu0 %2845
        %2847 = vrot.lane.b32.xlu0 %v2382, 40
        %v2848 = vpop.permute.xlu0 %2847
        %2849 = vrot.lane.b32.xlu0 %v2385, 40
        %v2850 = vpop.permute.xlu0 %2849
        %2851 = vrot.lane.b32.xlu0 %v2387, 40
        %v2852 = vpop.permute.xlu0 %2851
        %2853 = vrot.lane.b32.xlu0 %v2390, 40
        %v2854 = vpop.permute.xlu0 %2853
        %2855 = vrot.lane.b32.xlu0 %v2392, 40
        %v2856 = vpop.permute.xlu0 %2855
        %2857 = vrot.lane.b32.xlu0 %v2395, 40
        %v2858 = vpop.permute.xlu0 %2857
        %2859 = vrot.lane.b32.xlu0 %v2397, 40
        %v2860 = vpop.permute.xlu0 %2859
        %2861 = vrot.lane.b32.xlu0 %v2400, 40
        %v2862 = vpop.permute.xlu0 %2861
        %2863 = vrot.lane.b32.xlu0 %v2402, 40
        %v2864 = vpop.permute.xlu0 %2863
        %2865 = vrot.lane.b32.xlu0 %v2405, 40
        %v2866 = vpop.permute.xlu0 %2865
        %2867 = vrot.lane.b32.xlu0 %v2407, 40
        %v2868 = vpop.permute.xlu0 %2867
        %2869 = vrot.lane.b32.xlu0 %v2410, 40
        %v2870 = vpop.permute.xlu0 %2869
        %2871 = vrot.lane.b32.xlu0 %v2412, 40
        %v2872 = vpop.permute.xlu0 %2871
        %2873 = vrot.lane.b32.xlu0 %v2415, 40
        %v2874 = vpop.permute.xlu0 %2873
        %2875 = vrot.lane.b32.xlu0 %v2417, 40
        %v2876 = vpop.permute.xlu0 %2875
        %2877 = vrot.lane.b32.xlu0 %v2420, 40
        %v2878 = vpop.permute.xlu0 %2877
        %2879 = vrot.lane.b32.xlu0 %v2422, 40
        %v2880 = vpop.permute.xlu0 %2879
        %2881 = vrot.lane.b32.xlu0 %v2425, 40
        %v2882 = vpop.permute.xlu0 %2881
        %2883 = vrot.lane.b32.xlu0 %v2427, 40
        %v2884 = vpop.permute.xlu0 %2883
        %2885 = vrot.lane.b32.xlu0 %v2430, 40
        %v2886 = vpop.permute.xlu0 %2885
        %2887 = vrot.lane.b32.xlu0 %v2432, 40
        %v2888 = vpop.permute.xlu0 %2887
        %2889 = vrot.lane.b32.xlu0 %v2442, 40
        %v2890 = vpop.permute.xlu0 %2889
        %2891 = vrot.lane.b32.xlu0 %v2444, 40
        %v2892 = vpop.permute.xlu0 %2891
        %2925 = vrot.lane.b32.xlu0 %v2222, 48
        %v2926 = vpop.permute.xlu0 %2925
        %2927 = vrot.lane.b32.xlu0 %v2131, 48
        %v2928 = vpop.permute.xlu0 %2927
        %2929 = vrot.lane.b32.xlu0 %v2223, 48
        %v2930 = vpop.permute.xlu0 %2929
        %2931 = vrot.lane.b32.xlu0 %v2134, 48
        %v2932 = vpop.permute.xlu0 %2931
        %2933 = vrot.lane.b32.xlu0 %v2224, 48
        %v2934 = vpop.permute.xlu0 %2933
        %2935 = vrot.lane.b32.xlu0 %v2137, 48
        %v2936 = vpop.permute.xlu0 %2935
        %2937 = vrot.lane.b32.xlu0 %v2225, 48
        %v2938 = vpop.permute.xlu0 %2937
        %2939 = vrot.lane.b32.xlu0 %v2140, 48
        %v2940 = vpop.permute.xlu0 %2939
        %2941 = vrot.lane.b32.xlu0 %v2226, 48
        %v2942 = vpop.permute.xlu0 %2941
        %2943 = vrot.lane.b32.xlu0 %v2143, 48
        %v2944 = vpop.permute.xlu0 %2943
        %2945 = vrot.lane.b32.xlu0 %v2227, 48
        %v2946 = vpop.permute.xlu0 %2945
        %2947 = vrot.lane.b32.xlu0 %v2146, 48
        %v2948 = vpop.permute.xlu0 %2947
        %2949 = vrot.lane.b32.xlu0 %v2228, 48
        %v2950 = vpop.permute.xlu0 %2949
        %2951 = vrot.lane.b32.xlu0 %v2149, 48
        %v2952 = vpop.permute.xlu0 %2951
        %2953 = vrot.lane.b32.xlu0 %v2229, 48
        %v2954 = vpop.permute.xlu0 %2953
        %2955 = vrot.lane.b32.xlu0 %v2152, 48
        %v2956 = vpop.permute.xlu0 %2955
        %2957 = vrot.lane.b32.xlu0 %v2230, 48
        %v2958 = vpop.permute.xlu0 %2957
        %2959 = vrot.lane.b32.xlu0 %v2155, 48
        %v2960 = vpop.permute.xlu0 %2959
        %2961 = vrot.lane.b32.xlu0 %v2231, 48
        %v2962 = vpop.permute.xlu0 %2961
        %2963 = vrot.lane.b32.xlu0 %v2158, 48
        %v2964 = vpop.permute.xlu0 %2963
        %2965 = vrot.lane.b32.xlu0 %v2232, 48
        %v2966 = vpop.permute.xlu0 %2965
        %2967 = vrot.lane.b32.xlu0 %v2161, 48
        %v2968 = vpop.permute.xlu0 %2967
        %2969 = vrot.lane.b32.xlu0 %v2233, 48
        %v2970 = vpop.permute.xlu0 %2969
        %2971 = vrot.lane.b32.xlu0 %v2164, 48
        %v2972 = vpop.permute.xlu0 %2971
        %2973 = vrot.lane.b32.xlu0 %v2234, 48
        %v2974 = vpop.permute.xlu0 %2973
        %2975 = vrot.lane.b32.xlu0 %v2167, 48
        %v2976 = vpop.permute.xlu0 %2975
        %2977 = vrot.lane.b32.xlu0 %v2235, 48
        %v2978 = vpop.permute.xlu0 %2977
        %2979 = vrot.lane.b32.xlu0 %v2170, 48
        %v2980 = vpop.permute.xlu0 %2979
        %2981 = vrot.lane.b32.xlu0 %v2236, 48
        %v2982 = vpop.permute.xlu0 %2981
        %2983 = vrot.lane.b32.xlu0 %v2173, 48
        %v2984 = vpop.permute.xlu0 %2983
        %2985 = vrot.lane.b32.xlu0 %v448, 48
        %v2986 = vpop.permute.xlu0 %2985
        %2987 = vrot.lane.b32.xlu0 %v350, 48
        %v2988 = vpop.permute.xlu0 %2987
        %3021 = vrot.lane.b32.xlu0 %v2290, 56
        %v3022 = vpop.permute.xlu0 %3021
        %3023 = vrot.lane.b32.xlu0 %v2292, 56
        %v3024 = vpop.permute.xlu0 %3023
        %3025 = vrot.lane.b32.xlu0 %v2295, 56
        %v3026 = vpop.permute.xlu0 %3025
        %3027 = vrot.lane.b32.xlu0 %v2297, 56
        %v3028 = vpop.permute.xlu0 %3027
        %3029 = vrot.lane.b32.xlu0 %v2300, 56
        %v3030 = vpop.permute.xlu0 %3029
        %3031 = vrot.lane.b32.xlu0 %v2302, 56
        %v3032 = vpop.permute.xlu0 %3031
        %3033 = vrot.lane.b32.xlu0 %v2305, 56
        %v3034 = vpop.permute.xlu0 %3033
        %3035 = vrot.lane.b32.xlu0 %v2307, 56
        %v3036 = vpop.permute.xlu0 %3035
        %3037 = vrot.lane.b32.xlu0 %v2310, 56
        %v3038 = vpop.permute.xlu0 %3037
        %3039 = vrot.lane.b32.xlu0 %v2312, 56
        %v3040 = vpop.permute.xlu0 %3039
        %3041 = vrot.lane.b32.xlu0 %v2315, 56
        %v3042 = vpop.permute.xlu0 %3041
        %3043 = vrot.lane.b32.xlu0 %v2317, 56
        %v3044 = vpop.permute.xlu0 %3043
        %3045 = vrot.lane.b32.xlu0 %v2320, 56
        %v3046 = vpop.permute.xlu0 %3045
        %3047 = vrot.lane.b32.xlu0 %v2322, 56
        %v3048 = vpop.permute.xlu0 %3047
        %3049 = vrot.lane.b32.xlu0 %v2325, 56
        %v3050 = vpop.permute.xlu0 %3049
        %3051 = vrot.lane.b32.xlu0 %v2327, 56
        %v3052 = vpop.permute.xlu0 %3051
        %3053 = vrot.lane.b32.xlu0 %v2330, 56
        %v3054 = vpop.permute.xlu0 %3053
        %3055 = vrot.lane.b32.xlu0 %v2332, 56
        %v3056 = vpop.permute.xlu0 %3055
        %3057 = vrot.lane.b32.xlu0 %v2335, 56
        %v3058 = vpop.permute.xlu0 %3057
        %3059 = vrot.lane.b32.xlu0 %v2337, 56
        %v3060 = vpop.permute.xlu0 %3059
        %3061 = vrot.lane.b32.xlu0 %v2340, 56
        %v3062 = vpop.permute.xlu0 %3061
        %3063 = vrot.lane.b32.xlu0 %v2342, 56
        %v3064 = vpop.permute.xlu0 %3063
        %3065 = vrot.lane.b32.xlu0 %v2345, 56
        %v3066 = vpop.permute.xlu0 %3065
        %3067 = vrot.lane.b32.xlu0 %v2347, 56
        %v3068 = vpop.permute.xlu0 %3067
        %3069 = vrot.lane.b32.xlu0 %v2350, 56
        %v3070 = vpop.permute.xlu0 %3069
        %3071 = vrot.lane.b32.xlu0 %v2352, 56
        %v3072 = vpop.permute.xlu0 %3071
        %3073 = vrot.lane.b32.xlu0 %v2355, 56
        %v3074 = vpop.permute.xlu0 %3073
        %3075 = vrot.lane.b32.xlu0 %v2357, 56
        %v3076 = vpop.permute.xlu0 %3075
        %3077 = vrot.lane.b32.xlu0 %v2437, 56
        %v3078 = vpop.permute.xlu0 %3077
        %3079 = vrot.lane.b32.xlu0 %v2439, 56
        %v3080 = vpop.permute.xlu0 %3079
        %3081 = vrot.lane.b32.xlu0 %v517, 56
        %v3082 = vpop.permute.xlu0 %3081
        %3083 = vrot.lane.b32.xlu0 %v519, 56
        %v3084 = vpop.permute.xlu0 %3083
        %3117 = vrot.lane.b32.xlu0 %v2365, 64
        %v3118 = vpop.permute.xlu0 %3117
        %3119 = vrot.lane.b32.xlu0 %v2367, 64
        %v3120 = vpop.permute.xlu0 %3119
        %3121 = vrot.lane.b32.xlu0 %v2370, 64
        %v3122 = vpop.permute.xlu0 %3121
        %3123 = vrot.lane.b32.xlu0 %v2372, 64
        %v3124 = vpop.permute.xlu0 %3123
        %3125 = vrot.lane.b32.xlu0 %v2375, 64
        %v3126 = vpop.permute.xlu0 %3125
        %3127 = vrot.lane.b32.xlu0 %v2377, 64
        %v3128 = vpop.permute.xlu0 %3127
        %3129 = vrot.lane.b32.xlu0 %v2380, 64
        %v3130 = vpop.permute.xlu0 %3129
        %3131 = vrot.lane.b32.xlu0 %v2382, 64
        %v3132 = vpop.permute.xlu0 %3131
        %3133 = vrot.lane.b32.xlu0 %v2385, 64
        %v3134 = vpop.permute.xlu0 %3133
        %3135 = vrot.lane.b32.xlu0 %v2387, 64
        %v3136 = vpop.permute.xlu0 %3135
        %3137 = vrot.lane.b32.xlu0 %v2390, 64
        %v3138 = vpop.permute.xlu0 %3137
        %3139 = vrot.lane.b32.xlu0 %v2392, 64
        %v3140 = vpop.permute.xlu0 %3139
        %3141 = vrot.lane.b32.xlu0 %v2395, 64
        %v3142 = vpop.permute.xlu0 %3141
        %3143 = vrot.lane.b32.xlu0 %v2397, 64
        %v3144 = vpop.permute.xlu0 %3143
        %3145 = vrot.lane.b32.xlu0 %v2400, 64
        %v3146 = vpop.permute.xlu0 %3145
        %3147 = vrot.lane.b32.xlu0 %v2402, 64
        %v3148 = vpop.permute.xlu0 %3147
        %3149 = vrot.lane.b32.xlu0 %v2405, 64
        %v3150 = vpop.permute.xlu0 %3149
        %3151 = vrot.lane.b32.xlu0 %v2407, 64
        %v3152 = vpop.permute.xlu0 %3151
        %3153 = vrot.lane.b32.xlu0 %v2410, 64
        %v3154 = vpop.permute.xlu0 %3153
        %3155 = vrot.lane.b32.xlu0 %v2412, 64
        %v3156 = vpop.permute.xlu0 %3155
        %3157 = vrot.lane.b32.xlu0 %v2415, 64
        %v3158 = vpop.permute.xlu0 %3157
        %3159 = vrot.lane.b32.xlu0 %v2417, 64
        %v3160 = vpop.permute.xlu0 %3159
        %3161 = vrot.lane.b32.xlu0 %v2420, 64
        %v3162 = vpop.permute.xlu0 %3161
        %3163 = vrot.lane.b32.xlu0 %v2422, 64
        %v3164 = vpop.permute.xlu0 %3163
        %3165 = vrot.lane.b32.xlu0 %v2425, 64
        %v3166 = vpop.permute.xlu0 %3165
        %3167 = vrot.lane.b32.xlu0 %v2427, 64
        %v3168 = vpop.permute.xlu0 %3167
        %3169 = vrot.lane.b32.xlu0 %v2430, 64
        %v3170 = vpop.permute.xlu0 %3169
        %3171 = vrot.lane.b32.xlu0 %v2432, 64
        %v3172 = vpop.permute.xlu0 %3171
        %3173 = vrot.lane.b32.xlu0 %v2442, 64
        %v3174 = vpop.permute.xlu0 %3173
        %3175 = vrot.lane.b32.xlu0 %v2444, 64
        %v3176 = vpop.permute.xlu0 %3175
        %3177 = vrot.lane.b32.xlu0 %v598, 64
        %v3178 = vpop.permute.xlu0 %3177
        %3179 = vrot.lane.b32.xlu0 %v600, 64
        %v3180 = vpop.permute.xlu0 %3179
        %v3213 = vsel %vm1489, %v448, %v2446
        %v3214 = vsel %vm1489, %v350, %v2448
        %v3215 = vsel %vm1489, %v2221, %v2450
        %v3216 = vsel %vm1489, %v2128, %v2452
        %v3217 = vsel %vm1489, %v2222, %v2454
        %v3218 = vsel %vm1489, %v2131, %v2456
        %v3219 = vsel %vm1489, %v2223, %v2458
        %v3220 = vsel %vm1489, %v2134, %v2460
        %v3221 = vsel %vm1489, %v2224, %v2462
        %v3222 = vsel %vm1489, %v2137, %v2464
        %v3223 = vsel %vm1489, %v2225, %v2466
        %v3224 = vsel %vm1489, %v2140, %v2468
        %v3225 = vsel %vm1489, %v2226, %v2470
        %v3226 = vsel %vm1489, %v2143, %v2472
        %v3227 = vsel %vm1489, %v2227, %v2474
        %v3228 = vsel %vm1489, %v2146, %v2476
        %v3229 = vsel %vm1489, %v2228, %v2478
        %v3230 = vsel %vm1489, %v2149, %v2480
        %v3231 = vsel %vm1489, %v2229, %v2482
        %v3232 = vsel %vm1489, %v2152, %v2484
        %v3233 = vsel %vm1489, %v2230, %v2486
        %v3234 = vsel %vm1489, %v2155, %v2488
        %v3235 = vsel %vm1489, %v2231, %v2490
        %v3236 = vsel %vm1489, %v2158, %v2492
        %v3237 = vsel %vm1489, %v2232, %v2494
        %v3238 = vsel %vm1489, %v2161, %v2496
        %v3239 = vsel %vm1489, %v2233, %v2498
        %v3240 = vsel %vm1489, %v2164, %v2500
        %v3241 = vsel %vm1489, %v2234, %v2502
        %v3242 = vsel %vm1489, %v2167, %v2504
        %v3243 = vsel %vm1489, %v2235, %v2506
        %v3244 = vsel %vm1489, %v2170, %v2508
        %v3245 = vsel %vm1555, %v3213, %v2542
        %v3246 = vsel %vm1555, %v3214, %v2544
        %v3247 = vsel %vm1555, %v3215, %v2546
        %v3248 = vsel %vm1555, %v3216, %v2548
        %v3249 = vsel %vm1555, %v3217, %v2550
        %v3250 = vsel %vm1555, %v3218, %v2552
        %v3251 = vsel %vm1555, %v3219, %v2554
        %v3252 = vsel %vm1555, %v3220, %v2556
        %v3253 = vsel %vm1555, %v3221, %v2558
        %v3254 = vsel %vm1555, %v3222, %v2560
        %v3255 = vsel %vm1555, %v3223, %v2562
        %v3256 = vsel %vm1555, %v3224, %v2564
        %v3257 = vsel %vm1555, %v3225, %v2566
        %v3258 = vsel %vm1555, %v3226, %v2568
        %v3259 = vsel %vm1555, %v3227, %v2570
        %v3260 = vsel %vm1555, %v3228, %v2572
        %v3261 = vsel %vm1555, %v3229, %v2574
        %v3262 = vsel %vm1555, %v3230, %v2576
        %v3263 = vsel %vm1555, %v3231, %v2578
        %v3264 = vsel %vm1555, %v3232, %v2580
        %v3265 = vsel %vm1555, %v3233, %v2582
        %v3266 = vsel %vm1555, %v3234, %v2584
        %v3267 = vsel %vm1555, %v3235, %v2586
        %v3268 = vsel %vm1555, %v3236, %v2588
        %v3269 = vsel %vm1555, %v3237, %v2590
        %v3270 = vsel %vm1555, %v3238, %v2592
        %v3271 = vsel %vm1555, %v3239, %v2594
        %v3272 = vsel %vm1555, %v3240, %v2596
        %v3273 = vsel %vm1555, %v3241, %v2598
        %v3274 = vsel %vm1555, %v3242, %v2600
        %v3275 = vsel %vm1555, %v3243, %v2602
        %v3276 = vsel %vm1555, %v3244, %v2604
        %v3277 = vsel %vm1621, %v3245, %v2638
        %v3278 = vsel %vm1621, %v3246, %v2640
        %v3279 = vsel %vm1621, %v3247, %v2642
        %v3280 = vsel %vm1621, %v3248, %v2644
        %v3281 = vsel %vm1621, %v3249, %v2646
        %v3282 = vsel %vm1621, %v3250, %v2648
        %v3283 = vsel %vm1621, %v3251, %v2650
        %v3284 = vsel %vm1621, %v3252, %v2652
        %v3285 = vsel %vm1621, %v3253, %v2654
        %v3286 = vsel %vm1621, %v3254, %v2656
        %v3287 = vsel %vm1621, %v3255, %v2658
        %v3288 = vsel %vm1621, %v3256, %v2660
        %v3289 = vsel %vm1621, %v3257, %v2662
        %v3290 = vsel %vm1621, %v3258, %v2664
        %v3291 = vsel %vm1621, %v3259, %v2666
        %v3292 = vsel %vm1621, %v3260, %v2668
        %v3293 = vsel %vm1621, %v3261, %v2670
        %v3294 = vsel %vm1621, %v3262, %v2672
        %v3295 = vsel %vm1621, %v3263, %v2674
        %v3296 = vsel %vm1621, %v3264, %v2676
        %v3297 = vsel %vm1621, %v3265, %v2678
        %v3298 = vsel %vm1621, %v3266, %v2680
        %v3299 = vsel %vm1621, %v3267, %v2682
        %v3300 = vsel %vm1621, %v3268, %v2684
        %v3301 = vsel %vm1621, %v3269, %v2686
        %v3302 = vsel %vm1621, %v3270, %v2688
        %v3303 = vsel %vm1621, %v3271, %v2690
        %v3304 = vsel %vm1621, %v3272, %v2692
        %v3305 = vsel %vm1621, %v3273, %v2694
        %v3306 = vsel %vm1621, %v3274, %v2696
        %v3307 = vsel %vm1621, %v3275, %v2698
        %v3308 = vsel %vm1621, %v3276, %v2700
        %v3309 = vsel %vm1687, %v3277, %v2734
        %v3310 = vsel %vm1687, %v3278, %v2736
        %v3311 = vsel %vm1687, %v3279, %v2738
        %v3312 = vsel %vm1687, %v3280, %v2740
        %v3313 = vsel %vm1687, %v3281, %v2742
        %v3314 = vsel %vm1687, %v3282, %v2744
        %v3315 = vsel %vm1687, %v3283, %v2746
        %v3316 = vsel %vm1687, %v3284, %v2748
        %v3317 = vsel %vm1687, %v3285, %v2750
        %v3318 = vsel %vm1687, %v3286, %v2752
        %v3319 = vsel %vm1687, %v3287, %v2754
        %v3320 = vsel %vm1687, %v3288, %v2756
        %v3321 = vsel %vm1687, %v3289, %v2758
        %v3322 = vsel %vm1687, %v3290, %v2760
        %v3323 = vsel %vm1687, %v3291, %v2762
        %v3324 = vsel %vm1687, %v3292, %v2764
        %v3325 = vsel %vm1687, %v3293, %v2766
        %v3326 = vsel %vm1687, %v3294, %v2768
        %v3327 = vsel %vm1687, %v3295, %v2770
        %v3328 = vsel %vm1687, %v3296, %v2772
        %v3329 = vsel %vm1687, %v3297, %v2774
        %v3330 = vsel %vm1687, %v3298, %v2776
        %v3331 = vsel %vm1687, %v3299, %v2778
        %v3332 = vsel %vm1687, %v3300, %v2780
        %v3333 = vsel %vm1687, %v3301, %v2782
        %v3334 = vsel %vm1687, %v3302, %v2784
        %v3335 = vsel %vm1687, %v3303, %v2786
        %v3336 = vsel %vm1687, %v3304, %v2788
        %v3337 = vsel %vm1687, %v3305, %v2790
        %v3338 = vsel %vm1687, %v3306, %v2792
        %v3339 = vsel %vm1687, %v3307, %v2794
        %v3340 = vsel %vm1687, %v3308, %v2796
        %vm3341 = vcmask 326656
        %v3342 = vsel %vm3341, %v3309, %v2830
        %v3343 = vsel %vm3341, %v3310, %v2832
        %v3344 = vsel %vm3341, %v3311, %v2834
        %v3345 = vsel %vm3341, %v3312, %v2836
        %v3346 = vsel %vm3341, %v3313, %v2838
        %v3347 = vsel %vm3341, %v3314, %v2840
        %v3348 = vsel %vm3341, %v3315, %v2842
        %v3349 = vsel %vm3341, %v3316, %v2844
        %v3350 = vsel %vm3341, %v3317, %v2846
        %v3351 = vsel %vm3341, %v3318, %v2848
        %v3352 = vsel %vm3341, %v3319, %v2850
        %v3353 = vsel %vm3341, %v3320, %v2852
        %v3354 = vsel %vm3341, %v3321, %v2854
        %v3355 = vsel %vm3341, %v3322, %v2856
        %v3356 = vsel %vm3341, %v3323, %v2858
        %v3357 = vsel %vm3341, %v3324, %v2860
        %v3358 = vsel %vm3341, %v3325, %v2862
        %v3359 = vsel %vm3341, %v3326, %v2864
        %v3360 = vsel %vm3341, %v3327, %v2866
        %v3361 = vsel %vm3341, %v3328, %v2868
        %v3362 = vsel %vm3341, %v3329, %v2870
        %v3363 = vsel %vm3341, %v3330, %v2872
        %v3364 = vsel %vm3341, %v3331, %v2874
        %v3365 = vsel %vm3341, %v3332, %v2876
        %v3366 = vsel %vm3341, %v3333, %v2878
        %v3367 = vsel %vm3341, %v3334, %v2880
        %v3368 = vsel %vm3341, %v3335, %v2882
        %v3369 = vsel %vm3341, %v3336, %v2884
        %v3370 = vsel %vm3341, %v3337, %v2886
        %v3371 = vsel %vm3341, %v3338, %v2888
        %v3372 = vsel %vm3341, %v3339, %v2890
        %v3373 = vsel %vm3341, %v3340, %v2892
        %vm3374 = vcmask 392192
        %v3375 = vsel %vm3374, %v3342, %v2926
        %v3376 = vsel %vm3374, %v3343, %v2928
        %v3377 = vsel %vm3374, %v3344, %v2930
        %v3378 = vsel %vm3374, %v3345, %v2932
        %v3379 = vsel %vm3374, %v3346, %v2934
        %v3380 = vsel %vm3374, %v3347, %v2936
        %v3381 = vsel %vm3374, %v3348, %v2938
        %v3382 = vsel %vm3374, %v3349, %v2940
        %v3383 = vsel %vm3374, %v3350, %v2942
        %v3384 = vsel %vm3374, %v3351, %v2944
        %v3385 = vsel %vm3374, %v3352, %v2946
        %v3386 = vsel %vm3374, %v3353, %v2948
        %v3387 = vsel %vm3374, %v3354, %v2950
        %v3388 = vsel %vm3374, %v3355, %v2952
        %v3389 = vsel %vm3374, %v3356, %v2954
        %v3390 = vsel %vm3374, %v3357, %v2956
        %v3391 = vsel %vm3374, %v3358, %v2958
        %v3392 = vsel %vm3374, %v3359, %v2960
        %v3393 = vsel %vm3374, %v3360, %v2962
        %v3394 = vsel %vm3374, %v3361, %v2964
        %v3395 = vsel %vm3374, %v3362, %v2966
        %v3396 = vsel %vm3374, %v3363, %v2968
        %v3397 = vsel %vm3374, %v3364, %v2970
        %v3398 = vsel %vm3374, %v3365, %v2972
        %v3399 = vsel %vm3374, %v3366, %v2974
        %v3400 = vsel %vm3374, %v3367, %v2976
        %v3401 = vsel %vm3374, %v3368, %v2978
        %v3402 = vsel %vm3374, %v3369, %v2980
        %v3403 = vsel %vm3374, %v3370, %v2982
        %v3404 = vsel %vm3374, %v3371, %v2984
        %v3405 = vsel %vm3374, %v3372, %v2986
        %v3406 = vsel %vm3374, %v3373, %v2988
        %vm3407 = vcmask 457728
        %v3408 = vsel %vm3407, %v3375, %v3022
        %v3409 = vsel %vm3407, %v3376, %v3024
        %v3410 = vsel %vm3407, %v3377, %v3026
        %v3411 = vsel %vm3407, %v3378, %v3028
        %v3412 = vsel %vm3407, %v3379, %v3030
        %v3413 = vsel %vm3407, %v3380, %v3032
        %v3414 = vsel %vm3407, %v3381, %v3034
        %v3415 = vsel %vm3407, %v3382, %v3036
        %v3416 = vsel %vm3407, %v3383, %v3038
        %v3417 = vsel %vm3407, %v3384, %v3040
        %v3418 = vsel %vm3407, %v3385, %v3042
        %v3419 = vsel %vm3407, %v3386, %v3044
        %v3420 = vsel %vm3407, %v3387, %v3046
        %v3421 = vsel %vm3407, %v3388, %v3048
        %v3422 = vsel %vm3407, %v3389, %v3050
        %v3423 = vsel %vm3407, %v3390, %v3052
        %v3424 = vsel %vm3407, %v3391, %v3054
        %v3425 = vsel %vm3407, %v3392, %v3056
        %v3426 = vsel %vm3407, %v3393, %v3058
        %v3427 = vsel %vm3407, %v3394, %v3060
        %v3428 = vsel %vm3407, %v3395, %v3062
        %v3429 = vsel %vm3407, %v3396, %v3064
        %v3430 = vsel %vm3407, %v3397, %v3066
        %v3431 = vsel %vm3407, %v3398, %v3068
        %v3432 = vsel %vm3407, %v3399, %v3070
        %v3433 = vsel %vm3407, %v3400, %v3072
        %v3434 = vsel %vm3407, %v3401, %v3074
        %v3435 = vsel %vm3407, %v3402, %v3076
        %v3436 = vsel %vm3407, %v3403, %v3078
        %v3437 = vsel %vm3407, %v3404, %v3080
        %v3438 = vsel %vm3407, %v3405, %v3082
        %v3439 = vsel %vm3407, %v3406, %v3084
        %vm3440 = vcmask 523264
        %v3441 = vsel %vm3440, %v3408, %v3118
        %v3442 = vsel %vm3440, %v3409, %v3120
        %v3443 = vsel %vm3440, %v3410, %v3122
        %v3444 = vsel %vm3440, %v3411, %v3124
        %v3445 = vsel %vm3440, %v3412, %v3126
        %v3446 = vsel %vm3440, %v3413, %v3128
        %v3447 = vsel %vm3440, %v3414, %v3130
        %v3448 = vsel %vm3440, %v3415, %v3132
        %v3449 = vsel %vm3440, %v3416, %v3134
        %v3450 = vsel %vm3440, %v3417, %v3136
        %v3451 = vsel %vm3440, %v3418, %v3138
        %v3452 = vsel %vm3440, %v3419, %v3140
        %v3453 = vsel %vm3440, %v3420, %v3142
        %v3454 = vsel %vm3440, %v3421, %v3144
        %v3455 = vsel %vm3440, %v3422, %v3146
        %v3456 = vsel %vm3440, %v3423, %v3148
        %v3457 = vsel %vm3440, %v3424, %v3150
        %v3458 = vsel %vm3440, %v3425, %v3152
        %v3459 = vsel %vm3440, %v3426, %v3154
        %v3460 = vsel %vm3440, %v3427, %v3156
        %v3461 = vsel %vm3440, %v3428, %v3158
        %v3462 = vsel %vm3440, %v3429, %v3160
        %v3463 = vsel %vm3440, %v3430, %v3162
        %v3464 = vsel %vm3440, %v3431, %v3164
        %v3465 = vsel %vm3440, %v3432, %v3166
        %v3466 = vsel %vm3440, %v3433, %v3168
        %v3467 = vsel %vm3440, %v3434, %v3170
        %v3468 = vsel %vm3440, %v3435, %v3172
        %v3469 = vsel %vm3440, %v3436, %v3174
        %v3470 = vsel %vm3440, %v3437, %v3176
        %v3471 = vsel %vm3440, %v3438, %v3178
        %v3472 = vsel %vm3440, %v3439, %v3180
        %v3474 = vlaneseq
        %v3475 = vshrl.u32 %v3474, 7
        %v3476 = vsub.s32 0, %v3475
        %v3477 = vrot.slane %v2093, %v3476
        %vm3479 = vcmask 588800
        %v3481 = vsel %vm3479, %v3441, 0
        %v3484 = vsel %vm3479, %v3442, 0
        %v3487 = vsel %vm3479, %v3443, 0
        %v3490 = vsel %vm3479, %v3444, 0
        %v3493 = vsel %vm3479, %v3445, 0
        %v3496 = vsel %vm3479, %v3446, 0
        %v3499 = vsel %vm3479, %v3447, 0
        %v3502 = vsel %vm3479, %v3448, 0
        %v3505 = vsel %vm3479, %v3449, 0
        %v3508 = vsel %vm3479, %v3450, 0
        %v3511 = vsel %vm3479, %v3451, 0
        %v3514 = vsel %vm3479, %v3452, 0
        %v3517 = vsel %vm3479, %v3453, 0
        %v3520 = vsel %vm3479, %v3454, 0
        %v3523 = vsel %vm3479, %v3455, 0
        %v3526 = vsel %vm3479, %v3456, 0
        %v3529 = vsel %vm3479, %v3457, 0
        %v3532 = vsel %vm3479, %v3458, 0
        %v3535 = vsel %vm3479, %v3459, 0
        %v3538 = vsel %vm3479, %v3460, 0
        %v3541 = vsel %vm3479, %v3461, 0
        %v3544 = vsel %vm3479, %v3462, 0
        %v3547 = vsel %vm3479, %v3463, 0
        %v3550 = vsel %vm3479, %v3464, 0
        %v3553 = vsel %vm3479, %v3465, 0
        %v3556 = vsel %vm3479, %v3466, 0
        %v3559 = vsel %vm3479, %v3467, 0
        %v3562 = vsel %vm3479, %v3468, 0
        %v3565 = vsel %vm3479, %v3469, 0
        %v3568 = vsel %vm3479, %v3470, 0
        %v3571 = vsel %vm3479, %v3471, 0
        %v3574 = vsel %vm3479, %v3472, 0
        %3576 = vmatprep.subr.mxu0 0.0
        %3577 = vmatpush1.msra.mxu0 %v2084
        %3578 = vmatprep.subr.mxu0 0.0
        %3579 = vmatpush1.msra.mxu0 %v2085
        %3580 = vmatprep.subr.mxu0 0.0
        %3581 = vmatpush1.msra.mxu0 %v2086
        %3582 = vmatprep.subr.mxu0 0.0
        %3583 = vmatpush1.msra.mxu0 %v2087
        %3584 = vmatprep.subr.mxu0 0.0
        %3585 = vmatpush1.msra.mxu0 %v2088
        %3586 = vmatprep.subr.mxu0 0.0
        %3587 = vmatpush1.msra.mxu0 %v2089
        %3588 = vmatprep.subr.mxu0 0.0
        %3589 = vmatpush1.msra.mxu0 %v2090
        %3590 = vmatprep.subr.mxu0 0.0
        %3591 = vmatpush1.msra.mxu0 %v2091
        %3592 = vmatprep.subr.mxu0 0.0
        %3593 = vmatpush1.msra.mxu0 %v2092
        %3594 = vmatprep.subr.mxu0 0.0
        %3595 = vmatpush1.msra.mxu0 0.0
        %3596 = vmatprep.subr.mxu0 0.0
        %3597 = vmatpush1.msra.mxu0 0.0
        %3598 = vmatprep.subr.mxu0 0.0
        %3599 = vmatpush1.msra.mxu0 0.0
        %3600 = vmatprep.subr.mxu0 0.0
        %3601 = vmatpush1.msra.mxu0 0.0
        %3602 = vmatprep.subr.mxu0 0.0
        %3603 = vmatpush1.msra.mxu0 0.0
        %3604 = vmatprep.subr.mxu0 0.0
        %3605 = vmatpush1.msra.mxu0 0.0
        %3606 = vmatprep.subr.mxu0 0.0
        %3607 = vmatpush1.msra.mxu0 0.0
        %3608 = vmatprep.subr.mxu0 0.0
        %3609 = vmatpush1.msra.mxu0 0.0
        %3610 = vmatprep.subr.mxu0 0.0
        %3611 = vmatpush1.msra.mxu0 0.0
        %3612 = vmatprep.subr.mxu0 0.0
        %3613 = vmatpush1.msra.mxu0 0.0
        %3614 = vmatprep.subr.mxu0 0.0
        %3615 = vmatpush1.msra.mxu0 0.0
        %3616 = vmatprep.subr.mxu0 0.0
        %3617 = vmatpush1.msra.mxu0 0.0
        %3618 = vmatprep.subr.mxu0 0.0
        %3619 = vmatpush1.msra.mxu0 0.0
        %3620 = vmatprep.subr.mxu0 0.0
        %3621 = vmatpush1.msra.mxu0 0.0
        %3622 = vmatprep.subr.mxu0 0.0
        %3623 = vmatpush1.msra.mxu0 0.0
        %3624 = vmatprep.subr.mxu0 0.0
        %3625 = vmatpush1.msra.mxu0 0.0
        %3626 = vmatprep.subr.mxu0 0.0
        %3627 = vmatpush1.msra.mxu0 0.0
        %3628 = vmatprep.subr.mxu0 0.0
        %3629 = vmatpush1.msra.mxu0 0.0
        %3630 = vmatprep.subr.mxu0 0.0
        %3631 = vmatpush1.msra.mxu0 0.0
        %3632 = vmatprep.subr.mxu0 0.0
        %3633 = vmatpush1.msra.mxu0 0.0
        %3634 = vmatprep.subr.mxu0 0.0
        %3635 = vmatpush1.msra.mxu0 0.0
        %3636 = vmatprep.subr.mxu0 0.0
        %3637 = vmatpush1.msra.mxu0 0.0
        %3638 = vmatprep.subr.mxu0 0.0
        %3639 = vmatpush1.msra.mxu0 0.0
        %3640 = vmatprep.mubr.f32.mxu0 0.0
        %3641 = vmatmul.mubr.f32.gmra.mrb[0].mxu0 %v3481
        %v3642 = vpop.f32.mrb[0].mxu0
        %v3643 = vadd.f32 %v3477, %v3642
        %v3644 = vpop.f32.mrb[0].mxu0
        %3645 = vmatprep.mubr.f32.mxu0 0.0
        %3646 = vmatmul.mubr.f32.gmra.mrb[0].mxu0 %v3484
        %v3647 = vpop.f32.mrb[0].mxu0
        %v3648 = vadd.f32 %v3477, %v3647
        %v3649 = vpop.f32.mrb[0].mxu0
        %3650 = vmatprep.mubr.f32.mxu0 0.0
        %3651 = vmatmul.mubr.f32.gmra.mrb[0].mxu0 %v3487
        %v3652 = vpop.f32.mrb[0].mxu0
        %v3653 = vadd.f32 %v3477, %v3652
        %v3654 = vpop.f32.mrb[0].mxu0
        %3655 = vmatprep.mubr.f32.mxu0 0.0
        %3656 = vmatmul.mubr.f32.gmra.mrb[0].mxu0 %v3490
        %v3657 = vpop.f32.mrb[0].mxu0
        %v3658 = vadd.f32 %v3477, %v3657
        %v3659 = vpop.f32.mrb[0].mxu0
        %3660 = vmatprep.mubr.f32.mxu0 0.0
        %3661 = vmatmul.mubr.f32.gmra.mrb[0].mxu0 %v3493
        %v3662 = vpop.f32.mrb[0].mxu0
        %v3663 = vadd.f32 %v3477, %v3662
        %v3664 = vpop.f32.mrb[0].mxu0
        %3665 = vmatprep.mubr.f32.mxu0 0.0
        %3666 = vmatmul.mubr.f32.gmra.mrb[0].mxu0 %v3496
        %v3667 = vpop.f32.mrb[0].mxu0
        %v3668 = vadd.f32 %v3477, %v3667
        %v3669 = vpop.f32.mrb[0].mxu0
        %3670 = vmatprep.mubr.f32.mxu0 0.0
        %3671 = vmatmul.mubr.f32.gmra.mrb[0].mxu0 %v3499
        %v3672 = vpop.f32.mrb[0].mxu0
        %v3673 = vadd.f32 %v3477, %v3672
        %v3674 = vpop.f32.mrb[0].mxu0
        %3675 = vmatprep.mubr.f32.mxu0 0.0
        %3676 = vmatmul.mubr.f32.gmra.mrb[0].mxu0 %v3502
        %v3677 = vpop.f32.mrb[0].mxu0
        %v3678 = vadd.f32 %v3477, %v3677
        %v3679 = vpop.f32.mrb[0].mxu0
        %3680 = vmatprep.mubr.f32.mxu0 0.0
        %3681 = vmatmul.mubr.f32.gmra.mrb[0].mxu0 %v3505
        %v3682 = vpop.f32.mrb[0].mxu0
        %v3683 = vadd.f32 %v3477, %v3682
        %v3684 = vpop.f32.mrb[0].mxu0
        %3685 = vmatprep.mubr.f32.mxu0 0.0
        %3686 = vmatmul.mubr.f32.gmra.mrb[0].mxu0 %v3508
        %v3687 = vpop.f32.mrb[0].mxu0
        %v3688 = vadd.f32 %v3477, %v3687
        %v3689 = vpop.f32.mrb[0].mxu0
        %3690 = vmatprep.mubr.f32.mxu0 0.0
        %3691 = vmatmul.mubr.f32.gmra.mrb[0].mxu0 %v3511
        %v3692 = vpop.f32.mrb[0].mxu0
        %v3693 = vadd.f32 %v3477, %v3692
        %v3694 = vpop.f32.mrb[0].mxu0
        %3695 = vmatprep.mubr.f32.mxu0 0.0
        %3696 = vmatmul.mubr.f32.gmra.mrb[0].mxu0 %v3514
        %v3697 = vpop.f32.mrb[0].mxu0
        %v3698 = vadd.f32 %v3477, %v3697
        %v3699 = vpop.f32.mrb[0].mxu0
        %3700 = vmatprep.mubr.f32.mxu0 0.0
        %3701 = vmatmul.mubr.f32.gmra.mrb[0].mxu0 %v3517
        %v3702 = vpop.f32.mrb[0].mxu0
        %v3703 = vadd.f32 %v3477, %v3702
        %v3704 = vpop.f32.mrb[0].mxu0
        %3705 = vmatprep.mubr.f32.mxu0 0.0
        %3706 = vmatmul.mubr.f32.gmra.mrb[0].mxu0 %v3520
        %v3707 = vpop.f32.mrb[0].mxu0
        %v3708 = vadd.f32 %v3477, %v3707
        %v3709 = vpop.f32.mrb[0].mxu0
        %3710 = vmatprep.mubr.f32.mxu0 0.0
        %3711 = vmatmul.mubr.f32.gmra.mrb[0].mxu0 %v3523
        %v3712 = vpop.f32.mrb[0].mxu0
        %v3713 = vadd.f32 %v3477, %v3712
        %v3714 = vpop.f32.mrb[0].mxu0
        %3715 = vmatprep.mubr.f32.mxu0 0.0
        %3716 = vmatmul.mubr.f32.gmra.mrb[0].mxu0 %v3526
        %v3717 = vpop.f32.mrb[0].mxu0
        %v3718 = vadd.f32 %v3477, %v3717
        %v3719 = vpop.f32.mrb[0].mxu0
        %3720 = vmatprep.mubr.f32.mxu0 0.0
        %3721 = vmatmul.mubr.f32.gmra.mrb[0].mxu0 %v3529
        %v3722 = vpop.f32.mrb[0].mxu0
        %v3723 = vadd.f32 %v3477, %v3722
        %v3724 = vpop.f32.mrb[0].mxu0
        %3725 = vmatprep.mubr.f32.mxu0 0.0
        %3726 = vmatmul.mubr.f32.gmra.mrb[0].mxu0 %v3532
        %v3727 = vpop.f32.mrb[0].mxu0
        %v3728 = vadd.f32 %v3477, %v3727
        %v3729 = vpop.f32.mrb[0].mxu0
        %3730 = vmatprep.mubr.f32.mxu0 0.0
        %3731 = vmatmul.mubr.f32.gmra.mrb[0].mxu0 %v3535
        %v3732 = vpop.f32.mrb[0].mxu0
        %v3733 = vadd.f32 %v3477, %v3732
        %v3734 = vpop.f32.mrb[0].mxu0
        %3735 = vmatprep.mubr.f32.mxu0 0.0
        %3736 = vmatmul.mubr.f32.gmra.mrb[0].mxu0 %v3538
        %v3737 = vpop.f32.mrb[0].mxu0
        %v3738 = vadd.f32 %v3477, %v3737
        %v3739 = vpop.f32.mrb[0].mxu0
        %3740 = vmatprep.mubr.f32.mxu0 0.0
        %3741 = vmatmul.mubr.f32.gmra.mrb[0].mxu0 %v3541
        %v3742 = vpop.f32.mrb[0].mxu0
        %v3743 = vadd.f32 %v3477, %v3742
        %v3744 = vpop.f32.mrb[0].mxu0
        %3745 = vmatprep.mubr.f32.mxu0 0.0
        %3746 = vmatmul.mubr.f32.gmra.mrb[0].mxu0 %v3544
        %v3747 = vpop.f32.mrb[0].mxu0
        %v3748 = vadd.f32 %v3477, %v3747
        %v3749 = vpop.f32.mrb[0].mxu0
        %3750 = vmatprep.mubr.f32.mxu0 0.0
        %3751 = vmatmul.mubr.f32.gmra.mrb[0].mxu0 %v3547
        %v3752 = vpop.f32.mrb[0].mxu0
        %v3753 = vadd.f32 %v3477, %v3752
        %v3754 = vpop.f32.mrb[0].mxu0
        %3755 = vmatprep.mubr.f32.mxu0 0.0
        %3756 = vmatmul.mubr.f32.gmra.mrb[0].mxu0 %v3550
        %v3757 = vpop.f32.mrb[0].mxu0
        %v3758 = vadd.f32 %v3477, %v3757
        %v3759 = vpop.f32.mrb[0].mxu0
        %3760 = vmatprep.mubr.f32.mxu0 0.0
        %3761 = vmatmul.mubr.f32.gmra.mrb[0].mxu0 %v3553
        %v3762 = vpop.f32.mrb[0].mxu0
        %v3763 = vadd.f32 %v3477, %v3762
        %v3764 = vpop.f32.mrb[0].mxu0
        %3765 = vmatprep.mubr.f32.mxu0 0.0
        %3766 = vmatmul.mubr.f32.gmra.mrb[0].mxu0 %v3556
        %v3767 = vpop.f32.mrb[0].mxu0
        %v3768 = vadd.f32 %v3477, %v3767
        %v3769 = vpop.f32.mrb[0].mxu0
        %3770 = vmatprep.mubr.f32.mxu0 0.0
        %3771 = vmatmul.mubr.f32.gmra.mrb[0].mxu0 %v3559
        %v3772 = vpop.f32.mrb[0].mxu0
        %v3773 = vadd.f32 %v3477, %v3772
        %v3774 = vpop.f32.mrb[0].mxu0
        %3775 = vmatprep.mubr.f32.mxu0 0.0
        %3776 = vmatmul.mubr.f32.gmra.mrb[0].mxu0 %v3562
        %v3777 = vpop.f32.mrb[0].mxu0
        %v3778 = vadd.f32 %v3477, %v3777
        %v3779 = vpop.f32.mrb[0].mxu0
        %3780 = vmatprep.mubr.f32.mxu0 0.0
        %3781 = vmatmul.mubr.f32.gmra.mrb[0].mxu0 %v3565
        %v3782 = vpop.f32.mrb[0].mxu0
        %v3783 = vadd.f32 %v3477, %v3782
        %v3784 = vpop.f32.mrb[0].mxu0
        %3785 = vmatprep.mubr.f32.mxu0 0.0
        %3786 = vmatmul.mubr.f32.gmra.mrb[0].mxu0 %v3568
        %v3787 = vpop.f32.mrb[0].mxu0
        %v3788 = vadd.f32 %v3477, %v3787
        %v3789 = vpop.f32.mrb[0].mxu0
        %3790 = vmatprep.mubr.f32.mxu0 0.0
        %3791 = vmatmul.mubr.f32.gmra.mrb[0].mxu0 %v3571
        %v3792 = vpop.f32.mrb[0].mxu0
        %v3793 = vadd.f32 %v3477, %v3792
        %v3794 = vpop.f32.mrb[0].mxu0
        %3795 = vmatprep.mubr.f32.mxu0 0.0
        %3796 = vmatmul.mubr.f32.gmra.mrb[0].mxu0 %v3574
        %v3797 = vpop.f32.mrb[0].mxu0
        %v3798 = vadd.f32 %v3477, %v3797
        %v3799 = vpop.f32.mrb[0].mxu0
        %3800 = vdwg.mxu0
        %v3801 = vmax.f32 %v3643, 0.0
        %v3802 = vmax.f32 %v3648, 0.0
        %v3803 = vmax.f32 %v3653, 0.0
        %v3804 = vmax.f32 %v3658, 0.0
        %v3805 = vmax.f32 %v3663, 0.0
        %v3806 = vmax.f32 %v3668, 0.0
        %v3807 = vmax.f32 %v3673, 0.0
        %v3808 = vmax.f32 %v3678, 0.0
        %v3809 = vmax.f32 %v3683, 0.0
        %v3810 = vmax.f32 %v3688, 0.0
        %v3811 = vmax.f32 %v3693, 0.0
        %v3812 = vmax.f32 %v3698, 0.0
        %v3813 = vmax.f32 %v3703, 0.0
        %v3814 = vmax.f32 %v3708, 0.0
        %v3815 = vmax.f32 %v3713, 0.0
        %v3816 = vmax.f32 %v3718, 0.0
        %v3817 = vmax.f32 %v3723, 0.0
        %v3818 = vmax.f32 %v3728, 0.0
        %v3819 = vmax.f32 %v3733, 0.0
        %v3820 = vmax.f32 %v3738, 0.0
        %v3821 = vmax.f32 %v3743, 0.0
        %v3822 = vmax.f32 %v3748, 0.0
        %v3823 = vmax.f32 %v3753, 0.0
        %v3824 = vmax.f32 %v3758, 0.0
        %v3825 = vmax.f32 %v3763, 0.0
        %v3826 = vmax.f32 %v3768, 0.0
        %v3827 = vmax.f32 %v3773, 0.0
        %v3828 = vmax.f32 %v3778, 0.0
        %v3829 = vmax.f32 %v3783, 0.0
        %v3830 = vmax.f32 %v3788, 0.0
        %v3831 = vmax.f32 %v3793, 0.0
        %v3832 = vmax.f32 %v3798, 0.0
        %v3833 = vld [vmem:[%s5] sm:$0xff]
        %v3834 = vld [vmem:[%s5 + $0x8] sm:$0xff]
        %v3835 = vld [vmem:[%s5 + $0x10] sm:$0xff]
        %v3836 = vld [vmem:[%s5 + $0x18] sm:$0xff]
        %v3837 = vld [vmem:[%s5 + $0x20] sm:$0xff]
        %v3838 = vld [vmem:[%s5 + $0x28] sm:$0xff]
        %v3839 = vld [vmem:[%s5 + $0x30] sm:$0xff]
        %v3840 = vld [vmem:[%s5 + $0x38] sm:$0xff]
        %v3841 = vld [vmem:[%s5 + $0x40] sm:$0xff]
        %v3842 = vld [vmem:[%s6] sm:$0x1]
        %v3875 = vrot.slane %v3801, 7
        %v3876 = vrot.slane %v3802, 7
        %v3877 = vsel %vm348, %v3875, %v3876
        %v3878 = vrot.slane %v3803, 7
        %v3879 = vrot.slane %v3804, 7
        %v3880 = vsel %vm348, %v3878, %v3879
        %v3881 = vrot.slane %v3805, 7
        %v3882 = vrot.slane %v3806, 7
        %v3883 = vsel %vm348, %v3881, %v3882
        %v3884 = vrot.slane %v3807, 7
        %v3885 = vrot.slane %v3808, 7
        %v3886 = vsel %vm348, %v3884, %v3885
        %v3887 = vrot.slane %v3809, 7
        %v3888 = vrot.slane %v3810, 7
        %v3889 = vsel %vm348, %v3887, %v3888
        %v3890 = vrot.slane %v3811, 7
        %v3891 = vrot.slane %v3812, 7
        %v3892 = vsel %vm348, %v3890, %v3891
        %v3893 = vrot.slane %v3813, 7
        %v3894 = vrot.slane %v3814, 7
        %v3895 = vsel %vm348, %v3893, %v3894
        %v3896 = vrot.slane %v3815, 7
        %v3897 = vrot.slane %v3816, 7
        %v3898 = vsel %vm348, %v3896, %v3897
        %v3899 = vrot.slane %v3817, 7
        %v3900 = vrot.slane %v3818, 7
        %v3901 = vsel %vm348, %v3899, %v3900
        %v3902 = vrot.slane %v3819, 7
        %v3903 = vrot.slane %v3820, 7
        %v3904 = vsel %vm348, %v3902, %v3903
        %v3905 = vrot.slane %v3821, 7
        %v3906 = vrot.slane %v3822, 7
        %v3907 = vsel %vm348, %v3905, %v3906
        %v3908 = vrot.slane %v3823, 7
        %v3909 = vrot.slane %v3824, 7
        %v3910 = vsel %vm348, %v3908, %v3909
        %v3911 = vrot.slane %v3825, 7
        %v3912 = vrot.slane %v3826, 7
        %v3913 = vsel %vm348, %v3911, %v3912
        %v3914 = vrot.slane %v3827, 7
        %v3915 = vrot.slane %v3828, 7
        %v3916 = vsel %vm348, %v3914, %v3915
        %v3917 = vrot.slane %v3829, 7
        %v3918 = vrot.slane %v3830, 7
        %v3919 = vsel %vm348, %v3917, %v3918
        %v3920 = vrot.slane %v3831, 7
        %v3921 = vrot.slane %v3832, 7
        %v3922 = vsel %vm348, %v3920, %v3921
        %v3970 = vsel %vm348, 0.0, %v3875
        %v3971 = vsel %vm348, 0.0, %v3878
        %v3972 = vsel %vm348, 0.0, %v3881
        %v3973 = vsel %vm348, 0.0, %v3884
        %v3974 = vsel %vm348, 0.0, %v3887
        %v3975 = vsel %vm348, 0.0, %v3890
        %v3976 = vsel %vm348, 0.0, %v3893
        %v3977 = vsel %vm348, 0.0, %v3896
        %v3978 = vsel %vm348, 0.0, %v3899
        %v3979 = vsel %vm348, 0.0, %v3902
        %v3980 = vsel %vm348, 0.0, %v3905
        %v3981 = vsel %vm348, 0.0, %v3908
        %v3982 = vsel %vm348, 0.0, %v3911
        %v3983 = vsel %vm348, 0.0, %v3914
        %v3984 = vsel %vm348, 0.0, %v3917
        %v3985 = vsel %vm348, 0.0, %v3920
        %v3986 = vsel %vm348, %v3876, 0.0
        %v3987 = vsel %vm348, %v3879, 0.0
        %v3988 = vsel %vm348, %v3882, 0.0
        %v3989 = vsel %vm348, %v3885, 0.0
        %v3990 = vsel %vm348, %v3888, 0.0
        %v3991 = vsel %vm348, %v3891, 0.0
        %v3992 = vsel %vm348, %v3894, 0.0
        %v3993 = vsel %vm348, %v3897, 0.0
        %v3994 = vsel %vm348, %v3900, 0.0
        %v3995 = vsel %vm348, %v3903, 0.0
        %v3996 = vsel %vm348, %v3906, 0.0
        %v3997 = vsel %vm348, %v3909, 0.0
        %v3998 = vsel %vm348, %v3912, 0.0
        %v3999 = vsel %vm348, %v3915, 0.0
        %v4000 = vsel %vm348, %v3918, 0.0
        %v4001 = vsel %vm348, %v3921, 0.0
        %v4032 = vrot.slane %v3970, 1
        %v4033 = vrot.slane %v3877, 1
        %v4034 = vsel %vm514, %v4032, %v4033
        %v4035 = vrot.slane %v3986, 1
        %v4036 = vsel %vm514, %v4033, %v4035
        %v4037 = vrot.slane %v3971, 1
        %v4038 = vrot.slane %v3880, 1
        %v4039 = vsel %vm514, %v4037, %v4038
        %v4040 = vrot.slane %v3987, 1
        %v4041 = vsel %vm514, %v4038, %v4040
        %v4042 = vrot.slane %v3972, 1
        %v4043 = vrot.slane %v3883, 1
        %v4044 = vsel %vm514, %v4042, %v4043
        %v4045 = vrot.slane %v3988, 1
        %v4046 = vsel %vm514, %v4043, %v4045
        %v4047 = vrot.slane %v3973, 1
        %v4048 = vrot.slane %v3886, 1
        %v4049 = vsel %vm514, %v4047, %v4048
        %v4050 = vrot.slane %v3989, 1
        %v4051 = vsel %vm514, %v4048, %v4050
        %v4052 = vrot.slane %v3974, 1
        %v4053 = vrot.slane %v3889, 1
        %v4054 = vsel %vm514, %v4052, %v4053
        %v4055 = vrot.slane %v3990, 1
        %v4056 = vsel %vm514, %v4053, %v4055
        %v4057 = vrot.slane %v3975, 1
        %v4058 = vrot.slane %v3892, 1
        %v4059 = vsel %vm514, %v4057, %v4058
        %v4060 = vrot.slane %v3991, 1
        %v4061 = vsel %vm514, %v4058, %v4060
        %v4062 = vrot.slane %v3976, 1
        %v4063 = vrot.slane %v3895, 1
        %v4064 = vsel %vm514, %v4062, %v4063
        %v4065 = vrot.slane %v3992, 1
        %v4066 = vsel %vm514, %v4063, %v4065
        %v4067 = vrot.slane %v3977, 1
        %v4068 = vrot.slane %v3898, 1
        %v4069 = vsel %vm514, %v4067, %v4068
        %v4070 = vrot.slane %v3993, 1
        %v4071 = vsel %vm514, %v4068, %v4070
        %v4072 = vrot.slane %v3978, 1
        %v4073 = vrot.slane %v3901, 1
        %v4074 = vsel %vm514, %v4072, %v4073
        %v4075 = vrot.slane %v3994, 1
        %v4076 = vsel %vm514, %v4073, %v4075
        %v4077 = vrot.slane %v3979, 1
        %v4078 = vrot.slane %v3904, 1
        %v4079 = vsel %vm514, %v4077, %v4078
        %v4080 = vrot.slane %v3995, 1
        %v4081 = vsel %vm514, %v4078, %v4080
        %v4082 = vrot.slane %v3980, 1
        %v4083 = vrot.slane %v3907, 1
        %v4084 = vsel %vm514, %v4082, %v4083
        %v4085 = vrot.slane %v3996, 1
        %v4086 = vsel %vm514, %v4083, %v4085
        %v4087 = vrot.slane %v3981, 1
        %v4088 = vrot.slane %v3910, 1
        %v4089 = vsel %vm514, %v4087, %v4088
        %v4090 = vrot.slane %v3997, 1
        %v4091 = vsel %vm514, %v4088, %v4090
        %v4092 = vrot.slane %v3982, 1
        %v4093 = vrot.slane %v3913, 1
        %v4094 = vsel %vm514, %v4092, %v4093
        %v4095 = vrot.slane %v3998, 1
        %v4096 = vsel %vm514, %v4093, %v4095
        %v4097 = vrot.slane %v3983, 1
        %v4098 = vrot.slane %v3916, 1
        %v4099 = vsel %vm514, %v4097, %v4098
        %v4100 = vrot.slane %v3999, 1
        %v4101 = vsel %vm514, %v4098, %v4100
        %v4102 = vrot.slane %v3984, 1
        %v4103 = vrot.slane %v3919, 1
        %v4104 = vsel %vm514, %v4102, %v4103
        %v4105 = vrot.slane %v4000, 1
        %v4106 = vsel %vm514, %v4103, %v4105
        %v4107 = vrot.slane %v3970, 2
        %v4108 = vrot.slane %v3877, 2
        %v4109 = vsel %vm595, %v4107, %v4108
        %v4110 = vrot.slane %v3986, 2
        %v4111 = vsel %vm595, %v4108, %v4110
        %v4112 = vrot.slane %v3971, 2
        %v4113 = vrot.slane %v3880, 2
        %v4114 = vsel %vm595, %v4112, %v4113
        %v4115 = vrot.slane %v3987, 2
        %v4116 = vsel %vm595, %v4113, %v4115
        %v4117 = vrot.slane %v3972, 2
        %v4118 = vrot.slane %v3883, 2
        %v4119 = vsel %vm595, %v4117, %v4118
        %v4120 = vrot.slane %v3988, 2
        %v4121 = vsel %vm595, %v4118, %v4120
        %v4122 = vrot.slane %v3973, 2
        %v4123 = vrot.slane %v3886, 2
        %v4124 = vsel %vm595, %v4122, %v4123
        %v4125 = vrot.slane %v3989, 2
        %v4126 = vsel %vm595, %v4123, %v4125
        %v4127 = vrot.slane %v3974, 2
        %v4128 = vrot.slane %v3889, 2
        %v4129 = vsel %vm595, %v4127, %v4128
        %v4130 = vrot.slane %v3990, 2
        %v4131 = vsel %vm595, %v4128, %v4130
        %v4132 = vrot.slane %v3975, 2
        %v4133 = vrot.slane %v3892, 2
        %v4134 = vsel %vm595, %v4132, %v4133
        %v4135 = vrot.slane %v3991, 2
        %v4136 = vsel %vm595, %v4133, %v4135
        %v4137 = vrot.slane %v3976, 2
        %v4138 = vrot.slane %v3895, 2
        %v4139 = vsel %vm595, %v4137, %v4138
        %v4140 = vrot.slane %v3992, 2
        %v4141 = vsel %vm595, %v4138, %v4140
        %v4142 = vrot.slane %v3977, 2
        %v4143 = vrot.slane %v3898, 2
        %v4144 = vsel %vm595, %v4142, %v4143
        %v4145 = vrot.slane %v3993, 2
        %v4146 = vsel %vm595, %v4143, %v4145
        %v4147 = vrot.slane %v3978, 2
        %v4148 = vrot.slane %v3901, 2
        %v4149 = vsel %vm595, %v4147, %v4148
        %v4150 = vrot.slane %v3994, 2
        %v4151 = vsel %vm595, %v4148, %v4150
        %v4152 = vrot.slane %v3979, 2
        %v4153 = vrot.slane %v3904, 2
        %v4154 = vsel %vm595, %v4152, %v4153
        %v4155 = vrot.slane %v3995, 2
        %v4156 = vsel %vm595, %v4153, %v4155
        %v4157 = vrot.slane %v3980, 2
        %v4158 = vrot.slane %v3907, 2
        %v4159 = vsel %vm595, %v4157, %v4158
        %v4160 = vrot.slane %v3996, 2
        %v4161 = vsel %vm595, %v4158, %v4160
        %v4162 = vrot.slane %v3981, 2
        %v4163 = vrot.slane %v3910, 2
        %v4164 = vsel %vm595, %v4162, %v4163
        %v4165 = vrot.slane %v3997, 2
        %v4166 = vsel %vm595, %v4163, %v4165
        %v4167 = vrot.slane %v3982, 2
        %v4168 = vrot.slane %v3913, 2
        %v4169 = vsel %vm595, %v4167, %v4168
        %v4170 = vrot.slane %v3998, 2
        %v4171 = vsel %vm595, %v4168, %v4170
        %v4172 = vrot.slane %v3983, 2
        %v4173 = vrot.slane %v3916, 2
        %v4174 = vsel %vm595, %v4172, %v4173
        %v4175 = vrot.slane %v3999, 2
        %v4176 = vsel %vm595, %v4173, %v4175
        %v4177 = vrot.slane %v3984, 2
        %v4178 = vrot.slane %v3919, 2
        %v4179 = vsel %vm595, %v4177, %v4178
        %v4180 = vrot.slane %v4000, 2
        %v4181 = vsel %vm595, %v4178, %v4180
        %v4184 = vrot.slane %v3985, 1
        %v4185 = vrot.slane %v3922, 1
        %v4186 = vsel %vm514, %v4184, %v4185
        %v4187 = vrot.slane %v4001, 1
        %v4188 = vsel %vm514, %v4185, %v4187
        %v4189 = vrot.slane %v3985, 2
        %v4190 = vrot.slane %v3922, 2
        %v4191 = vsel %vm595, %v4189, %v4190
        %v4192 = vrot.slane %v4001, 2
        %v4193 = vsel %vm595, %v4190, %v4192
        %4194 = vrot.lane.b32.xlu0 %v4034, 8
        %v4195 = vpop.permute.xlu0 %4194
        %4196 = vrot.lane.b32.xlu0 %v4036, 8
        %v4197 = vpop.permute.xlu0 %4196
        %4198 = vrot.lane.b32.xlu0 %v4039, 8
        %v4199 = vpop.permute.xlu0 %4198
        %4200 = vrot.lane.b32.xlu0 %v4041, 8
        %v4201 = vpop.permute.xlu0 %4200
        %4202 = vrot.lane.b32.xlu0 %v4044, 8
        %v4203 = vpop.permute.xlu0 %4202
        %4204 = vrot.lane.b32.xlu0 %v4046, 8
        %v4205 = vpop.permute.xlu0 %4204
        %4206 = vrot.lane.b32.xlu0 %v4049, 8
        %v4207 = vpop.permute.xlu0 %4206
        %4208 = vrot.lane.b32.xlu0 %v4051, 8
        %v4209 = vpop.permute.xlu0 %4208
        %4210 = vrot.lane.b32.xlu0 %v4054, 8
        %v4211 = vpop.permute.xlu0 %4210
        %4212 = vrot.lane.b32.xlu0 %v4056, 8
        %v4213 = vpop.permute.xlu0 %4212
        %4214 = vrot.lane.b32.xlu0 %v4059, 8
        %v4215 = vpop.permute.xlu0 %4214
        %4216 = vrot.lane.b32.xlu0 %v4061, 8
        %v4217 = vpop.permute.xlu0 %4216
        %4218 = vrot.lane.b32.xlu0 %v4064, 8
        %v4219 = vpop.permute.xlu0 %4218
        %4220 = vrot.lane.b32.xlu0 %v4066, 8
        %v4221 = vpop.permute.xlu0 %4220
        %4222 = vrot.lane.b32.xlu0 %v4069, 8
        %v4223 = vpop.permute.xlu0 %4222
        %4224 = vrot.lane.b32.xlu0 %v4071, 8
        %v4225 = vpop.permute.xlu0 %4224
        %4226 = vrot.lane.b32.xlu0 %v4074, 8
        %v4227 = vpop.permute.xlu0 %4226
        %4228 = vrot.lane.b32.xlu0 %v4076, 8
        %v4229 = vpop.permute.xlu0 %4228
        %4230 = vrot.lane.b32.xlu0 %v4079, 8
        %v4231 = vpop.permute.xlu0 %4230
        %4232 = vrot.lane.b32.xlu0 %v4081, 8
        %v4233 = vpop.permute.xlu0 %4232
        %4234 = vrot.lane.b32.xlu0 %v4084, 8
        %v4235 = vpop.permute.xlu0 %4234
        %4236 = vrot.lane.b32.xlu0 %v4086, 8
        %v4237 = vpop.permute.xlu0 %4236
        %4238 = vrot.lane.b32.xlu0 %v4089, 8
        %v4239 = vpop.permute.xlu0 %4238
        %4240 = vrot.lane.b32.xlu0 %v4091, 8
        %v4241 = vpop.permute.xlu0 %4240
        %4242 = vrot.lane.b32.xlu0 %v4094, 8
        %v4243 = vpop.permute.xlu0 %4242
        %4244 = vrot.lane.b32.xlu0 %v4096, 8
        %v4245 = vpop.permute.xlu0 %4244
        %4246 = vrot.lane.b32.xlu0 %v4099, 8
        %v4247 = vpop.permute.xlu0 %4246
        %4248 = vrot.lane.b32.xlu0 %v4101, 8
        %v4249 = vpop.permute.xlu0 %4248
        %4250 = vrot.lane.b32.xlu0 %v4104, 8
        %v4251 = vpop.permute.xlu0 %4250
        %4252 = vrot.lane.b32.xlu0 %v4106, 8
        %v4253 = vpop.permute.xlu0 %4252
        %4284 = vrot.lane.b32.xlu0 %v4109, 16
        %v4285 = vpop.permute.xlu0 %4284
        %4286 = vrot.lane.b32.xlu0 %v4111, 16
        %v4287 = vpop.permute.xlu0 %4286
        %4288 = vrot.lane.b32.xlu0 %v4114, 16
        %v4289 = vpop.permute.xlu0 %4288
        %4290 = vrot.lane.b32.xlu0 %v4116, 16
        %v4291 = vpop.permute.xlu0 %4290
        %4292 = vrot.lane.b32.xlu0 %v4119, 16
        %v4293 = vpop.permute.xlu0 %4292
        %4294 = vrot.lane.b32.xlu0 %v4121, 16
        %v4295 = vpop.permute.xlu0 %4294
        %4296 = vrot.lane.b32.xlu0 %v4124, 16
        %v4297 = vpop.permute.xlu0 %4296
        %4298 = vrot.lane.b32.xlu0 %v4126, 16
        %v4299 = vpop.permute.xlu0 %4298
        %4300 = vrot.lane.b32.xlu0 %v4129, 16
        %v4301 = vpop.permute.xlu0 %4300
        %4302 = vrot.lane.b32.xlu0 %v4131, 16
        %v4303 = vpop.permute.xlu0 %4302
        %4304 = vrot.lane.b32.xlu0 %v4134, 16
        %v4305 = vpop.permute.xlu0 %4304
        %4306 = vrot.lane.b32.xlu0 %v4136, 16
        %v4307 = vpop.permute.xlu0 %4306
        %4308 = vrot.lane.b32.xlu0 %v4139, 16
        %v4309 = vpop.permute.xlu0 %4308
        %4310 = vrot.lane.b32.xlu0 %v4141, 16
        %v4311 = vpop.permute.xlu0 %4310
        %4312 = vrot.lane.b32.xlu0 %v4144, 16
        %v4313 = vpop.permute.xlu0 %4312
        %4314 = vrot.lane.b32.xlu0 %v4146, 16
        %v4315 = vpop.permute.xlu0 %4314
        %4316 = vrot.lane.b32.xlu0 %v4149, 16
        %v4317 = vpop.permute.xlu0 %4316
        %4318 = vrot.lane.b32.xlu0 %v4151, 16
        %v4319 = vpop.permute.xlu0 %4318
        %4320 = vrot.lane.b32.xlu0 %v4154, 16
        %v4321 = vpop.permute.xlu0 %4320
        %4322 = vrot.lane.b32.xlu0 %v4156, 16
        %v4323 = vpop.permute.xlu0 %4322
        %4324 = vrot.lane.b32.xlu0 %v4159, 16
        %v4325 = vpop.permute.xlu0 %4324
        %4326 = vrot.lane.b32.xlu0 %v4161, 16
        %v4327 = vpop.permute.xlu0 %4326
        %4328 = vrot.lane.b32.xlu0 %v4164, 16
        %v4329 = vpop.permute.xlu0 %4328
        %4330 = vrot.lane.b32.xlu0 %v4166, 16
        %v4331 = vpop.permute.xlu0 %4330
        %4332 = vrot.lane.b32.xlu0 %v4169, 16
        %v4333 = vpop.permute.xlu0 %4332
        %4334 = vrot.lane.b32.xlu0 %v4171, 16
        %v4335 = vpop.permute.xlu0 %4334
        %4336 = vrot.lane.b32.xlu0 %v4174, 16
        %v4337 = vpop.permute.xlu0 %4336
        %4338 = vrot.lane.b32.xlu0 %v4176, 16
        %v4339 = vpop.permute.xlu0 %4338
        %4340 = vrot.lane.b32.xlu0 %v4179, 16
        %v4341 = vpop.permute.xlu0 %4340
        %4342 = vrot.lane.b32.xlu0 %v4181, 16
        %v4343 = vpop.permute.xlu0 %4342
        %4374 = vrot.lane.b32.xlu0 %v3970, 24
        %v4375 = vpop.permute.xlu0 %4374
        %4376 = vrot.lane.b32.xlu0 %v3877, 24
        %v4377 = vpop.permute.xlu0 %4376
        %4378 = vrot.lane.b32.xlu0 %v3971, 24
        %v4379 = vpop.permute.xlu0 %4378
        %4380 = vrot.lane.b32.xlu0 %v3880, 24
        %v4381 = vpop.permute.xlu0 %4380
        %4382 = vrot.lane.b32.xlu0 %v3972, 24
        %v4383 = vpop.permute.xlu0 %4382
        %4384 = vrot.lane.b32.xlu0 %v3883, 24
        %v4385 = vpop.permute.xlu0 %4384
        %4386 = vrot.lane.b32.xlu0 %v3973, 24
        %v4387 = vpop.permute.xlu0 %4386
        %4388 = vrot.lane.b32.xlu0 %v3886, 24
        %v4389 = vpop.permute.xlu0 %4388
        %4390 = vrot.lane.b32.xlu0 %v3974, 24
        %v4391 = vpop.permute.xlu0 %4390
        %4392 = vrot.lane.b32.xlu0 %v3889, 24
        %v4393 = vpop.permute.xlu0 %4392
        %4394 = vrot.lane.b32.xlu0 %v3975, 24
        %v4395 = vpop.permute.xlu0 %4394
        %4396 = vrot.lane.b32.xlu0 %v3892, 24
        %v4397 = vpop.permute.xlu0 %4396
        %4398 = vrot.lane.b32.xlu0 %v3976, 24
        %v4399 = vpop.permute.xlu0 %4398
        %4400 = vrot.lane.b32.xlu0 %v3895, 24
        %v4401 = vpop.permute.xlu0 %4400
        %4402 = vrot.lane.b32.xlu0 %v3977, 24
        %v4403 = vpop.permute.xlu0 %4402
        %4404 = vrot.lane.b32.xlu0 %v3898, 24
        %v4405 = vpop.permute.xlu0 %4404
        %4406 = vrot.lane.b32.xlu0 %v3978, 24
        %v4407 = vpop.permute.xlu0 %4406
        %4408 = vrot.lane.b32.xlu0 %v3901, 24
        %v4409 = vpop.permute.xlu0 %4408
        %4410 = vrot.lane.b32.xlu0 %v3979, 24
        %v4411 = vpop.permute.xlu0 %4410
        %4412 = vrot.lane.b32.xlu0 %v3904, 24
        %v4413 = vpop.permute.xlu0 %4412
        %4414 = vrot.lane.b32.xlu0 %v3980, 24
        %v4415 = vpop.permute.xlu0 %4414
        %4416 = vrot.lane.b32.xlu0 %v3907, 24
        %v4417 = vpop.permute.xlu0 %4416
        %4418 = vrot.lane.b32.xlu0 %v3981, 24
        %v4419 = vpop.permute.xlu0 %4418
        %4420 = vrot.lane.b32.xlu0 %v3910, 24
        %v4421 = vpop.permute.xlu0 %4420
        %4422 = vrot.lane.b32.xlu0 %v3982, 24
        %v4423 = vpop.permute.xlu0 %4422
        %4424 = vrot.lane.b32.xlu0 %v3913, 24
        %v4425 = vpop.permute.xlu0 %4424
        %4426 = vrot.lane.b32.xlu0 %v3983, 24
        %v4427 = vpop.permute.xlu0 %4426
        %4428 = vrot.lane.b32.xlu0 %v3916, 24
        %v4429 = vpop.permute.xlu0 %4428
        %4430 = vrot.lane.b32.xlu0 %v3984, 24
        %v4431 = vpop.permute.xlu0 %4430
        %4432 = vrot.lane.b32.xlu0 %v3919, 24
        %v4433 = vpop.permute.xlu0 %4432
        %4434 = vrot.lane.b32.xlu0 %v3985, 24
        %v4435 = vpop.permute.xlu0 %4434
        %4436 = vrot.lane.b32.xlu0 %v3922, 24
        %v4437 = vpop.permute.xlu0 %4436
        %4470 = vrot.lane.b32.xlu0 %v4034, 32
        %v4471 = vpop.permute.xlu0 %4470
        %4472 = vrot.lane.b32.xlu0 %v4036, 32
        %v4473 = vpop.permute.xlu0 %4472
        %4474 = vrot.lane.b32.xlu0 %v4039, 32
        %v4475 = vpop.permute.xlu0 %4474
        %4476 = vrot.lane.b32.xlu0 %v4041, 32
        %v4477 = vpop.permute.xlu0 %4476
        %4478 = vrot.lane.b32.xlu0 %v4044, 32
        %v4479 = vpop.permute.xlu0 %4478
        %4480 = vrot.lane.b32.xlu0 %v4046, 32
        %v4481 = vpop.permute.xlu0 %4480
        %4482 = vrot.lane.b32.xlu0 %v4049, 32
        %v4483 = vpop.permute.xlu0 %4482
        %4484 = vrot.lane.b32.xlu0 %v4051, 32
        %v4485 = vpop.permute.xlu0 %4484
        %4486 = vrot.lane.b32.xlu0 %v4054, 32
        %v4487 = vpop.permute.xlu0 %4486
        %4488 = vrot.lane.b32.xlu0 %v4056, 32
        %v4489 = vpop.permute.xlu0 %4488
        %4490 = vrot.lane.b32.xlu0 %v4059, 32
        %v4491 = vpop.permute.xlu0 %4490
        %4492 = vrot.lane.b32.xlu0 %v4061, 32
        %v4493 = vpop.permute.xlu0 %4492
        %4494 = vrot.lane.b32.xlu0 %v4064, 32
        %v4495 = vpop.permute.xlu0 %4494
        %4496 = vrot.lane.b32.xlu0 %v4066, 32
        %v4497 = vpop.permute.xlu0 %4496
        %4498 = vrot.lane.b32.xlu0 %v4069, 32
        %v4499 = vpop.permute.xlu0 %4498
        %4500 = vrot.lane.b32.xlu0 %v4071, 32
        %v4501 = vpop.permute.xlu0 %4500
        %4502 = vrot.lane.b32.xlu0 %v4074, 32
        %v4503 = vpop.permute.xlu0 %4502
        %4504 = vrot.lane.b32.xlu0 %v4076, 32
        %v4505 = vpop.permute.xlu0 %4504
        %4506 = vrot.lane.b32.xlu0 %v4079, 32
        %v4507 = vpop.permute.xlu0 %4506
        %4508 = vrot.lane.b32.xlu0 %v4081, 32
        %v4509 = vpop.permute.xlu0 %4508
        %4510 = vrot.lane.b32.xlu0 %v4084, 32
        %v4511 = vpop.permute.xlu0 %4510
        %4512 = vrot.lane.b32.xlu0 %v4086, 32
        %v4513 = vpop.permute.xlu0 %4512
        %4514 = vrot.lane.b32.xlu0 %v4089, 32
        %v4515 = vpop.permute.xlu0 %4514
        %4516 = vrot.lane.b32.xlu0 %v4091, 32
        %v4517 = vpop.permute.xlu0 %4516
        %4518 = vrot.lane.b32.xlu0 %v4094, 32
        %v4519 = vpop.permute.xlu0 %4518
        %4520 = vrot.lane.b32.xlu0 %v4096, 32
        %v4521 = vpop.permute.xlu0 %4520
        %4522 = vrot.lane.b32.xlu0 %v4099, 32
        %v4523 = vpop.permute.xlu0 %4522
        %4524 = vrot.lane.b32.xlu0 %v4101, 32
        %v4525 = vpop.permute.xlu0 %4524
        %4526 = vrot.lane.b32.xlu0 %v4104, 32
        %v4527 = vpop.permute.xlu0 %4526
        %4528 = vrot.lane.b32.xlu0 %v4106, 32
        %v4529 = vpop.permute.xlu0 %4528
        %4530 = vrot.lane.b32.xlu0 %v4186, 32
        %v4531 = vpop.permute.xlu0 %4530
        %4532 = vrot.lane.b32.xlu0 %v4188, 32
        %v4533 = vpop.permute.xlu0 %4532
        %4566 = vrot.lane.b32.xlu0 %v4109, 40
        %v4567 = vpop.permute.xlu0 %4566
        %4568 = vrot.lane.b32.xlu0 %v4111, 40
        %v4569 = vpop.permute.xlu0 %4568
        %4570 = vrot.lane.b32.xlu0 %v4114, 40
        %v4571 = vpop.permute.xlu0 %4570
        %4572 = vrot.lane.b32.xlu0 %v4116, 40
        %v4573 = vpop.permute.xlu0 %4572
        %4574 = vrot.lane.b32.xlu0 %v4119, 40
        %v4575 = vpop.permute.xlu0 %4574
        %4576 = vrot.lane.b32.xlu0 %v4121, 40
        %v4577 = vpop.permute.xlu0 %4576
        %4578 = vrot.lane.b32.xlu0 %v4124, 40
        %v4579 = vpop.permute.xlu0 %4578
        %4580 = vrot.lane.b32.xlu0 %v4126, 40
        %v4581 = vpop.permute.xlu0 %4580
        %4582 = vrot.lane.b32.xlu0 %v4129, 40
        %v4583 = vpop.permute.xlu0 %4582
        %4584 = vrot.lane.b32.xlu0 %v4131, 40
        %v4585 = vpop.permute.xlu0 %4584
        %4586 = vrot.lane.b32.xlu0 %v4134, 40
        %v4587 = vpop.permute.xlu0 %4586
        %4588 = vrot.lane.b32.xlu0 %v4136, 40
        %v4589 = vpop.permute.xlu0 %4588
        %4590 = vrot.lane.b32.xlu0 %v4139, 40
        %v4591 = vpop.permute.xlu0 %4590
        %4592 = vrot.lane.b32.xlu0 %v4141, 40
        %v4593 = vpop.permute.xlu0 %4592
        %4594 = vrot.lane.b32.xlu0 %v4144, 40
        %v4595 = vpop.permute.xlu0 %4594
        %4596 = vrot.lane.b32.xlu0 %v4146, 40
        %v4597 = vpop.permute.xlu0 %4596
        %4598 = vrot.lane.b32.xlu0 %v4149, 40
        %v4599 = vpop.permute.xlu0 %4598
        %4600 = vrot.lane.b32.xlu0 %v4151, 40
        %v4601 = vpop.permute.xlu0 %4600
        %4602 = vrot.lane.b32.xlu0 %v4154, 40
        %v4603 = vpop.permute.xlu0 %4602
        %4604 = vrot.lane.b32.xlu0 %v4156, 40
        %v4605 = vpop.permute.xlu0 %4604
        %4606 = vrot.lane.b32.xlu0 %v4159, 40
        %v4607 = vpop.permute.xlu0 %4606
        %4608 = vrot.lane.b32.xlu0 %v4161, 40
        %v4609 = vpop.permute.xlu0 %4608
        %4610 = vrot.lane.b32.xlu0 %v4164, 40
        %v4611 = vpop.permute.xlu0 %4610
        %4612 = vrot.lane.b32.xlu0 %v4166, 40
        %v4613 = vpop.permute.xlu0 %4612
        %4614 = vrot.lane.b32.xlu0 %v4169, 40
        %v4615 = vpop.permute.xlu0 %4614
        %4616 = vrot.lane.b32.xlu0 %v4171, 40
        %v4617 = vpop.permute.xlu0 %4616
        %4618 = vrot.lane.b32.xlu0 %v4174, 40
        %v4619 = vpop.permute.xlu0 %4618
        %4620 = vrot.lane.b32.xlu0 %v4176, 40
        %v4621 = vpop.permute.xlu0 %4620
        %4622 = vrot.lane.b32.xlu0 %v4179, 40
        %v4623 = vpop.permute.xlu0 %4622
        %4624 = vrot.lane.b32.xlu0 %v4181, 40
        %v4625 = vpop.permute.xlu0 %4624
        %4626 = vrot.lane.b32.xlu0 %v4191, 40
        %v4627 = vpop.permute.xlu0 %4626
        %4628 = vrot.lane.b32.xlu0 %v4193, 40
        %v4629 = vpop.permute.xlu0 %4628
        %4662 = vrot.lane.b32.xlu0 %v3971, 48
        %v4663 = vpop.permute.xlu0 %4662
        %4664 = vrot.lane.b32.xlu0 %v3880, 48
        %v4665 = vpop.permute.xlu0 %4664
        %4666 = vrot.lane.b32.xlu0 %v3972, 48
        %v4667 = vpop.permute.xlu0 %4666
        %4668 = vrot.lane.b32.xlu0 %v3883, 48
        %v4669 = vpop.permute.xlu0 %4668
        %4670 = vrot.lane.b32.xlu0 %v3973, 48
        %v4671 = vpop.permute.xlu0 %4670
        %4672 = vrot.lane.b32.xlu0 %v3886, 48
        %v4673 = vpop.permute.xlu0 %4672
        %4674 = vrot.lane.b32.xlu0 %v3974, 48
        %v4675 = vpop.permute.xlu0 %4674
        %4676 = vrot.lane.b32.xlu0 %v3889, 48
        %v4677 = vpop.permute.xlu0 %4676
        %4678 = vrot.lane.b32.xlu0 %v3975, 48
        %v4679 = vpop.permute.xlu0 %4678
        %4680 = vrot.lane.b32.xlu0 %v3892, 48
        %v4681 = vpop.permute.xlu0 %4680
        %4682 = vrot.lane.b32.xlu0 %v3976, 48
        %v4683 = vpop.permute.xlu0 %4682
        %4684 = vrot.lane.b32.xlu0 %v3895, 48
        %v4685 = vpop.permute.xlu0 %4684
        %4686 = vrot.lane.b32.xlu0 %v3977, 48
        %v4687 = vpop.permute.xlu0 %4686
        %4688 = vrot.lane.b32.xlu0 %v3898, 48
        %v4689 = vpop.permute.xlu0 %4688
        %4690 = vrot.lane.b32.xlu0 %v3978, 48
        %v4691 = vpop.permute.xlu0 %4690
        %4692 = vrot.lane.b32.xlu0 %v3901, 48
        %v4693 = vpop.permute.xlu0 %4692
        %4694 = vrot.lane.b32.xlu0 %v3979, 48
        %v4695 = vpop.permute.xlu0 %4694
        %4696 = vrot.lane.b32.xlu0 %v3904, 48
        %v4697 = vpop.permute.xlu0 %4696
        %4698 = vrot.lane.b32.xlu0 %v3980, 48
        %v4699 = vpop.permute.xlu0 %4698
        %4700 = vrot.lane.b32.xlu0 %v3907, 48
        %v4701 = vpop.permute.xlu0 %4700
        %4702 = vrot.lane.b32.xlu0 %v3981, 48
        %v4703 = vpop.permute.xlu0 %4702
        %4704 = vrot.lane.b32.xlu0 %v3910, 48
        %v4705 = vpop.permute.xlu0 %4704
        %4706 = vrot.lane.b32.xlu0 %v3982, 48
        %v4707 = vpop.permute.xlu0 %4706
        %4708 = vrot.lane.b32.xlu0 %v3913, 48
        %v4709 = vpop.permute.xlu0 %4708
        %4710 = vrot.lane.b32.xlu0 %v3983, 48
        %v4711 = vpop.permute.xlu0 %4710
        %4712 = vrot.lane.b32.xlu0 %v3916, 48
        %v4713 = vpop.permute.xlu0 %4712
        %4714 = vrot.lane.b32.xlu0 %v3984, 48
        %v4715 = vpop.permute.xlu0 %4714
        %4716 = vrot.lane.b32.xlu0 %v3919, 48
        %v4717 = vpop.permute.xlu0 %4716
        %4718 = vrot.lane.b32.xlu0 %v3985, 48
        %v4719 = vpop.permute.xlu0 %4718
        %4720 = vrot.lane.b32.xlu0 %v3922, 48
        %v4721 = vpop.permute.xlu0 %4720
        %4752 = vrot.lane.b32.xlu0 %v4039, 56
        %v4753 = vpop.permute.xlu0 %4752
        %4754 = vrot.lane.b32.xlu0 %v4041, 56
        %v4755 = vpop.permute.xlu0 %4754
        %4756 = vrot.lane.b32.xlu0 %v4044, 56
        %v4757 = vpop.permute.xlu0 %4756
        %4758 = vrot.lane.b32.xlu0 %v4046, 56
        %v4759 = vpop.permute.xlu0 %4758
        %4760 = vrot.lane.b32.xlu0 %v4049, 56
        %v4761 = vpop.permute.xlu0 %4760
        %4762 = vrot.lane.b32.xlu0 %v4051, 56
        %v4763 = vpop.permute.xlu0 %4762
        %4764 = vrot.lane.b32.xlu0 %v4054, 56
        %v4765 = vpop.permute.xlu0 %4764
        %4766 = vrot.lane.b32.xlu0 %v4056, 56
        %v4767 = vpop.permute.xlu0 %4766
        %4768 = vrot.lane.b32.xlu0 %v4059, 56
        %v4769 = vpop.permute.xlu0 %4768
        %4770 = vrot.lane.b32.xlu0 %v4061, 56
        %v4771 = vpop.permute.xlu0 %4770
        %4772 = vrot.lane.b32.xlu0 %v4064, 56
        %v4773 = vpop.permute.xlu0 %4772
        %4774 = vrot.lane.b32.xlu0 %v4066, 56
        %v4775 = vpop.permute.xlu0 %4774
        %4776 = vrot.lane.b32.xlu0 %v4069, 56
        %v4777 = vpop.permute.xlu0 %4776
        %4778 = vrot.lane.b32.xlu0 %v4071, 56
        %v4779 = vpop.permute.xlu0 %4778
        %4780 = vrot.lane.b32.xlu0 %v4074, 56
        %v4781 = vpop.permute.xlu0 %4780
        %4782 = vrot.lane.b32.xlu0 %v4076, 56
        %v4783 = vpop.permute.xlu0 %4782
        %4784 = vrot.lane.b32.xlu0 %v4079, 56
        %v4785 = vpop.permute.xlu0 %4784
        %4786 = vrot.lane.b32.xlu0 %v4081, 56
        %v4787 = vpop.permute.xlu0 %4786
        %4788 = vrot.lane.b32.xlu0 %v4084, 56
        %v4789 = vpop.permute.xlu0 %4788
        %4790 = vrot.lane.b32.xlu0 %v4086, 56
        %v4791 = vpop.permute.xlu0 %4790
        %4792 = vrot.lane.b32.xlu0 %v4089, 56
        %v4793 = vpop.permute.xlu0 %4792
        %4794 = vrot.lane.b32.xlu0 %v4091, 56
        %v4795 = vpop.permute.xlu0 %4794
        %4796 = vrot.lane.b32.xlu0 %v4094, 56
        %v4797 = vpop.permute.xlu0 %4796
        %4798 = vrot.lane.b32.xlu0 %v4096, 56
        %v4799 = vpop.permute.xlu0 %4798
        %4800 = vrot.lane.b32.xlu0 %v4099, 56
        %v4801 = vpop.permute.xlu0 %4800
        %4802 = vrot.lane.b32.xlu0 %v4101, 56
        %v4803 = vpop.permute.xlu0 %4802
        %4804 = vrot.lane.b32.xlu0 %v4104, 56
        %v4805 = vpop.permute.xlu0 %4804
        %4806 = vrot.lane.b32.xlu0 %v4106, 56
        %v4807 = vpop.permute.xlu0 %4806
        %4808 = vrot.lane.b32.xlu0 %v4186, 56
        %v4809 = vpop.permute.xlu0 %4808
        %4810 = vrot.lane.b32.xlu0 %v4188, 56
        %v4811 = vpop.permute.xlu0 %4810
        %4842 = vrot.lane.b32.xlu0 %v4114, 64
        %v4843 = vpop.permute.xlu0 %4842
        %4844 = vrot.lane.b32.xlu0 %v4116, 64
        %v4845 = vpop.permute.xlu0 %4844
        %4846 = vrot.lane.b32.xlu0 %v4119, 64
        %v4847 = vpop.permute.xlu0 %4846
        %4848 = vrot.lane.b32.xlu0 %v4121, 64
        %v4849 = vpop.permute.xlu0 %4848
        %4850 = vrot.lane.b32.xlu0 %v4124, 64
        %v4851 = vpop.permute.xlu0 %4850
        %4852 = vrot.lane.b32.xlu0 %v4126, 64
        %v4853 = vpop.permute.xlu0 %4852
        %4854 = vrot.lane.b32.xlu0 %v4129, 64
        %v4855 = vpop.permute.xlu0 %4854
        %4856 = vrot.lane.b32.xlu0 %v4131, 64
        %v4857 = vpop.permute.xlu0 %4856
        %4858 = vrot.lane.b32.xlu0 %v4134, 64
        %v4859 = vpop.permute.xlu0 %4858
        %4860 = vrot.lane.b32.xlu0 %v4136, 64
        %v4861 = vpop.permute.xlu0 %4860
        %4862 = vrot.lane.b32.xlu0 %v4139, 64
        %v4863 = vpop.permute.xlu0 %4862
        %4864 = vrot.lane.b32.xlu0 %v4141, 64
        %v4865 = vpop.permute.xlu0 %4864
        %4866 = vrot.lane.b32.xlu0 %v4144, 64
        %v4867 = vpop.permute.xlu0 %4866
        %4868 = vrot.lane.b32.xlu0 %v4146, 64
        %v4869 = vpop.permute.xlu0 %4868
        %4870 = vrot.lane.b32.xlu0 %v4149, 64
        %v4871 = vpop.permute.xlu0 %4870
        %4872 = vrot.lane.b32.xlu0 %v4151, 64
        %v4873 = vpop.permute.xlu0 %4872
        %4874 = vrot.lane.b32.xlu0 %v4154, 64
        %v4875 = vpop.permute.xlu0 %4874
        %4876 = vrot.lane.b32.xlu0 %v4156, 64
        %v4877 = vpop.permute.xlu0 %4876
        %4878 = vrot.lane.b32.xlu0 %v4159, 64
        %v4879 = vpop.permute.xlu0 %4878
        %4880 = vrot.lane.b32.xlu0 %v4161, 64
        %v4881 = vpop.permute.xlu0 %4880
        %4882 = vrot.lane.b32.xlu0 %v4164, 64
        %v4883 = vpop.permute.xlu0 %4882
        %4884 = vrot.lane.b32.xlu0 %v4166, 64
        %v4885 = vpop.permute.xlu0 %4884
        %4886 = vrot.lane.b32.xlu0 %v4169, 64
        %v4887 = vpop.permute.xlu0 %4886
        %4888 = vrot.lane.b32.xlu0 %v4171, 64
        %v4889 = vpop.permute.xlu0 %4888
        %4890 = vrot.lane.b32.xlu0 %v4174, 64
        %v4891 = vpop.permute.xlu0 %4890
        %4892 = vrot.lane.b32.xlu0 %v4176, 64
        %v4893 = vpop.permute.xlu0 %4892
        %4894 = vrot.lane.b32.xlu0 %v4179, 64
        %v4895 = vpop.permute.xlu0 %4894
        %4896 = vrot.lane.b32.xlu0 %v4181, 64
        %v4897 = vpop.permute.xlu0 %4896
        %4898 = vrot.lane.b32.xlu0 %v4191, 64
        %v4899 = vpop.permute.xlu0 %4898
        %4900 = vrot.lane.b32.xlu0 %v4193, 64
        %v4901 = vpop.permute.xlu0 %4900
        %v4932 = vsel %vm1489, %v3970, %v4195
        %v4933 = vsel %vm1489, %v3877, %v4197
        %v4934 = vsel %vm1489, %v3971, %v4199
        %v4935 = vsel %vm1489, %v3880, %v4201
        %v4936 = vsel %vm1489, %v3972, %v4203
        %v4937 = vsel %vm1489, %v3883, %v4205
        %v4938 = vsel %vm1489, %v3973, %v4207
        %v4939 = vsel %vm1489, %v3886, %v4209
        %v4940 = vsel %vm1489, %v3974, %v4211
        %v4941 = vsel %vm1489, %v3889, %v4213
        %v4942 = vsel %vm1489, %v3975, %v4215
        %v4943 = vsel %vm1489, %v3892, %v4217
        %v4944 = vsel %vm1489, %v3976, %v4219
        %v4945 = vsel %vm1489, %v3895, %v4221
        %v4946 = vsel %vm1489, %v3977, %v4223
        %v4947 = vsel %vm1489, %v3898, %v4225
        %v4948 = vsel %vm1489, %v3978, %v4227
        %v4949 = vsel %vm1489, %v3901, %v4229
        %v4950 = vsel %vm1489, %v3979, %v4231
        %v4951 = vsel %vm1489, %v3904, %v4233
        %v4952 = vsel %vm1489, %v3980, %v4235
        %v4953 = vsel %vm1489, %v3907, %v4237
        %v4954 = vsel %vm1489, %v3981, %v4239
        %v4955 = vsel %vm1489, %v3910, %v4241
        %v4956 = vsel %vm1489, %v3982, %v4243
        %v4957 = vsel %vm1489, %v3913, %v4245
        %v4958 = vsel %vm1489, %v3983, %v4247
        %v4959 = vsel %vm1489, %v3916, %v4249
        %v4960 = vsel %vm1489, %v3984, %v4251
        %v4961 = vsel %vm1489, %v3919, %v4253
        %v4962 = vsel %vm1555, %v4932, %v4285
        %v4963 = vsel %vm1555, %v4933, %v4287
        %v4964 = vsel %vm1555, %v4934, %v4289
        %v4965 = vsel %vm1555, %v4935, %v4291
        %v4966 = vsel %vm1555, %v4936, %v4293
        %v4967 = vsel %vm1555, %v4937, %v4295
        %v4968 = vsel %vm1555, %v4938, %v4297
        %v4969 = vsel %vm1555, %v4939, %v4299
        %v4970 = vsel %vm1555, %v4940, %v4301
        %v4971 = vsel %vm1555, %v4941, %v4303
        %v4972 = vsel %vm1555, %v4942, %v4305
        %v4973 = vsel %vm1555, %v4943, %v4307
        %v4974 = vsel %vm1555, %v4944, %v4309
        %v4975 = vsel %vm1555, %v4945, %v4311
        %v4976 = vsel %vm1555, %v4946, %v4313
        %v4977 = vsel %vm1555, %v4947, %v4315
        %v4978 = vsel %vm1555, %v4948, %v4317
        %v4979 = vsel %vm1555, %v4949, %v4319
        %v4980 = vsel %vm1555, %v4950, %v4321
        %v4981 = vsel %vm1555, %v4951, %v4323
        %v4982 = vsel %vm1555, %v4952, %v4325
        %v4983 = vsel %vm1555, %v4953, %v4327
        %v4984 = vsel %vm1555, %v4954, %v4329
        %v4985 = vsel %vm1555, %v4955, %v4331
        %v4986 = vsel %vm1555, %v4956, %v4333
        %v4987 = vsel %vm1555, %v4957, %v4335
        %v4988 = vsel %vm1555, %v4958, %v4337
        %v4989 = vsel %vm1555, %v4959, %v4339
        %v4990 = vsel %vm1555, %v4960, %v4341
        %v4991 = vsel %vm1555, %v4961, %v4343
        %v4992 = vsel %vm1621, %v3245, %v4375
        %v4993 = vsel %vm1621, %v3246, %v4377
        %v4994 = vsel %vm1621, %v4962, %v4379
        %v4995 = vsel %vm1621, %v4963, %v4381
        %v4996 = vsel %vm1621, %v4964, %v4383
        %v4997 = vsel %vm1621, %v4965, %v4385
        %v4998 = vsel %vm1621, %v4966, %v4387
        %v4999 = vsel %vm1621, %v4967, %v4389
        %v5000 = vsel %vm1621, %v4968, %v4391
        %v5001 = vsel %vm1621, %v4969, %v4393
        %v5002 = vsel %vm1621, %v4970, %v4395
        %v5003 = vsel %vm1621, %v4971, %v4397
        %v5004 = vsel %vm1621, %v4972, %v4399
        %v5005 = vsel %vm1621, %v4973, %v4401
        %v5006 = vsel %vm1621, %v4974, %v4403
        %v5007 = vsel %vm1621, %v4975, %v4405
        %v5008 = vsel %vm1621, %v4976, %v4407
        %v5009 = vsel %vm1621, %v4977, %v4409
        %v5010 = vsel %vm1621, %v4978, %v4411
        %v5011 = vsel %vm1621, %v4979, %v4413
        %v5012 = vsel %vm1621, %v4980, %v4415
        %v5013 = vsel %vm1621, %v4981, %v4417
        %v5014 = vsel %vm1621, %v4982, %v4419
        %v5015 = vsel %vm1621, %v4983, %v4421
        %v5016 = vsel %vm1621, %v4984, %v4423
        %v5017 = vsel %vm1621, %v4985, %v4425
        %v5018 = vsel %vm1621, %v4986, %v4427
        %v5019 = vsel %vm1621, %v4987, %v4429
        %v5020 = vsel %vm1621, %v4988, %v4431
        %v5021 = vsel %vm1621, %v4989, %v4433
        %v5022 = vsel %vm1621, %v4990, %v4435
        %v5023 = vsel %vm1621, %v4991, %v4437
        %v5024 = vsel %vm1687, %v4992, %v4471
        %v5025 = vsel %vm1687, %v4993, %v4473
        %v5026 = vsel %vm1687, %v4994, %v4475
        %v5027 = vsel %vm1687, %v4995, %v4477
        %v5028 = vsel %vm1687, %v4996, %v4479
        %v5029 = vsel %vm1687, %v4997, %v4481
        %v5030 = vsel %vm1687, %v4998, %v4483
        %v5031 = vsel %vm1687, %v4999, %v4485
        %v5032 = vsel %vm1687, %v5000, %v4487
        %v5033 = vsel %vm1687, %v5001, %v4489
        %v5034 = vsel %vm1687, %v5002, %v4491
        %v5035 = vsel %vm1687, %v5003, %v4493
        %v5036 = vsel %vm1687, %v5004, %v4495
        %v5037 = vsel %vm1687, %v5005, %v4497
        %v5038 = vsel %vm1687, %v5006, %v4499
        %v5039 = vsel %vm1687, %v5007, %v4501
        %v5040 = vsel %vm1687, %v5008, %v4503
        %v5041 = vsel %vm1687, %v5009, %v4505
        %v5042 = vsel %vm1687, %v5010, %v4507
        %v5043 = vsel %vm1687, %v5011, %v4509
        %v5044 = vsel %vm1687, %v5012, %v4511
        %v5045 = vsel %vm1687, %v5013, %v4513
        %v5046 = vsel %vm1687, %v5014, %v4515
        %v5047 = vsel %vm1687, %v5015, %v4517
        %v5048 = vsel %vm1687, %v5016, %v4519
        %v5049 = vsel %vm1687, %v5017, %v4521
        %v5050 = vsel %vm1687, %v5018, %v4523
        %v5051 = vsel %vm1687, %v5019, %v4525
        %v5052 = vsel %vm1687, %v5020, %v4527
        %v5053 = vsel %vm1687, %v5021, %v4529
        %v5054 = vsel %vm1687, %v5022, %v4531
        %v5055 = vsel %vm1687, %v5023, %v4533
        %v5056 = vsel %vm3341, %v5024, %v4567
        %v5057 = vsel %vm3341, %v5025, %v4569
        %v5058 = vsel %vm3341, %v5026, %v4571
        %v5059 = vsel %vm3341, %v5027, %v4573
        %v5060 = vsel %vm3341, %v5028, %v4575
        %v5061 = vsel %vm3341, %v5029, %v4577
        %v5062 = vsel %vm3341, %v5030, %v4579
        %v5063 = vsel %vm3341, %v5031, %v4581
        %v5064 = vsel %vm3341, %v5032, %v4583
        %v5065 = vsel %vm3341, %v5033, %v4585
        %v5066 = vsel %vm3341, %v5034, %v4587
        %v5067 = vsel %vm3341, %v5035, %v4589
        %v5068 = vsel %vm3341, %v5036, %v4591
        %v5069 = vsel %vm3341, %v5037, %v4593
        %v5070 = vsel %vm3341, %v5038, %v4595
        %v5071 = vsel %vm3341, %v5039, %v4597
        %v5072 = vsel %vm3341, %v5040, %v4599
        %v5073 = vsel %vm3341, %v5041, %v4601
        %v5074 = vsel %vm3341, %v5042, %v4603
        %v5075 = vsel %vm3341, %v5043, %v4605
        %v5076 = vsel %vm3341, %v5044, %v4607
        %v5077 = vsel %vm3341, %v5045, %v4609
        %v5078 = vsel %vm3341, %v5046, %v4611
        %v5079 = vsel %vm3341, %v5047, %v4613
        %v5080 = vsel %vm3341, %v5048, %v4615
        %v5081 = vsel %vm3341, %v5049, %v4617
        %v5082 = vsel %vm3341, %v5050, %v4619
        %v5083 = vsel %vm3341, %v5051, %v4621
        %v5084 = vsel %vm3341, %v5052, %v4623
        %v5085 = vsel %vm3341, %v5053, %v4625
        %v5086 = vsel %vm3341, %v5054, %v4627
        %v5087 = vsel %vm3341, %v5055, %v4629
        %v5088 = vsel %vm3374, %v5056, %v4663
        %v5089 = vsel %vm3374, %v5057, %v4665
        %v5090 = vsel %vm3374, %v5058, %v4667
        %v5091 = vsel %vm3374, %v5059, %v4669
        %v5092 = vsel %vm3374, %v5060, %v4671
        %v5093 = vsel %vm3374, %v5061, %v4673
        %v5094 = vsel %vm3374, %v5062, %v4675
        %v5095 = vsel %vm3374, %v5063, %v4677
        %v5096 = vsel %vm3374, %v5064, %v4679
        %v5097 = vsel %vm3374, %v5065, %v4681
        %v5098 = vsel %vm3374, %v5066, %v4683
        %v5099 = vsel %vm3374, %v5067, %v4685
        %v5100 = vsel %vm3374, %v5068, %v4687
        %v5101 = vsel %vm3374, %v5069, %v4689
        %v5102 = vsel %vm3374, %v5070, %v4691
        %v5103 = vsel %vm3374, %v5071, %v4693
        %v5104 = vsel %vm3374, %v5072, %v4695
        %v5105 = vsel %vm3374, %v5073, %v4697
        %v5106 = vsel %vm3374, %v5074, %v4699
        %v5107 = vsel %vm3374, %v5075, %v4701
        %v5108 = vsel %vm3374, %v5076, %v4703
        %v5109 = vsel %vm3374, %v5077, %v4705
        %v5110 = vsel %vm3374, %v5078, %v4707
        %v5111 = vsel %vm3374, %v5079, %v4709
        %v5112 = vsel %vm3374, %v5080, %v4711
        %v5113 = vsel %vm3374, %v5081, %v4713
        %v5114 = vsel %vm3374, %v5082, %v4715
        %v5115 = vsel %vm3374, %v5083, %v4717
        %v5116 = vsel %vm3374, %v5084, %v4719
        %v5117 = vsel %vm3374, %v5085, %v4721
        %v5118 = vsel %vm3374, %v5086, %v2986
        %v5119 = vsel %vm3374, %v5087, %v2988
        %v5120 = vsel %vm3407, %v5088, %v4753
        %v5121 = vsel %vm3407, %v5089, %v4755
        %v5122 = vsel %vm3407, %v5090, %v4757
        %v5123 = vsel %vm3407, %v5091, %v4759
        %v5124 = vsel %vm3407, %v5092, %v4761
        %v5125 = vsel %vm3407, %v5093, %v4763
        %v5126 = vsel %vm3407, %v5094, %v4765
        %v5127 = vsel %vm3407, %v5095, %v4767
        %v5128 = vsel %vm3407, %v5096, %v4769
        %v5129 = vsel %vm3407, %v5097, %v4771
        %v5130 = vsel %vm3407, %v5098, %v4773
        %v5131 = vsel %vm3407, %v5099, %v4775
        %v5132 = vsel %vm3407, %v5100, %v4777
        %v5133 = vsel %vm3407, %v5101, %v4779
        %v5134 = vsel %vm3407, %v5102, %v4781
        %v5135 = vsel %vm3407, %v5103, %v4783
        %v5136 = vsel %vm3407, %v5104, %v4785
        %v5137 = vsel %vm3407, %v5105, %v4787
        %v5138 = vsel %vm3407, %v5106, %v4789
        %v5139 = vsel %vm3407, %v5107, %v4791
        %v5140 = vsel %vm3407, %v5108, %v4793
        %v5141 = vsel %vm3407, %v5109, %v4795
        %v5142 = vsel %vm3407, %v5110, %v4797
        %v5143 = vsel %vm3407, %v5111, %v4799
        %v5144 = vsel %vm3407, %v5112, %v4801
        %v5145 = vsel %vm3407, %v5113, %v4803
        %v5146 = vsel %vm3407, %v5114, %v4805
        %v5147 = vsel %vm3407, %v5115, %v4807
        %v5148 = vsel %vm3407, %v5116, %v4809
        %v5149 = vsel %vm3407, %v5117, %v4811
        %v5150 = vsel %vm3407, %v5118, %v3082
        %v5151 = vsel %vm3407, %v5119, %v3084
        %v5152 = vsel %vm3440, %v5120, %v4843
        %v5153 = vsel %vm3440, %v5121, %v4845
        %v5154 = vsel %vm3440, %v5122, %v4847
        %v5155 = vsel %vm3440, %v5123, %v4849
        %v5156 = vsel %vm3440, %v5124, %v4851
        %v5157 = vsel %vm3440, %v5125, %v4853
        %v5158 = vsel %vm3440, %v5126, %v4855
        %v5159 = vsel %vm3440, %v5127, %v4857
        %v5160 = vsel %vm3440, %v5128, %v4859
        %v5161 = vsel %vm3440, %v5129, %v4861
        %v5162 = vsel %vm3440, %v5130, %v4863
        %v5163 = vsel %vm3440, %v5131, %v4865
        %v5164 = vsel %vm3440, %v5132, %v4867
        %v5165 = vsel %vm3440, %v5133, %v4869
        %v5166 = vsel %vm3440, %v5134, %v4871
        %v5167 = vsel %vm3440, %v5135, %v4873
        %v5168 = vsel %vm3440, %v5136, %v4875
        %v5169 = vsel %vm3440, %v5137, %v4877
        %v5170 = vsel %vm3440, %v5138, %v4879
        %v5171 = vsel %vm3440, %v5139, %v4881
        %v5172 = vsel %vm3440, %v5140, %v4883
        %v5173 = vsel %vm3440, %v5141, %v4885
        %v5174 = vsel %vm3440, %v5142, %v4887
        %v5175 = vsel %vm3440, %v5143, %v4889
        %v5176 = vsel %vm3440, %v5144, %v4891
        %v5177 = vsel %vm3440, %v5145, %v4893
        %v5178 = vsel %vm3440, %v5146, %v4895
        %v5179 = vsel %vm3440, %v5147, %v4897
        %v5180 = vsel %vm3440, %v5148, %v4899
        %v5181 = vsel %vm3440, %v5149, %v4901
        %v5182 = vsel %vm3440, %v5150, %v3178
        %v5183 = vsel %vm3440, %v5151, %v3180
        %v5185 = vlaneseq
        %v5186 = vshrl.u32 %v5185, 7
        %v5187 = vsub.s32 0, %v5186
        %v5188 = vrot.slane %v3842, %v5187
        %v5191 = vsel %vm3479, %v5152, 0
        %v5194 = vsel %vm3479, %v5153, 0
        %v5197 = vsel %vm3479, %v5154, 0
        %v5200 = vsel %vm3479, %v5155, 0
        %v5203 = vsel %vm3479, %v5156, 0
        %v5206 = vsel %vm3479, %v5157, 0
        %v5209 = vsel %vm3479, %v5158, 0
        %v5212 = vsel %vm3479, %v5159, 0
        %v5215 = vsel %vm3479, %v5160, 0
        %v5218 = vsel %vm3479, %v5161, 0
        %v5221 = vsel %vm3479, %v5162, 0
        %v5224 = vsel %vm3479, %v5163, 0
        %v5227 = vsel %vm3479, %v5164, 0
        %v5230 = vsel %vm3479, %v5165, 0
        %v5233 = vsel %vm3479, %v5166, 0
        %v5236 = vsel %vm3479, %v5167, 0
        %v5239 = vsel %vm3479, %v5168, 0
        %v5242 = vsel %vm3479, %v5169, 0
        %v5245 = vsel %vm3479, %v5170, 0
        %v5248 = vsel %vm3479, %v5171, 0
        %v5251 = vsel %vm3479, %v5172, 0
        %v5254 = vsel %vm3479, %v5173, 0
        %v5257 = vsel %vm3479, %v5174, 0
        %v5260 = vsel %vm3479, %v5175, 0
        %v5263 = vsel %vm3479, %v5176, 0
        %v5266 = vsel %vm3479, %v5177, 0
        %v5269 = vsel %vm3479, %v5178, 0
        %v5272 = vsel %vm3479, %v5179, 0
        %v5275 = vsel %vm3479, %v5180, 0
        %v5278 = vsel %vm3479, %v5181, 0
        %v5281 = vsel %vm3479, %v5182, 0
        %v5284 = vsel %vm3479, %v5183, 0
        %5286 = vmatprep.subr.mxu0 0.0
        %5287 = vmatpush1.msra.mxu0 %v3833
        %5288 = vmatprep.subr.mxu0 0.0
        %5289 = vmatpush1.msra.mxu0 %v3834
        %5290 = vmatprep.subr.mxu0 0.0
        %5291 = vmatpush1.msra.mxu0 %v3835
        %5292 = vmatprep.subr.mxu0 0.0
        %5293 = vmatpush1.msra.mxu0 %v3836
        %5294 = vmatprep.subr.mxu0 0.0
        %5295 = vmatpush1.msra.mxu0 %v3837
        %5296 = vmatprep.subr.mxu0 0.0
        %5297 = vmatpush1.msra.mxu0 %v3838
        %5298 = vmatprep.subr.mxu0 0.0
        %5299 = vmatpush1.msra.mxu0 %v3839
        %5300 = vmatprep.subr.mxu0 0.0
        %5301 = vmatpush1.msra.mxu0 %v3840
        %5302 = vmatprep.subr.mxu0 0.0
        %5303 = vmatpush1.msra.mxu0 %v3841
        %5304 = vmatprep.subr.mxu0 0.0
        %5305 = vmatpush1.msra.mxu0 0.0
        %5306 = vmatprep.subr.mxu0 0.0
        %5307 = vmatpush1.msra.mxu0 0.0
        %5308 = vmatprep.subr.mxu0 0.0
        %5309 = vmatpush1.msra.mxu0 0.0
        %5310 = vmatprep.subr.mxu0 0.0
        %5311 = vmatpush1.msra.mxu0 0.0
        %5312 = vmatprep.subr.mxu0 0.0
        %5313 = vmatpush1.msra.mxu0 0.0
        %5314 = vmatprep.subr.mxu0 0.0
        %5315 = vmatpush1.msra.mxu0 0.0
        %5316 = vmatprep.subr.mxu0 0.0
        %5317 = vmatpush1.msra.mxu0 0.0
        %5318 = vmatprep.subr.mxu0 0.0
        %5319 = vmatpush1.msra.mxu0 0.0
        %5320 = vmatprep.subr.mxu0 0.0
        %5321 = vmatpush1.msra.mxu0 0.0
        %5322 = vmatprep.subr.mxu0 0.0
        %5323 = vmatpush1.msra.mxu0 0.0
        %5324 = vmatprep.subr.mxu0 0.0
        %5325 = vmatpush1.msra.mxu0 0.0
        %5326 = vmatprep.subr.mxu0 0.0
        %5327 = vmatpush1.msra.mxu0 0.0
        %5328 = vmatprep.subr.mxu0 0.0
        %5329 = vmatpush1.msra.mxu0 0.0
        %5330 = vmatprep.subr.mxu0 0.0
        %5331 = vmatpush1.msra.mxu0 0.0
        %5332 = vmatprep.subr.mxu0 0.0
        %5333 = vmatpush1.msra.mxu0 0.0
        %5334 = vmatprep.subr.mxu0 0.0
        %5335 = vmatpush1.msra.mxu0 0.0
        %5336 = vmatprep.subr.mxu0 0.0
        %5337 = vmatpush1.msra.mxu0 0.0
        %5338 = vmatprep.subr.mxu0 0.0
        %5339 = vmatpush1.msra.mxu0 0.0
        %5340 = vmatprep.subr.mxu0 0.0
        %5341 = vmatpush1.msra.mxu0 0.0
        %5342 = vmatprep.subr.mxu0 0.0
        %5343 = vmatpush1.msra.mxu0 0.0
        %5344 = vmatprep.subr.mxu0 0.0
        %5345 = vmatpush1.msra.mxu0 0.0
        %5346 = vmatprep.subr.mxu0 0.0
        %5347 = vmatpush1.msra.mxu0 0.0
        %5348 = vmatprep.subr.mxu0 0.0
        %5349 = vmatpush1.msra.mxu0 0.0
        %5350 = vmatprep.mubr.f32.mxu0 0.0
        %5351 = vmatmul.mubr.f32.gmra.mrb[0].mxu0 %v5191
        %v5352 = vpop.f32.mrb[0].mxu0
        %v5353 = vadd.f32 %v5188, %v5352
        %v5354 = vpop.f32.mrb[0].mxu0
        %5355 = vmatprep.mubr.f32.mxu0 0.0
        %5356 = vmatmul.mubr.f32.gmra.mrb[0].mxu0 %v5194
        %v5357 = vpop.f32.mrb[0].mxu0
        %v5358 = vadd.f32 %v5188, %v5357
        %v5359 = vpop.f32.mrb[0].mxu0
        %5360 = vmatprep.mubr.f32.mxu0 0.0
        %5361 = vmatmul.mubr.f32.gmra.mrb[0].mxu0 %v5197
        %v5362 = vpop.f32.mrb[0].mxu0
        %v5363 = vadd.f32 %v5188, %v5362
        %v5364 = vpop.f32.mrb[0].mxu0
        %5365 = vmatprep.mubr.f32.mxu0 0.0
        %5366 = vmatmul.mubr.f32.gmra.mrb[0].mxu0 %v5200
        %v5367 = vpop.f32.mrb[0].mxu0
        %v5368 = vadd.f32 %v5188, %v5367
        %v5369 = vpop.f32.mrb[0].mxu0
        %5370 = vmatprep.mubr.f32.mxu0 0.0
        %5371 = vmatmul.mubr.f32.gmra.mrb[0].mxu0 %v5203
        %v5372 = vpop.f32.mrb[0].mxu0
        %v5373 = vadd.f32 %v5188, %v5372
        %v5374 = vpop.f32.mrb[0].mxu0
        %5375 = vmatprep.mubr.f32.mxu0 0.0
        %5376 = vmatmul.mubr.f32.gmra.mrb[0].mxu0 %v5206
        %v5377 = vpop.f32.mrb[0].mxu0
        %v5378 = vadd.f32 %v5188, %v5377
        %v5379 = vpop.f32.mrb[0].mxu0
        %5380 = vmatprep.mubr.f32.mxu0 0.0
        %5381 = vmatmul.mubr.f32.gmra.mrb[0].mxu0 %v5209
        %v5382 = vpop.f32.mrb[0].mxu0
        %v5383 = vadd.f32 %v5188, %v5382
        %v5384 = vpop.f32.mrb[0].mxu0
        %5385 = vmatprep.mubr.f32.mxu0 0.0
        %5386 = vmatmul.mubr.f32.gmra.mrb[0].mxu0 %v5212
        %v5387 = vpop.f32.mrb[0].mxu0
        %v5388 = vadd.f32 %v5188, %v5387
        %v5389 = vpop.f32.mrb[0].mxu0
        %5390 = vmatprep.mubr.f32.mxu0 0.0
        %5391 = vmatmul.mubr.f32.gmra.mrb[0].mxu0 %v5215
        %v5392 = vpop.f32.mrb[0].mxu0
        %v5393 = vadd.f32 %v5188, %v5392
        %v5394 = vpop.f32.mrb[0].mxu0
        %5395 = vmatprep.mubr.f32.mxu0 0.0
        %5396 = vmatmul.mubr.f32.gmra.mrb[0].mxu0 %v5218
        %v5397 = vpop.f32.mrb[0].mxu0
        %v5398 = vadd.f32 %v5188, %v5397
        %v5399 = vpop.f32.mrb[0].mxu0
        %5400 = vmatprep.mubr.f32.mxu0 0.0
        %5401 = vmatmul.mubr.f32.gmra.mrb[0].mxu0 %v5221
        %v5402 = vpop.f32.mrb[0].mxu0
        %v5403 = vadd.f32 %v5188, %v5402
        %v5404 = vpop.f32.mrb[0].mxu0
        %5405 = vmatprep.mubr.f32.mxu0 0.0
        %5406 = vmatmul.mubr.f32.gmra.mrb[0].mxu0 %v5224
        %v5407 = vpop.f32.mrb[0].mxu0
        %v5408 = vadd.f32 %v5188, %v5407
        %v5409 = vpop.f32.mrb[0].mxu0
        %5410 = vmatprep.mubr.f32.mxu0 0.0
        %5411 = vmatmul.mubr.f32.gmra.mrb[0].mxu0 %v5227
        %v5412 = vpop.f32.mrb[0].mxu0
        %v5413 = vadd.f32 %v5188, %v5412
        %v5414 = vpop.f32.mrb[0].mxu0
        %5415 = vmatprep.mubr.f32.mxu0 0.0
        %5416 = vmatmul.mubr.f32.gmra.mrb[0].mxu0 %v5230
        %v5417 = vpop.f32.mrb[0].mxu0
        %v5418 = vadd.f32 %v5188, %v5417
        %v5419 = vpop.f32.mrb[0].mxu0
        %5420 = vmatprep.mubr.f32.mxu0 0.0
        %5421 = vmatmul.mubr.f32.gmra.mrb[0].mxu0 %v5233
        %v5422 = vpop.f32.mrb[0].mxu0
        %v5423 = vadd.f32 %v5188, %v5422
        %v5424 = vpop.f32.mrb[0].mxu0
        %5425 = vmatprep.mubr.f32.mxu0 0.0
        %5426 = vmatmul.mubr.f32.gmra.mrb[0].mxu0 %v5236
        %v5427 = vpop.f32.mrb[0].mxu0
        %v5428 = vadd.f32 %v5188, %v5427
        %v5429 = vpop.f32.mrb[0].mxu0
        %5430 = vmatprep.mubr.f32.mxu0 0.0
        %5431 = vmatmul.mubr.f32.gmra.mrb[0].mxu0 %v5239
        %v5432 = vpop.f32.mrb[0].mxu0
        %v5433 = vadd.f32 %v5188, %v5432
        %v5434 = vpop.f32.mrb[0].mxu0
        %5435 = vmatprep.mubr.f32.mxu0 0.0
        %5436 = vmatmul.mubr.f32.gmra.mrb[0].mxu0 %v5242
        %v5437 = vpop.f32.mrb[0].mxu0
        %v5438 = vadd.f32 %v5188, %v5437
        %v5439 = vpop.f32.mrb[0].mxu0
        %5440 = vmatprep.mubr.f32.mxu0 0.0
        %5441 = vmatmul.mubr.f32.gmra.mrb[0].mxu0 %v5245
        %v5442 = vpop.f32.mrb[0].mxu0
        %v5443 = vadd.f32 %v5188, %v5442
        %v5444 = vpop.f32.mrb[0].mxu0
        %5445 = vmatprep.mubr.f32.mxu0 0.0
        %5446 = vmatmul.mubr.f32.gmra.mrb[0].mxu0 %v5248
        %v5447 = vpop.f32.mrb[0].mxu0
        %v5448 = vadd.f32 %v5188, %v5447
        %v5449 = vpop.f32.mrb[0].mxu0
        %5450 = vmatprep.mubr.f32.mxu0 0.0
        %5451 = vmatmul.mubr.f32.gmra.mrb[0].mxu0 %v5251
        %v5452 = vpop.f32.mrb[0].mxu0
        %v5453 = vadd.f32 %v5188, %v5452
        %v5454 = vpop.f32.mrb[0].mxu0
        %5455 = vmatprep.mubr.f32.mxu0 0.0
        %5456 = vmatmul.mubr.f32.gmra.mrb[0].mxu0 %v5254
        %v5457 = vpop.f32.mrb[0].mxu0
        %v5458 = vadd.f32 %v5188, %v5457
        %v5459 = vpop.f32.mrb[0].mxu0
        %5460 = vmatprep.mubr.f32.mxu0 0.0
        %5461 = vmatmul.mubr.f32.gmra.mrb[0].mxu0 %v5257
        %v5462 = vpop.f32.mrb[0].mxu0
        %v5463 = vadd.f32 %v5188, %v5462
        %v5464 = vpop.f32.mrb[0].mxu0
        %5465 = vmatprep.mubr.f32.mxu0 0.0
        %5466 = vmatmul.mubr.f32.gmra.mrb[0].mxu0 %v5260
        %v5467 = vpop.f32.mrb[0].mxu0
        %v5468 = vadd.f32 %v5188, %v5467
        %v5469 = vpop.f32.mrb[0].mxu0
        %5470 = vmatprep.mubr.f32.mxu0 0.0
        %5471 = vmatmul.mubr.f32.gmra.mrb[0].mxu0 %v5263
        %v5472 = vpop.f32.mrb[0].mxu0
        %v5473 = vadd.f32 %v5188, %v5472
        %v5474 = vpop.f32.mrb[0].mxu0
        %5475 = vmatprep.mubr.f32.mxu0 0.0
        %5476 = vmatmul.mubr.f32.gmra.mrb[0].mxu0 %v5266
        %v5477 = vpop.f32.mrb[0].mxu0
        %v5478 = vadd.f32 %v5188, %v5477
        %v5479 = vpop.f32.mrb[0].mxu0
        %5480 = vmatprep.mubr.f32.mxu0 0.0
        %5481 = vmatmul.mubr.f32.gmra.mrb[0].mxu0 %v5269
        %v5482 = vpop.f32.mrb[0].mxu0
        %v5483 = vadd.f32 %v5188, %v5482
        %v5484 = vpop.f32.mrb[0].mxu0
        %5485 = vmatprep.mubr.f32.mxu0 0.0
        %5486 = vmatmul.mubr.f32.gmra.mrb[0].mxu0 %v5272
        %v5487 = vpop.f32.mrb[0].mxu0
        %v5488 = vadd.f32 %v5188, %v5487
        %v5489 = vpop.f32.mrb[0].mxu0
        %5490 = vmatprep.mubr.f32.mxu0 0.0
        %5491 = vmatmul.mubr.f32.gmra.mrb[0].mxu0 %v5275
        %v5492 = vpop.f32.mrb[0].mxu0
        %v5493 = vadd.f32 %v5188, %v5492
        %v5494 = vpop.f32.mrb[0].mxu0
        %5495 = vmatprep.mubr.f32.mxu0 0.0
        %5496 = vmatmul.mubr.f32.gmra.mrb[0].mxu0 %v5278
        %v5497 = vpop.f32.mrb[0].mxu0
        %v5498 = vadd.f32 %v5188, %v5497
        %v5499 = vpop.f32.mrb[0].mxu0
        %5500 = vmatprep.mubr.f32.mxu0 0.0
        %5501 = vmatmul.mubr.f32.gmra.mrb[0].mxu0 %v5281
        %v5502 = vpop.f32.mrb[0].mxu0
        %v5503 = vadd.f32 %v5188, %v5502
        %v5504 = vpop.f32.mrb[0].mxu0
        %5505 = vmatprep.mubr.f32.mxu0 0.0
        %5506 = vmatmul.mubr.f32.gmra.mrb[0].mxu0 %v5284
        %v5507 = vpop.f32.mrb[0].mxu0
        %v5508 = vadd.f32 %v5188, %v5507
        %v5509 = vpop.f32.mrb[0].mxu0
        %5510 = vdwg.mxu0
        %v5511 = vmax.f32 %v5353, 0.0
        %v5512 = vmax.f32 %v5358, 0.0
        %v5513 = vmax.f32 %v5363, 0.0
        %v5514 = vmax.f32 %v5368, 0.0
        %v5515 = vmax.f32 %v5373, 0.0
        %v5516 = vmax.f32 %v5378, 0.0
        %v5517 = vmax.f32 %v5383, 0.0
        %v5518 = vmax.f32 %v5388, 0.0
        %v5519 = vmax.f32 %v5393, 0.0
        %v5520 = vmax.f32 %v5398, 0.0
        %v5521 = vmax.f32 %v5403, 0.0
        %v5522 = vmax.f32 %v5408, 0.0
        %v5523 = vmax.f32 %v5413, 0.0
        %v5524 = vmax.f32 %v5418, 0.0
        %v5525 = vmax.f32 %v5423, 0.0
        %v5526 = vmax.f32 %v5428, 0.0
        %v5527 = vmax.f32 %v5433, 0.0
        %v5528 = vmax.f32 %v5438, 0.0
        %v5529 = vmax.f32 %v5443, 0.0
        %v5530 = vmax.f32 %v5448, 0.0
        %v5531 = vmax.f32 %v5453, 0.0
        %v5532 = vmax.f32 %v5458, 0.0
        %v5533 = vmax.f32 %v5463, 0.0
        %v5534 = vmax.f32 %v5468, 0.0
        %v5535 = vmax.f32 %v5473, 0.0
        %v5536 = vmax.f32 %v5478, 0.0
        %v5537 = vmax.f32 %v5483, 0.0
        %v5538 = vmax.f32 %v5488, 0.0
        %v5539 = vmax.f32 %v5493, 0.0
        %v5540 = vmax.f32 %v5498, 0.0
        %v5541 = vmax.f32 %v5503, 0.0
        %v5542 = vmax.f32 %v5508, 0.0
        %v5543 = vadd.f32 %v5511, %v2052
        %v5544 = vadd.f32 %v5512, %v2053
        %v5545 = vadd.f32 %v5513, %v2054
        %v5546 = vadd.f32 %v5514, %v2055
        %v5547 = vadd.f32 %v5515, %v2056
        %v5548 = vadd.f32 %v5516, %v2057
        %v5549 = vadd.f32 %v5517, %v2058
        %v5550 = vadd.f32 %v5518, %v2059
        %v5551 = vadd.f32 %v5519, %v2060
        %v5552 = vadd.f32 %v5520, %v2061
        %v5553 = vadd.f32 %v5521, %v2062
        %v5554 = vadd.f32 %v5522, %v2063
        %v5555 = vadd.f32 %v5523, %v2064
        %v5556 = vadd.f32 %v5524, %v2065
        %v5557 = vadd.f32 %v5525, %v2066
        %v5558 = vadd.f32 %v5526, %v2067
        %v5559 = vadd.f32 %v5527, %v2068
        %v5560 = vadd.f32 %v5528, %v2069
        %v5561 = vadd.f32 %v5529, %v2070
        %v5562 = vadd.f32 %v5530, %v2071
        %v5563 = vadd.f32 %v5531, %v2072
        %v5564 = vadd.f32 %v5532, %v2073
        %v5565 = vadd.f32 %v5533, %v2074
        %v5566 = vadd.f32 %v5534, %v2075
        %v5567 = vadd.f32 %v5535, %v2076
        %v5568 = vadd.f32 %v5536, %v2077
        %v5569 = vadd.f32 %v5537, %v2078
        %v5570 = vadd.f32 %v5538, %v2079
        %v5571 = vadd.f32 %v5539, %v2080
        %v5572 = vadd.f32 %v5540, %v2081
        %v5573 = vadd.f32 %v5541, %v2082
        %v5574 = vadd.f32 %v5542, %v2083
        %5575 = vxpose.xlu0.b32.start [1/16] %v5543, 128
        %5576 = vxpose.xlu0.b32.cont [2/16] %v5544, 128
        %5577 = vxpose.xlu0.b32.cont [3/16] %v5545, 128
        %5578 = vxpose.xlu0.b32.cont [4/16] %v5546, 128
        %5579 = vxpose.xlu0.b32.cont [5/16] %v5547, 128
        %5580 = vxpose.xlu0.b32.cont [6/16] %v5548, 128
        %5581 = vxpose.xlu0.b32.cont [7/16] %v5549, 128
        %5582 = vxpose.xlu0.b32.cont [8/16] %v5550, 128
        %5583 = vxpose.xlu0.b32.cont [9/16] %v5551, 128
        %5584 = vxpose.xlu0.b32.cont [10/16] %v5552, 128
        %5585 = vxpose.xlu0.b32.cont [11/16] %v5553, 128
        %5586 = vxpose.xlu0.b32.cont [12/16] %v5554, 128
        %5587 = vxpose.xlu0.b32.cont [13/16] %v5555, 128
        %5588 = vxpose.xlu0.b32.cont [14/16] %v5556, 128
        %5589 = vxpose.xlu0.b32.cont [15/16] %v5557, 128
        %5590 = vxpose.xlu0.b32.end [16/16] %v5558, 128
        %v5591 = vpop.trf.xlu0
        %v5592 = vpop.trf.xlu0
        %v5593 = vpop.trf.xlu0
        %v5594 = vpop.trf.xlu0
        %v5595 = vpop.trf.xlu0
        %v5596 = vpop.trf.xlu0
        %v5597 = vpop.trf.xlu0
        %v5598 = vpop.trf.xlu0
        %v5599 = vpop.trf.xlu0
        %v5600 = vpop.trf.xlu0
        %v5601 = vpop.trf.xlu0
        %v5602 = vpop.trf.xlu0
        %v5603 = vpop.trf.xlu0
        %v5604 = vpop.trf.xlu0
        %v5605 = vpop.trf.xlu0
        %v5606 = vpop.trf.xlu0
        %5607 = vxpose.xlu0.b32.start [1/16] %v5559, 128
        %5608 = vxpose.xlu0.b32.cont [2/16] %v5560, 128
        %5609 = vxpose.xlu0.b32.cont [3/16] %v5561, 128
        %5610 = vxpose.xlu0.b32.cont [4/16] %v5562, 128
        %5611 = vxpose.xlu0.b32.cont [5/16] %v5563, 128
        %5612 = vxpose.xlu0.b32.cont [6/16] %v5564, 128
        %5613 = vxpose.xlu0.b32.cont [7/16] %v5565, 128
        %5614 = vxpose.xlu0.b32.cont [8/16] %v5566, 128
        %5615 = vxpose.xlu0.b32.cont [9/16] %v5567, 128
        %5616 = vxpose.xlu0.b32.cont [10/16] %v5568, 128
        %5617 = vxpose.xlu0.b32.cont [11/16] %v5569, 128
        %5618 = vxpose.xlu0.b32.cont [12/16] %v5570, 128
        %5619 = vxpose.xlu0.b32.cont [13/16] %v5571, 128
        %5620 = vxpose.xlu0.b32.cont [14/16] %v5572, 128
        %5621 = vxpose.xlu0.b32.cont [15/16] %v5573, 128
        %5622 = vxpose.xlu0.b32.end [16/16] %v5574, 128
        %v5623 = vpop.trf.xlu0
        %v5624 = vpop.trf.xlu0
        %v5625 = vpop.trf.xlu0
        %v5626 = vpop.trf.xlu0
        %v5627 = vpop.trf.xlu0
        %v5628 = vpop.trf.xlu0
        %v5629 = vpop.trf.xlu0
        %v5630 = vpop.trf.xlu0
        %v5631 = vpop.trf.xlu0
        %v5632 = vpop.trf.xlu0
        %v5633 = vpop.trf.xlu0
        %v5634 = vpop.trf.xlu0
        %v5635 = vpop.trf.xlu0
        %v5636 = vpop.trf.xlu0
        %v5637 = vpop.trf.xlu0
        %v5638 = vpop.trf.xlu0
        %5639 = vst [vmem:[%s271] sm:$0xff] %v5591
        %5640 = vst [vmem:[%s271 + $0x8] sm:$0xff] %v5623
        %s5641 = sand.u32 %s181, 1
        %s5642 = scalar_lea.sflag [#allocation3], %s5641
        %s5643 = sand.u32 %s181, 1
        %s5644 = smul.addr %s5643, 16
        %s5645 = scalar_lea.vmem [#allocation2], %s5644
        // Predicated region
        $region49: #{tpu_custom_call.1} parent=47 // pred_check
          %p5646 = pneg %p191
        $region50: #{tpu_custom_call.1} parent=47 // pred_check_branch
          %5648 = sbr.rel (%p5646) target = $region52
        $region51: #{tpu_custom_call.1} parent=47 // pred_region
          %s5650 = ssub.s32 256, 256
          %5651 = vsyncadd %s5642, %s5650
          %s5652 = smul.addr %s21, 2
          %s5653 = smul.addr %s5652, 128
          %s5654 = scalar_lea.hbm %s7, %s5653
          %s5656 = sshll.u32 %s5645, 4
          %s5657 = int_to_ptr.vmem [resolvable:$true] %s5656
          %5659 = dma.vmem_to_hbm [thread:$0]  %s5657, 256, %s5654, %s5642
        $region52: #{tpu_custom_call.1} parent=47 // pred_fallthru
          _
      $region48: #{tpu_custom_call.1} parent=5 // pred_fallthru
        _
      %p5660 = scmp.le.s32.totalorder 2, %s16
      // Predicated region
      $region53: #{tpu_custom_call.1} parent=5 // pred_check
        %p5661 = pneg %p5660
      $region54: #{tpu_custom_call.1} parent=5 // pred_check_branch
        %5663 = sbr.rel (%p5661) target = $region56
      $region55: #{tpu_custom_call.1} parent=5 // pred_region
        %s5664 = ssub.s32 %s16, 2
        // Predicated region
        $region57: #{tpu_custom_call.1} parent=55 // pred_check
          %p5665 = pneg %p197
        $region58: #{tpu_custom_call.1} parent=55 // pred_check_branch
          %5667 = sbr.rel (%p5665) target = $region60
        $region59: #{tpu_custom_call.1} parent=55 // pred_region
          %s5668 = sand.u32 %s182, 1
          %s5669 = scalar_lea.sflag [#allocation3], %s5668
          %s5670 = sand.u32 %s182, 1
          %s5671 = smul.addr %s5670, 16
          %s5672 = scalar_lea.vmem [#allocation2], %s5671
          %5673 = dma.done %s5669, 256
        $region60: #{tpu_custom_call.1} parent=55 // pred_fallthru
          _
      $region56: #{tpu_custom_call.1} parent=5 // pred_fallthru
        _
    $region6: #{tpu_custom_call.1} parent=1 // loop_footer
      %s20 = sadd.s32 1, %s16
    $region7: #{tpu_custom_call.1} parent=1 // loop_footer_branch
      %15 = sbr.rel target = $region3
    $region8: #{tpu_custom_call.1} parent=1 // loop_exit
      _
    %5674 = vsyncpa [#allocation3], 1
    %s5675 = scalar_lea.sflag [#allocation3], 1
    %5676 = vsyncpa %s5675, 1

</llo_original>
